<compile_context>
chip_gen: v6e
topology: v6e:2x2x1
jax: 0.10.0
libtpu: 0.0.40
codegen_flags: <defaults>
</compile_context>

<pallas_src>
import functools

import jax
import jax.numpy as jnp
from jax.experimental import pallas as pl
from jax.experimental.pallas import tpu as pltpu


def _round_up(x, m):
    return (x + m - 1) // m * m


def _mosaic_params(need_bytes):
    # Per-layer VMEM budget: double-buffered pipeline blocks + in-kernel temps,
    # clamped to <= 48 MiB so v7x (64 MiB/TC) keeps pipelining headroom.
    limit = int(min(48 << 20, max(16 << 20, need_bytes)))
    return pltpu.CompilerParams(
        dimension_semantics=("parallel",), vmem_limit_bytes=limit)


# --------------------------------------------------------------------------- #
# conv1: special-cased (per review).  Cin=1 makes the im2col/MXU formulation
# severely lane-sparse (9 of 128 lanes) and MXU-starved; the layer is
# compute-trivial, so it stays in XLA (conv + bias + ReLU + 2x2/2 max-pool).
# --------------------------------------------------------------------------- #
def conv1_relu_pool(x_nhwc, w_hwio, bias):
    y = jax.lax.conv_general_dilated(
        x_nhwc, w_hwio, window_strides=(1, 1), padding=((1, 1), (1, 1)),
        dimension_numbers=("NHWC", "HWIO", "NHWC"))
    y = jnp.maximum(y + bias, 0.0)
    y = jax.lax.reduce_window(y, jnp.array(-jnp.inf, y.dtype), jax.lax.max,
                              (1, 2, 2, 1), (1, 2, 2, 1), "VALID")
    return y.astype(jnp.bfloat16)


# --------------------------------------------------------------------------- #
# Kernel 1: fused 3x3-conv + bias + ReLU + 2x2/2 max-pool on a batch tile.
# Input is a space-to-depth'ed padded feature map:
#   row (b, iy, ix) of z holds xpad[b, 2*iy+sy, 2*ix+sx, c] laid out (sy,sx,c).
# Each pooled output (b, py, px) depends only on the 2x2 neighbourhood of cells
# (py..py+1, px..px+1), i.e. flattened row offsets {0, 1, Wt, Wt+1}: the im2col
# is done in-kernel with contiguous slices (no 9x HBM inflation).
# --------------------------------------------------------------------------- #
def _conv_pool_kernel(z_ref, w_ref, b_ref, o_ref, *, wt, cout, m_out):
    # z_ref: (tile_rows, 4*Cin) bf16   w_ref: (16*Cin, 4*Cout) bf16 (resident)
    # b_ref: (1, Cout) f32             o_ref: (tile_rows, Cout) bf16
    patch = jnp.concatenate(
        [z_ref[pl.ds(off, m_out), :] for off in (0, 1, wt, wt + 1)], axis=-1)
    # One long MXU stream: all 4 pool positions as one matmul along N.
    acc = jnp.dot(patch, w_ref[...], preferred_element_type=jnp.float32)
    pooled = acc[:, :cout]
    for g in range(1, 4):
        pooled = jnp.maximum(pooled, acc[:, g * cout:(g + 1) * cout])
    pooled = jnp.maximum(pooled + b_ref[...], 0.0)      # bias/ReLU after the max
    o_ref[pl.ds(0, m_out), :] = pooled.astype(o_ref.dtype)


def conv3x3_relu_pool(x_nhwc, wcat, bias, *, max_tile_b=32):
    """MaxPool2d(2,2)(ReLU(Conv2d(3x3, pad=1)(x))), one fused Pallas kernel."""
    B, H, W, Cin = x_nhwc.shape
    Cout = wcat.shape[1] // 4
    assert wcat.shape[0] == 16 * Cin
    Hp, Wp = H // 2, W // 2

    # Padded spatial dims: 1 px of real conv padding top/left, >=1 bottom/right,
    # rounded so the 2x2-cell grid is even-sized and Ht*Wt is sublane friendly.
    Ht = (H + 3) // 2
    Wt = (W + 3) // 2
    while (Ht * Wt) % 8:
        Wt += 1
    pad_b, pad_r = 2 * Ht - H - 1, 2 * Wt - W - 1

    # ---- XLA glue: 1x-sized space-to-depth relayout (NOT a 9x im2col) --------
    xpad = jnp.pad(x_nhwc.astype(jnp.bfloat16),
                   ((0, 0), (1, pad_b), (1, pad_r), (0, 0)))
    z = xpad.reshape(B, Ht, 2, Wt, 2, Cin).transpose(0, 1, 3, 2, 4, 5)
    z = z.reshape(B * Ht * Wt, 4 * Cin)

    # >=2 grid programs whenever B >= 2 so v7x's two TensorCores both get work.
    tile_b = max(1, min(max_tile_b, pl.cdiv(B, 2)))
    Bp = _round_up(B, tile_b)
    if Bp != B:
        z = jnp.pad(z, ((0, (Bp - B) * Ht * Wt), (0, 0)))
    tile_rows = tile_b * Ht * Wt
    m_out = tile_rows - (Wt + 1)   # rows whose full cell neighbourhood is in-tile
                                   # (covers every valid pooled position)

    in_blk = tile_rows * 4 * Cin * 2
    out_blk = tile_rows * Cout * 2
    w_bytes = int(wcat.size) * 2
    tmp = tile_rows * (16 * Cin * 2 + 4 * Cout * 4)   # patch concat + f32 acc
    params = _mosaic_params(2 * (in_blk + out_blk) + 2 * w_bytes + tmp + (4 << 20))

    out = pl.pallas_call(
        functools.partial(_conv_pool_kernel, wt=Wt, cout=Cout, m_out=m_out),
        out_shape=jax.ShapeDtypeStruct((Bp * Ht * Wt, Cout), jnp.bfloat16),
        grid=(Bp // tile_b,),
        in_specs=[
            pl.BlockSpec((tile_rows, 4 * Cin), lambda i: (i, 0)),
            pl.BlockSpec(wcat.shape, lambda i: (0, 0)),
            pl.BlockSpec(bias.shape, lambda i: (0, 0)),
        ],
        out_specs=pl.BlockSpec((tile_rows, Cout), lambda i: (i, 0)),
        compiler_params=params,
    )(z, wcat, bias)

    out = out[:B * Ht * Wt].reshape(B, Ht, Wt, Cout)
    return out[:, :Hp, :Wp, :]                 # drop padded / invalid cells


# --------------------------------------------------------------------------- #
# Kernel 2: fused FC head (fc1+ReLU -> fc2+ReLU -> fc3), activations in VMEM.
# --------------------------------------------------------------------------- #
def _fc_head_kernel(x_ref, w1_ref, b1_ref, w2_ref, b2_ref, w3_ref, b3_ref, o_ref):
    h = jnp.dot(x_ref[...], w1_ref[...], preferred_element_type=jnp.float32)
    h = jnp.maximum(h + b1_ref[...], 0.0)
    # Dropout(p=0.5) is identity in eval mode; no randomness applied here.
    h = jnp.dot(h.astype(jnp.bfloat16), w2_ref[...], preferred_element_type=jnp.float32)
    h = jnp.maximum(h + b2_ref[...], 0.0)
    h = jnp.dot(h.astype(jnp.bfloat16), w3_ref[...], preferred_element_type=jnp.float32)
    o_ref[...] = (h + b3_ref[...]).astype(o_ref.dtype)


def fc_head(x_flat, p):
    B, K = x_flat.shape
    n_pad = p["w_fc3"].shape[1]                         # lane-padded width (128)
    # Split real rows across 2 programs once the batch is big enough (v7x).
    tile_b = max(8, min(256, _round_up(pl.cdiv(B, 2), 8)))
    b_pad = _round_up(B, tile_b)
    x = x_flat.astype(jnp.bfloat16)
    if b_pad != B:
        x = jnp.pad(x, ((0, b_pad - B), (0, 0)))

    in_blk = tile_b * K * 2
    out_blk = tile_b * n_pad * 4
    w_bytes = sum(int(p[k].size) * 2 for k in ("w_fc1", "w_fc2", "w_fc3"))
    tmp = tile_b * (256 + 128 + n_pad) * 4
    params = _mosaic_params(2 * (in_blk + out_blk) + 2 * w_bytes + tmp + (4 << 20))

    out = pl.pallas_call(
        _fc_head_kernel,
        out_shape=jax.ShapeDtypeStruct((b_pad, n_pad), jnp.float32),
        grid=(b_pad // tile_b,),
        in_specs=[
            pl.BlockSpec((tile_b, K), lambda i: (i, 0)),
            pl.BlockSpec(p["w_fc1"].shape, lambda i: (0, 0)),
            pl.BlockSpec(p["b_fc1"].shape, lambda i: (0, 0)),
            pl.BlockSpec(p["w_fc2"].shape, lambda i: (0, 0)),
            pl.BlockSpec(p["b_fc2"].shape, lambda i: (0, 0)),
            pl.BlockSpec(p["w_fc3"].shape, lambda i: (0, 0)),
            pl.BlockSpec(p["b_fc3"].shape, lambda i: (0, 0)),
        ],
        out_specs=pl.BlockSpec((tile_b, n_pad), lambda i: (i, 0)),
        compiler_params=params,
    )(x, p["w_fc1"], p["b_fc1"], p["w_fc2"], p["b_fc2"], p["w_fc3"], p["b_fc3"])
    return out[:B, :10]


# --------------------------------------------------------------------------- #
# Parameter packing (PyTorch layout -> kernel layout), done once at prep time.
# --------------------------------------------------------------------------- #
def _pack_conv_s2d(w_oihw, bias):
    """(Cout,Cin,3,3) -> (16*Cin, 4*Cout) 'scattered' weights for the fused
    conv+pool kernel.  Rows follow the in-kernel patch layout (jy,jx,sy,sx,c);
    the 4 column blocks are the pool positions (dy,dx)."""
    cout, cin = w_oihw.shape[0], w_oihw.shape[1]
    w_kkc = jnp.transpose(jnp.asarray(w_oihw, jnp.float32), (2, 3, 1, 0))  # (ky,kx,cin,cout)
    zero = jnp.zeros((cin, cout), jnp.float32)
    rows = []
    for jy in range(2):
        for jx in range(2):
            for sy in range(2):
                for sx in range(2):
                    cols = []
                    for dy in range(2):
                        for dx in range(2):
                            ky, kx = 2 * jy + sy - dy, 2 * jx + sx - dx
                            cols.append(w_kkc[ky, kx]
                                        if 0 <= ky < 3 and 0 <= kx < 3 else zero)
                    rows.append(jnp.concatenate(cols, axis=1))      # (cin, 4*cout)
    wcat = jnp.concatenate(rows, axis=0).astype(jnp.bfloat16)       # (16*cin, 4*cout)
    return wcat, jnp.asarray(bias, jnp.float32).reshape(1, -1)


def pack_params(raw):
    bf16, f32 = jnp.bfloat16, jnp.float32
    p = {}
    # conv1 stays in XLA (HWIO layout for lax.conv).
    p["w1"] = jnp.transpose(raw["w1"], (2, 3, 1, 0)).astype(f32)    # (3,3,1,32)
    p["b1"] = jnp.asarray(raw["b1"], f32)
    # conv2/conv3: scattered 2x2-cell weights for the fused Pallas kernel.
    p["w2"], p["b2"] = _pack_conv_s2d(raw["w2"], raw["b2"])
    p["w3"], p["b3"] = _pack_conv_s2d(raw["w3"], raw["b3"])
    # fc1: permute input features from PyTorch NCHW flatten (c*9 + y*3 + x) to
    # the NHWC flatten order ((y*3 + x)*128 + c) the conv path produces.
    w_fc1 = raw["w_fc1"].reshape(256, 128, 3, 3)
    p["w_fc1"] = jnp.transpose(w_fc1, (2, 3, 1, 0)).reshape(128 * 9, 256).astype(bf16)
    p["b_fc1"] = jnp.asarray(raw["b_fc1"], f32).reshape(1, -1)
    p["w_fc2"] = raw["w_fc2"].T.astype(bf16)
    p["b_fc2"] = jnp.asarray(raw["b_fc2"], f32).reshape(1, -1)
    # fc3: zero-pad N=10 -> 128 so the output store is lane-dense (sliced later).
    p["w_fc3"] = jnp.zeros((128, 128), f32).at[:, :10].set(raw["w_fc3"].T).astype(bf16)
    p["b_fc3"] = jnp.zeros((1, 128), f32).at[0, :10].set(raw["b_fc3"])
    return p


# --------------------------------------------------------------------------- #
# Full forward pass (mirrors SimpleCNN.forward, eval mode)
# --------------------------------------------------------------------------- #
def simple_cnn_forward(x_nchw, p):
    x = jnp.transpose(x_nchw, (0, 2, 3, 1))             # NCHW -> NHWC
    x = conv1_relu_pool(x, p["w1"], p["b1"])            # (B, 14, 14, 32)  XLA
    x = conv3x3_relu_pool(x, p["w2"], p["b2"])          # (B, 7, 7, 64)    Pallas
    x = conv3x3_relu_pool(x, p["w3"], p["b3"])          # (B, 3, 3, 128)   Pallas
    x = x.reshape(x.shape[0], 3 * 3 * 128)              # NHWC flatten (fc1 pre-permuted)
    return fc_head(x, p)                                 # (B, 10) float32


def init_params(key):
    ks = jax.random.split(key, 12)
    f32 = jnp.float32

    def w(k, shape, scale=0.05):
        return (scale * jax.random.normal(k, shape)).astype(f32)

    return {
        "w1": w(ks[0], (32, 1, 3, 3)),         "b1": w(ks[1], (32,), 0.01),
        "w2": w(ks[2], (64, 32, 3, 3)),        "b2": w(ks[3], (64,), 0.01),
        "w3": w(ks[4], (128, 64, 3, 3)),       "b3": w(ks[5], (128,), 0.01),
        "w_fc1": w(ks[6], (256, 128 * 3 * 3)), "b_fc1": w(ks[7], (256,), 0.01),
        "w_fc2": w(ks[8], (128, 256)),         "b_fc2": w(ks[9], (128,), 0.01),
        "w_fc3": w(ks[10], (10, 128)),         "b_fc3": w(ks[11], (10,), 0.01),
    }


def reference_forward(x_nchw, raw):
    """Pure-JAX f32 reference of SimpleCNN.forward (eval mode)."""
    def conv_relu_pool(x, w, b):
        y = jax.lax.conv_general_dilated(
            x, jnp.transpose(w, (2, 3, 1, 0)), (1, 1), ((1, 1), (1, 1)),
            dimension_numbers=("NHWC", "HWIO", "NHWC"))
        y = jnp.maximum(y + b, 0.0)
        return jax.lax.reduce_window(y, jnp.array(-jnp.inf, y.dtype), jax.lax.max,
                                     (1, 2, 2, 1), (1, 2, 2, 1), "VALID")

    x = jnp.transpose(x_nchw, (0, 2, 3, 1)).astype(jnp.float32)
    x = conv_relu_pool(x, raw["w1"], raw["b1"])
    x = conv_relu_pool(x, raw["w2"], raw["b2"])
    x = conv_relu_pool(x, raw["w3"], raw["b3"])
    x = x.reshape(x.shape[0], -1)                        # NHWC flatten
    w1 = raw["w_fc1"].reshape(256, 128, 3, 3).transpose(2, 3, 1, 0).reshape(1152, 256)
    x = jnp.maximum(x @ w1 + raw["b_fc1"], 0.0)          # same math as NCHW flatten + fc1
    x = jnp.maximum(x @ raw["w_fc2"].T + raw["b_fc2"], 0.0)
    return x @ raw["w_fc3"].T + raw["b_fc3"]


if __name__ == "__main__":
    key = jax.random.PRNGKey(0)
    pkey, xkey = jax.random.split(key)
    raw = init_params(pkey)
    params = pack_params(raw)                            # one-time weight repack

    # FashionMNIST-shaped input (batch=2, 1, 28, 28) -- required by fc1 (128*3*3).
    x = jax.random.normal(xkey, (2, 1, 28, 28), dtype=jnp.float32)

    fwd = jax.jit(simple_cnn_forward)
    out = jax.block_until_ready(fwd(x, params))

    assert out.shape == (2, 10), out.shape
    assert out.dtype == jnp.float32
    assert bool(jnp.all(jnp.isfinite(out)))

    # Numerical sanity check vs. an f32 reference (bf16 MXU path -> loose tol).
    ref = reference_forward(x, raw)
    rel_err = float(jnp.max(jnp.abs(out - ref)) / (jnp.max(jnp.abs(ref)) + 1e-6))
    assert rel_err < 0.1, f"mismatch vs f32 reference: rel_err={rel_err}"

    print("KERNEL_OK")
</pallas_src>

<mosaic_0001>
module attributes {stable_mosaic.version = 11 : i64} {
  func.func @_conv_pool_kernel(%arg0: i32, %arg1: memref<64x128xbf16, #tpu.memory_space<vmem>>, %arg2: memref<512x256xbf16, #tpu.memory_space<vmem>>, %arg3: memref<1x64xf32, #tpu.memory_space<vmem>>, %arg4: memref<64x64xbf16, #tpu.memory_space<vmem>>) attributes {dimension_semantics = [#tpu.dimension_semantics<parallel>], iteration_bounds = array<i64: 2>, scalar_prefetch = 0 : i64, scratch_operands = 0 : i64, tpu.core_type = #tpu.core_type<tc>, window_params = [{transform_indices = @transform_0, window_bounds = array<i64: 64, 128>}, {pipeline_mode = #tpu.pipeline_mode<synchronous>, transform_indices = @transform_1, window_bounds = array<i64: 512, 256>}, {pipeline_mode = #tpu.pipeline_mode<synchronous>, transform_indices = @transform_2, window_bounds = array<i64: 1, 64>}, {transform_indices = @transform_3, window_bounds = array<i64: 64, 64>}]} {
    %c0 = arith.constant 0 : index
    %c0_0 = arith.constant 0 : index
    %0 = vector.load %arg1[%c0, %c0_0] : memref<64x128xbf16, #tpu.memory_space<vmem>>, vector<55x128xbf16>
    %c1 = arith.constant 1 : index
    %c0_1 = arith.constant 0 : index
    %1 = vector.load %arg1[%c1, %c0_1] : memref<64x128xbf16, #tpu.memory_space<vmem>>, vector<55x128xbf16>
    %c8 = arith.constant 8 : index
    %c0_2 = arith.constant 0 : index
    %2 = vector.load %arg1[%c8, %c0_2] : memref<64x128xbf16, #tpu.memory_space<vmem>>, vector<55x128xbf16>
    %c9 = arith.constant 9 : index
    %c0_3 = arith.constant 0 : index
    %3 = vector.load %arg1[%c9, %c0_3] : memref<64x128xbf16, #tpu.memory_space<vmem>>, vector<55x128xbf16>
    %4 = tpu.concatenate %0, %1, %2, %3 in 1 : vector<55x128xbf16>, vector<55x128xbf16>, vector<55x128xbf16>, vector<55x128xbf16> -> vector<55x512xbf16>
    %c0_4 = arith.constant 0 : index
    %c0_5 = arith.constant 0 : index
    %5 = vector.load %arg2[%c0_4, %c0_5] : memref<512x256xbf16, #tpu.memory_space<vmem>>, vector<512x256xbf16>
    %cst = arith.constant dense<0.000000e+00> : vector<55x256xf32>
    %6 = tpu.matmul %4, %5, %cst {dimension_numbers = #tpu.dot_dimension_numbers<[1], [0], [0], [1], [0, 0, 1, 1], [], []>} : vector<55x512xbf16>, vector<512x256xbf16>, vector<55x256xf32> -> vector<55x256xf32>
    %7 = vector.extract_strided_slice %6 {offsets = [0, 0], sizes = [55, 64], strides = [1, 1]} : vector<55x256xf32> to vector<55x64xf32>
    %8 = vector.extract_strided_slice %6 {offsets = [0, 64], sizes = [55, 64], strides = [1, 1]} : vector<55x256xf32> to vector<55x64xf32>
    %9 = arith.maximumf %7, %8 : vector<55x64xf32>
    %10 = vector.extract_strided_slice %6 {offsets = [0, 128], sizes = [55, 64], strides = [1, 1]} : vector<55x256xf32> to vector<55x64xf32>
    %11 = arith.maximumf %9, %10 : vector<55x64xf32>
    %12 = vector.extract_strided_slice %6 {offsets = [0, 192], sizes = [55, 64], strides = [1, 1]} : vector<55x256xf32> to vector<55x64xf32>
    %13 = arith.maximumf %11, %12 : vector<55x64xf32>
    %c0_6 = arith.constant 0 : index
    %c0_7 = arith.constant 0 : index
    %14 = vector.load %arg3[%c0_6, %c0_7] : memref<1x64xf32, #tpu.memory_space<vmem>>, vector<1x64xf32>
    %15 = vector.broadcast %14 : vector<1x64xf32> to vector<55x64xf32>
    %16 = arith.addf %13, %15 : vector<55x64xf32>
    %cst_8 = arith.constant 0.000000e+00 : f32
    %17 = vector.broadcast %cst_8 : f32 to vector<55x64xf32>
    %18 = arith.maximumf %16, %17 : vector<55x64xf32>
    %19 = arith.truncf %18 : vector<55x64xf32> to vector<55x64xbf16>
    %c0_9 = arith.constant 0 : index
    %c0_10 = arith.constant 0 : index
    %20 = vector.load %arg4[%c0_9, %c0_10] : memref<64x64xbf16, #tpu.memory_space<vmem>>, vector<55x64xbf16>
    tpu.vector_store %arg4[%c0_9, %c0_10], %19 {strides = array<i32>} : memref<64x64xbf16, #tpu.memory_space<vmem>>, vector<55x64xbf16>,
    return
  }
  func.func @transform_0(%arg0: i32) -> (i32, i32) {
    %c0_i32 = arith.constant 0 : i32
    %c0_i32_0 = arith.constant 0 : i32
    return %arg0, %c0_i32 : i32, i32
  }
  func.func @transform_1(%arg0: i32) -> (i32, i32) {
    %c0_i32 = arith.constant 0 : i32
    %c0_i32_0 = arith.constant 0 : i32
    %c0_i32_1 = arith.constant 0 : i32
    return %c0_i32, %c0_i32_0 : i32, i32
  }
  func.func @transform_2(%arg0: i32) -> (i32, i32) {
    %c0_i32 = arith.constant 0 : i32
    %c0_i32_0 = arith.constant 0 : i32
    %c0_i32_1 = arith.constant 0 : i32
    return %c0_i32, %c0_i32_0 : i32, i32
  }
  func.func @transform_3(%arg0: i32) -> (i32, i32) {
    %c0_i32 = arith.constant 0 : i32
    %c0_i32_0 = arith.constant 0 : i32
    return %arg0, %c0_i32 : i32, i32
  }
}

module attributes {stable_mosaic.version = 11 : i64} {
  func.func @_conv_pool_kernel(%arg0: i32, %arg1: memref<40x256xbf16, #tpu.memory_space<vmem>>, %arg2: memref<1024x512xbf16, #tpu.memory_space<vmem>>, %arg3: memref<1x128xf32, #tpu.memory_space<vmem>>, %arg4: memref<40x128xbf16, #tpu.memory_space<vmem>>) attributes {dimension_semantics = [#tpu.dimension_semantics<parallel>], iteration_bounds = array<i64: 2>, scalar_prefetch = 0 : i64, scratch_operands = 0 : i64, tpu.core_type = #tpu.core_type<tc>, window_params = [{transform_indices = @transform_0, window_bounds = array<i64: 40, 256>}, {pipeline_mode = #tpu.pipeline_mode<synchronous>, transform_indices = @transform_1, window_bounds = array<i64: 1024, 512>}, {pipeline_mode = #tpu.pipeline_mode<synchronous>, transform_indices = @transform_2, window_bounds = array<i64: 1, 128>}, {transform_indices = @transform_3, window_bounds = array<i64: 40, 128>}]} {
    %c0 = arith.constant 0 : index
    %c0_0 = arith.constant 0 : index
    %0 = vector.load %arg1[%c0, %c0_0] : memref<40x256xbf16, #tpu.memory_space<vmem>>, vector<31x256xbf16>
    %c1 = arith.constant 1 : index
    %c0_1 = arith.constant 0 : index
    %1 = vector.load %arg1[%c1, %c0_1] : memref<40x256xbf16, #tpu.memory_space<vmem>>, vector<31x256xbf16>
    %c8 = arith.constant 8 : index
    %c0_2 = arith.constant 0 : index
    %2 = vector.load %arg1[%c8, %c0_2] : memref<40x256xbf16, #tpu.memory_space<vmem>>, vector<31x256xbf16>
    %c9 = arith.constant 9 : index
    %c0_3 = arith.constant 0 : index
    %3 = vector.load %arg1[%c9, %c0_3] : memref<40x256xbf16, #tpu.memory_space<vmem>>, vector<31x256xbf16>
    %4 = tpu.concatenate %0, %1, %2, %3 in 1 : vector<31x256xbf16>, vector<31x256xbf16>, vector<31x256xbf16>, vector<31x256xbf16> -> vector<31x1024xbf16>
    %c0_4 = arith.constant 0 : index
    %c0_5 = arith.constant 0 : index
    %5 = vector.load %arg2[%c0_4, %c0_5] : memref<1024x512xbf16, #tpu.memory_space<vmem>>, vector<1024x512xbf16>
    %cst = arith.constant dense<0.000000e+00> : vector<31x512xf32>
    %6 = tpu.matmul %4, %5, %cst {dimension_numbers = #tpu.dot_dimension_numbers<[1], [0], [0], [1], [0, 0, 1, 1], [], []>} : vector<31x1024xbf16>, vector<1024x512xbf16>, vector<31x512xf32> -> vector<31x512xf32>
    %7 = vector.extract_strided_slice %6 {offsets = [0, 0], sizes = [31, 128], strides = [1, 1]} : vector<31x512xf32> to vector<31x128xf32>
    %8 = vector.extract_strided_slice %6 {offsets = [0, 128], sizes = [31, 128], strides = [1, 1]} : vector<31x512xf32> to vector<31x128xf32>
    %9 = arith.maximumf %7, %8 : vector<31x128xf32>
    %10 = vector.extract_strided_slice %6 {offsets = [0, 256], sizes = [31, 128], strides = [1, 1]} : vector<31x512xf32> to vector<31x128xf32>
    %11 = arith.maximumf %9, %10 : vector<31x128xf32>
    %12 = vector.extract_strided_slice %6 {offsets = [0, 384], sizes = [31, 128], strides = [1, 1]} : vector<31x512xf32> to vector<31x128xf32>
    %13 = arith.maximumf %11, %12 : vector<31x128xf32>
    %c0_6 = arith.constant 0 : index
    %c0_7 = arith.constant 0 : index
    %14 = vector.load %arg3[%c0_6, %c0_7] : memref<1x128xf32, #tpu.memory_space<vmem>>, vector<1x128xf32>
    %15 = vector.broadcast %14 : vector<1x128xf32> to vector<31x128xf32>
    %16 = arith.addf %13, %15 : vector<31x128xf32>
    %cst_8 = arith.constant 0.000000e+00 : f32
    %17 = vector.broadcast %cst_8 : f32 to vector<31x128xf32>
    %18 = arith.maximumf %16, %17 : vector<31x128xf32>
    %19 = arith.truncf %18 : vector<31x128xf32> to vector<31x128xbf16>
    %c0_9 = arith.constant 0 : index
    %c0_10 = arith.constant 0 : index
    %20 = vector.load %arg4[%c0_9, %c0_10] : memref<40x128xbf16, #tpu.memory_space<vmem>>, vector<31x128xbf16>
    tpu.vector_store %arg4[%c0_9, %c0_10], %19 {strides = array<i32>} : memref<40x128xbf16, #tpu.memory_space<vmem>>, vector<31x128xbf16>,
    return
  }
  func.func @transform_0(%arg0: i32) -> (i32, i32) {
    %c0_i32 = arith.constant 0 : i32
    %c0_i32_0 = arith.constant 0 : i32
    return %arg0, %c0_i32 : i32, i32
  }
  func.func @transform_1(%arg0: i32) -> (i32, i32) {
    %c0_i32 = arith.constant 0 : i32
    %c0_i32_0 = arith.constant 0 : i32
    %c0_i32_1 = arith.constant 0 : i32
    return %c0_i32, %c0_i32_0 : i32, i32
  }
  func.func @transform_2(%arg0: i32) -> (i32, i32) {
    %c0_i32 = arith.constant 0 : i32
    %c0_i32_0 = arith.constant 0 : i32
    %c0_i32_1 = arith.constant 0 : i32
    return %c0_i32, %c0_i32_0 : i32, i32
  }
  func.func @transform_3(%arg0: i32) -> (i32, i32) {
    %c0_i32 = arith.constant 0 : i32
    %c0_i32_0 = arith.constant 0 : i32
    return %arg0, %c0_i32 : i32, i32
  }
}

module attributes {stable_mosaic.version = 11 : i64} {
  func.func @_fc_head_kernel(%arg0: i32, %arg1: memref<8x1152xbf16, #tpu.memory_space<vmem>>, %arg2: memref<1152x256xbf16, #tpu.memory_space<vmem>>, %arg3: memref<1x256xf32, #tpu.memory_space<vmem>>, %arg4: memref<256x128xbf16, #tpu.memory_space<vmem>>, %arg5: memref<1x128xf32, #tpu.memory_space<vmem>>, %arg6: memref<128x128xbf16, #tpu.memory_space<vmem>>, %arg7: memref<1x128xf32, #tpu.memory_space<vmem>>, %arg8: memref<8x128xf32, #tpu.memory_space<vmem>>) attributes {dimension_semantics = [#tpu.dimension_semantics<parallel>], iteration_bounds = array<i64: 1>, scalar_prefetch = 0 : i64, scratch_operands = 0 : i64, tpu.core_type = #tpu.core_type<tc>, window_params = [{transform_indices = @transform_0, window_bounds = array<i64: 8, 1152>}, {pipeline_mode = #tpu.pipeline_mode<synchronous>, transform_indices = @transform_1, window_bounds = array<i64: 1152, 256>}, {pipeline_mode = #tpu.pipeline_mode<synchronous>, transform_indices = @transform_2, window_bounds = array<i64: 1, 256>}, {pipeline_mode = #tpu.pipeline_mode<synchronous>, transform_indices = @transform_3, window_bounds = array<i64: 256, 128>}, {pipeline_mode = #tpu.pipeline_mode<synchronous>, transform_indices = @transform_4, window_bounds = array<i64: 1, 128>}, {pipeline_mode = #tpu.pipeline_mode<synchronous>, transform_indices = @transform_5, window_bounds = array<i64: 128, 128>}, {pipeline_mode = #tpu.pipeline_mode<synchronous>, transform_indices = @transform_6, window_bounds = array<i64: 1, 128>}, {transform_indices = @transform_7, window_bounds = array<i64: 8, 128>}]} {
    %c0 = arith.constant 0 : index
    %c0_0 = arith.constant 0 : index
    %0 = vector.load %arg1[%c0, %c0_0] : memref<8x1152xbf16, #tpu.memory_space<vmem>>, vector<8x1152xbf16>
    %c0_1 = arith.constant 0 : index
    %c0_2 = arith.constant 0 : index
    %1 = vector.load %arg2[%c0_1, %c0_2] : memref<1152x256xbf16, #tpu.memory_space<vmem>>, vector<1152x256xbf16>
    %cst = arith.constant dense<0.000000e+00> : vector<8x256xf32>
    %2 = tpu.matmul %0, %1, %cst {dimension_numbers = #tpu.dot_dimension_numbers<[1], [0], [0], [1], [0, 0, 1, 1], [], []>} : vector<8x1152xbf16>, vector<1152x256xbf16>, vector<8x256xf32> -> vector<8x256xf32>
    %c0_3 = arith.constant 0 : index
    %c0_4 = arith.constant 0 : index
    %3 = vector.load %arg3[%c0_3, %c0_4] : memref<1x256xf32, #tpu.memory_space<vmem>>, vector<1x256xf32>
    %4 = vector.broadcast %3 : vector<1x256xf32> to vector<8x256xf32>
    %5 = arith.addf %2, %4 : vector<8x256xf32>
    %cst_5 = arith.constant 0.000000e+00 : f32
    %6 = vector.broadcast %cst_5 : f32 to vector<8x256xf32>
    %7 = arith.maximumf %5, %6 : vector<8x256xf32>
    %8 = arith.truncf %7 : vector<8x256xf32> to vector<8x256xbf16>
    %c0_6 = arith.constant 0 : index
    %c0_7 = arith.constant 0 : index
    %9 = vector.load %arg4[%c0_6, %c0_7] : memref<256x128xbf16, #tpu.memory_space<vmem>>, vector<256x128xbf16>
    %cst_8 = arith.constant dense<0.000000e+00> : vector<8x128xf32>
    %10 = tpu.matmul %8, %9, %cst_8 {dimension_numbers = #tpu.dot_dimension_numbers<[1], [0], [0], [1], [0, 0, 1, 1], [], []>} : vector<8x256xbf16>, vector<256x128xbf16>, vector<8x128xf32> -> vector<8x128xf32>
    %c0_9 = arith.constant 0 : index
    %c0_10 = arith.constant 0 : index
    %11 = vector.load %arg5[%c0_9, %c0_10] : memref<1x128xf32, #tpu.memory_space<vmem>>, vector<1x128xf32>
    %12 = vector.broadcast %11 : vector<1x128xf32> to vector<8x128xf32>
    %13 = arith.addf %10, %12 : vector<8x128xf32>
    %cst_11 = arith.constant 0.000000e+00 : f32
    %14 = vector.broadcast %cst_11 : f32 to vector<8x128xf32>
    %15 = arith.maximumf %13, %14 : vector<8x128xf32>
    %16 = arith.truncf %15 : vector<8x128xf32> to vector<8x128xbf16>
    %c0_12 = arith.constant 0 : index
    %c0_13 = arith.constant 0 : index
    %17 = vector.load %arg6[%c0_12, %c0_13] : memref<128x128xbf16, #tpu.memory_space<vmem>>, vector<128x128xbf16>
    %cst_14 = arith.constant dense<0.000000e+00> : vector<8x128xf32>
    %18 = tpu.matmul %16, %17, %cst_14 {dimension_numbers = #tpu.dot_dimension_numbers<[1], [0], [0], [1], [0, 0, 1, 1], [], []>} : vector<8x128xbf16>, vector<128x128xbf16>, vector<8x128xf32> -> vector<8x128xf32>
    %c0_15 = arith.constant 0 : index
    %c0_16 = arith.constant 0 : index
    %19 = vector.load %arg7[%c0_15, %c0_16] : memref<1x128xf32, #tpu.memory_space<vmem>>, vector<1x128xf32>
    %20 = vector.broadcast %19 : vector<1x128xf32> to vector<8x128xf32>
    %21 = arith.addf %18, %20 : vector<8x128xf32>
    %c0_17 = arith.constant 0 : index
    %c0_18 = arith.constant 0 : index
    %22 = vector.load %arg8[%c0_17, %c0_18] : memref<8x128xf32, #tpu.memory_space<vmem>>, vector<8x128xf32>
    tpu.vector_store %arg8[%c0_17, %c0_18], %21 {strides = array<i32>} : memref<8x128xf32, #tpu.memory_space<vmem>>, vector<8x128xf32>,
    return
  }
  func.func @transform_0(%arg0: i32) -> (i32, i32) {
    %c0_i32 = arith.constant 0 : i32
    %c0_i32_0 = arith.constant 0 : i32
    return %arg0, %c0_i32 : i32, i32
  }
  func.func @transform_1(%arg0: i32) -> (i32, i32) {
    %c0_i32 = arith.constant 0 : i32
    %c0_i32_0 = arith.constant 0 : i32
    %c0_i32_1 = arith.constant 0 : i32
    return %c0_i32, %c0_i32_0 : i32, i32
  }
  func.func @transform_2(%arg0: i32) -> (i32, i32) {
    %c0_i32 = arith.constant 0 : i32
    %c0_i32_0 = arith.constant 0 : i32
    %c0_i32_1 = arith.constant 0 : i32
    return %c0_i32, %c0_i32_0 : i32, i32
  }
  func.func @transform_3(%arg0: i32) -> (i32, i32) {
    %c0_i32 = arith.constant 0 : i32
    %c0_i32_0 = arith.constant 0 : i32
    %c0_i32_1 = arith.constant 0 : i32
    return %c0_i32, %c0_i32_0 : i32, i32
  }
  func.func @transform_4(%arg0: i32) -> (i32, i32) {
    %c0_i32 = arith.constant 0 : i32
    %c0_i32_0 = arith.constant 0 : i32
    %c0_i32_1 = arith.constant 0 : i32
    return %c0_i32, %c0_i32_0 : i32, i32
  }
  func.func @transform_5(%arg0: i32) -> (i32, i32) {
    %c0_i32 = arith.constant 0 : i32
    %c0_i32_0 = arith.constant 0 : i32
    %c0_i32_1 = arith.constant 0 : i32
    return %c0_i32, %c0_i32_0 : i32, i32
  }
  func.func @transform_6(%arg0: i32) -> (i32, i32) {
    %c0_i32 = arith.constant 0 : i32
    %c0_i32_0 = arith.constant 0 : i32
    %c0_i32_1 = arith.constant 0 : i32
    return %c0_i32, %c0_i32_0 : i32, i32
  }
  func.func @transform_7(%arg0: i32) -> (i32, i32) {
    %c0_i32 = arith.constant 0 : i32
    %c0_i32_0 = arith.constant 0 : i32
    return %arg0, %c0_i32 : i32, i32
  }
}

</mosaic_0001>

<llo_original>
// kernel: simple_cnn_forward.3
$region0: #{simple_cnn_forward.3}
  #allocation0 [shape = 'u32[]', space=smem, size = 0x4, offset = 0x4, fixed_abs, tag = 'smem constant byte address 0x4 - core index']
  #allocation1 [shape = 'u32[144,128]{1,0:T(1,128)}', space=vmem, size = 0x12000, scoped, tag = 'internal scratch']
  %s0 = inlined_call_operand.vmem [shape: bf16[128,128], index: 0, kind: input, shape index: {}]
  %s1 = inlined_call_operand.vmem [shape: bf16[512,256], index: 1, kind: input, shape index: {}]
  %s2 = inlined_call_operand.vmem [shape: f32[1,64], index: 2, kind: input, shape index: {}]
  %s3 = inlined_call_operand.vmem [shape: bf16[128,64], index: 3, kind: output, shape index: {}]
  %s4 = sld [smem:[#allocation0]]
  $region45: #{simple_cnn_forward.3} parent=0
    _
  %s6 = ssub.s32 1, %s4
  %s7 = scalar_select 0, %s6, %s4
  loop: start=0, step=1, limit=4
  $region2: #{simple_cnn_forward.3} parent=0 // loop_pre_header
    _
  $region3: #{simple_cnn_forward.3} parent=0 // loop_header
    %s9 = sphi 0, %s13
    %p10 = scmp.ge.s32.totalorder %s9, 4
    %s19 = sphi 0, %s21
    %s22 = sphi 0, %s19
    %s23 = sphi 0, %s22
    %s39 = sphi 0, %s23
    %s43 = sphi 0, %s43
    %s45 = sphi 0, %s43
    %s46 = sphi 0, %s45
    %s60 = sphi 0, %s46
    %s64 = sphi 0, %s64
    %s66 = sphi 0, %s64
    %s67 = sphi 0, %s66
    %s81 = sphi 0, %s67
    %s87 = sphi 0, %s89
    %s90 = sphi 0, %s87
    %s91 = sphi 0, %s90
    %s107 = sphi 0, %s91
  $region4: #{simple_cnn_forward.3} parent=0 // loop_header_branch
    %12 = sbr.rel (%p10) target = $region8
  $region5: #{simple_cnn_forward.3} parent=0 // loop_body
    %s14 = ssub.s32 %s9, 1
    %s15 = ssub.s32 %s9, 2
    %s16 = sadd.s32 %s9, 1
    %s17 = ssub.s32 %s9, %s16
    %p18 = scmp.eq.s32.totalorder %s17, 0
    %s20 = sadd.s32 %s19, 1
    %s21 = scalar_select %p18, %s19, %s20
    %p24 = pneg %p18
    %p25 = scmp.eq.s32.totalorder %s9, 1
    %p26 = por %p24, %p25
    %p27 = scmp.ne.s32.totalorder %s19, %s22
    %p28 = scmp.eq.s32.totalorder %s9, 0
    %p29 = por %p27, %p28
    %p30 = scmp.ne.s32.totalorder %s19, %s22
    %p31 = scmp.eq.s32.totalorder %s14, 1
    %p32 = por %p30, %p31
    %p33 = scmp.ne.s32.totalorder %s22, %s23
    %p34 = scmp.eq.s32.totalorder %s14, 0
    %p35 = por %p33, %p34
    %p36 = scmp.ne.s32.totalorder %s22, %s23
    %p37 = scmp.eq.s32.totalorder %s15, 1
    %p38 = por %p36, %p37
    %p40 = scmp.ne.s32.totalorder %s23, %s39
    %p41 = scmp.eq.s32.totalorder %s15, 0
    %p42 = por %p40, %p41
    %s44 = sadd.s32 %s43, 1
    %p47 = scmp.eq.s32.totalorder %s9, 1
    %p48 = scmp.ne.s32.totalorder %s43, %s45
    %p49 = scmp.eq.s32.totalorder %s9, 0
    %p50 = por %p48, %p49
    %p51 = scmp.ne.s32.totalorder %s43, %s45
    %p52 = scmp.eq.s32.totalorder %s14, 1
    %p53 = por %p51, %p52
    %p54 = scmp.ne.s32.totalorder %s45, %s46
    %p55 = scmp.eq.s32.totalorder %s14, 0
    %p56 = por %p54, %p55
    %p57 = scmp.ne.s32.totalorder %s45, %s46
    %p58 = scmp.eq.s32.totalorder %s15, 1
    %p59 = por %p57, %p58
    %p61 = scmp.ne.s32.totalorder %s46, %s60
    %p62 = scmp.eq.s32.totalorder %s15, 0
    %p63 = por %p61, %p62
    %s65 = sadd.s32 %s64, 1
    %p68 = scmp.eq.s32.totalorder %s9, 1
    %p69 = scmp.ne.s32.totalorder %s64, %s66
    %p70 = scmp.eq.s32.totalorder %s9, 0
    %p71 = por %p69, %p70
    %p72 = scmp.ne.s32.totalorder %s64, %s66
    %p73 = scmp.eq.s32.totalorder %s14, 1
    %p74 = por %p72, %p73
    %p75 = scmp.ne.s32.totalorder %s66, %s67
    %p76 = scmp.eq.s32.totalorder %s14, 0
    %p77 = por %p75, %p76
    %p78 = scmp.ne.s32.totalorder %s66, %s67
    %p79 = scmp.eq.s32.totalorder %s15, 1
    %p80 = por %p78, %p79
    %p82 = scmp.ne.s32.totalorder %s67, %s81
    %p83 = scmp.eq.s32.totalorder %s15, 0
    %p84 = por %p82, %p83
    %s85 = ssub.s32 %s9, %s16
    %p86 = scmp.eq.s32.totalorder %s85, 0
    %s88 = sadd.s32 %s87, 1
    %s89 = scalar_select %p86, %s87, %s88
    %p92 = pneg %p86
    %p93 = scmp.eq.s32.totalorder %s9, 1
    %p94 = por %p92, %p93
    %p95 = scmp.ne.s32.totalorder %s87, %s90
    %p96 = scmp.eq.s32.totalorder %s9, 0
    %p97 = por %p95, %p96
    %p98 = scmp.ne.s32.totalorder %s87, %s90
    %p99 = scmp.eq.s32.totalorder %s14, 1
    %p100 = por %p98, %p99
    %p101 = scmp.ne.s32.totalorder %s90, %s91
    %p102 = scmp.eq.s32.totalorder %s14, 0
    %p103 = por %p101, %p102
    %p104 = scmp.ne.s32.totalorder %s90, %s91
    %p105 = scmp.eq.s32.totalorder %s15, 1
    %p106 = por %p104, %p105
    %p108 = scmp.ne.s32.totalorder %s91, %s107
    %p109 = scmp.eq.s32.totalorder %s15, 0
    %p110 = por %p108, %p109
    %p111 = scmp.le.s32.totalorder 1, %s9
    %p112 = scmp.lt.s32.totalorder %s9, 3
    %p113 = pnand %p111, %p112
    %p114 = pneg %p113
    // Predicated region
    $region9: #{simple_cnn_forward.3} parent=5 // pred_check
      _
    $region10: #{simple_cnn_forward.3} parent=5 // pred_check_branch
      %116 = sbr.rel (%p113) target = $region12
    $region11: #{simple_cnn_forward.3} parent=5 // pred_region
      %s117 = ssub.s32 %s9, 1
      // Predicated region
      $region13: #{simple_cnn_forward.3} parent=11 // pred_check
        %p118 = pneg %p56
      $region14: #{simple_cnn_forward.3} parent=11 // pred_check_branch
        %120 = sbr.rel (%p118) target = $region16
      $region15: #{simple_cnn_forward.3} parent=11 // pred_region
        _
      $region16: #{simple_cnn_forward.3} parent=11 // pred_fallthru
        _
      // Predicated region
      $region17: #{simple_cnn_forward.3} parent=11 // pred_check
        %p121 = pneg %p77
      $region18: #{simple_cnn_forward.3} parent=11 // pred_check_branch
        %123 = sbr.rel (%p121) target = $region20
      $region19: #{simple_cnn_forward.3} parent=11 // pred_region
        _
      $region20: #{simple_cnn_forward.3} parent=11 // pred_fallthru
        _
    $region12: #{simple_cnn_forward.3} parent=5 // pred_fallthru
      _
    %p124 = scmp.lt.s32.totalorder %s9, 2
    // Predicated region
    $region21: #{simple_cnn_forward.3} parent=5 // pred_check
      %p125 = pneg %p124
    $region22: #{simple_cnn_forward.3} parent=5 // pred_check_branch
      %127 = sbr.rel (%p125) target = $region24
    $region23: #{simple_cnn_forward.3} parent=5 // pred_region
      // Predicated region
      $region25: #{simple_cnn_forward.3} parent=23 // pred_check
        %p128 = pneg %p29
      $region26: #{simple_cnn_forward.3} parent=23 // pred_check_branch
        %130 = sbr.rel (%p128) target = $region28
      $region27: #{simple_cnn_forward.3} parent=23 // pred_region
        %s131 = smul.u32 8, %s9
        %p132 = scmp.lt.s32.totalorder %s131, 15
        %s133 = scalar_select %p132, %s131, 15
        %s134 = smul.addr %s133, 4
        %s135 = scalar_lea.vmem %s0, %s134
        %s136 = smul.u32 8, %s9
      $region28: #{simple_cnn_forward.3} parent=23 // pred_fallthru
        _
    $region24: #{simple_cnn_forward.3} parent=5 // pred_fallthru
      _
    %p137 = scmp.le.s32.totalorder 1, %s9
    %p138 = scmp.lt.s32.totalorder %s9, 3
    %p139 = pnand %p137, %p138
    %p140 = pneg %p139
    // Predicated region
    $region29: #{simple_cnn_forward.3} parent=5 // pred_check
      _
    $region30: #{simple_cnn_forward.3} parent=5 // pred_check_branch
      %142 = sbr.rel (%p139) target = $region32
    $region31: #{simple_cnn_forward.3} parent=5 // pred_region
      %s143 = ssub.s32 %s9, 1
      %s144 = smul.u32 8, %s14
      %p145 = scmp.lt.s32.totalorder %s144, 15
      %s146 = scalar_select %p145, %s144, 15
      %s147 = smul.addr %s146, 4
      %s148 = scalar_lea.vmem %s0, %s147
      %p149 = pneg %p35
      %p150 = pneg %p32
      %p151 = pneg %p56
      %p152 = pneg %p53
      %p153 = pneg %p77
      %p154 = pneg %p74
      %p155 = pneg %p103
      %p156 = pneg %p100
      %s157 = smul.u32 8, %s14
      %p158 = scmp.lt.s32.totalorder %s157, 15
      %s159 = scalar_select %p158, %s157, 15
      %s160 = smul.addr %s159, 4
      %s161 = scalar_lea.vmem %s3, %s160
      %s162 = smul.u32 8, %s14
      %p163 = scmp.lt.s32.totalorder %s162, 15
      %s164 = scalar_select %p163, %s162, 15
      %s165 = smul.addr %s164, 4
      %s166 = scalar_lea.vmem %s0, %s165
      %s167 = smul.u32 8, %s14
      %s168 = smul.u32 8, %s14
      %p169 = scmp.lt.s32.totalorder %s168, 15
      %s170 = scalar_select %p169, %s168, 15
      %s171 = smul.addr %s170, 4
      %s172 = scalar_lea.vmem %s3, %s171
      %s173 = smul.u32 8, %s14
      %v174 = vld [vmem:[%s166] sm:$0xf]
      %v175 = vld [vmem:[%s166 + $0x4] sm:$0xf]
      %v176 = vld [vmem:[%s166 + $0x8] sm:$0xf]
      %v177 = vld [vmem:[%s166 + $0xc] sm:$0xf]
      %v178 = vld [vmem:[%s166 + $0x10] sm:$0xf]
      %v179 = vld [vmem:[%s166 + $0x14] sm:$0xf]
      %v180 = vld [vmem:[%s166 + $0x18] sm:$0xf]
      %v181 = vld [vmem:[%s166 + $0x4] sm:$0xf]
      %v182 = vld [vmem:[%s166 + $0x8] sm:$0xf]
      %v183 = vld [vmem:[%s166 + $0xc] sm:$0xf]
      %v184 = vld [vmem:[%s166 + $0x10] sm:$0xf]
      %v185 = vld [vmem:[%s166 + $0x14] sm:$0xf]
      %v186 = vld [vmem:[%s166 + $0x18] sm:$0xf]
      %v187 = vld [vmem:[%s166 + $0x1c] sm:$0xf]
      %v195 = vunpack.c.l.b16 %v174
      %v196 = vunpack.c.l.b16 %v175
      %v197 = vunpack.c.l.b16 %v176
      %v198 = vunpack.c.l.b16 %v177
      %v199 = vunpack.c.l.b16 %v178
      %v200 = vunpack.c.l.b16 %v179
      %v201 = vunpack.c.l.b16 %v180
      %v202 = vpack.c.b16 %v196, %v195
      %v203 = vpack.c.b16 %v198, %v197
      %v204 = vpack.c.b16 %v200, %v199
      %v205 = vpack.c.b16 %v201, %v201
      %vm210 = vsmask.f32 7424
      %v212 = vshrl.u32 %v202, 16
      %v214 = vshll.u32 %v202, 16
      %v216 = vrot.slane %v214, 1
      %v217 = vor.u32 %v212, %v216
      %v219 = vshll.u32 %v203, 16
      %v221 = vrot.slane %v219, 1
      %v222 = vsel %vm210, %v217, %v221
      %v223 = vshrl.u32 %v203, 16
      %v225 = vor.u32 %v223, %v221
      %v227 = vshll.u32 %v204, 16
      %v229 = vrot.slane %v227, 1
      %v230 = vsel %vm210, %v225, %v229
      %v231 = vshrl.u32 %v204, 16
      %v233 = vor.u32 %v231, %v229
      %v235 = vshll.u32 %v205, 16
      %v237 = vrot.slane %v235, 1
      %v238 = vsel %vm210, %v233, %v237
      %v239 = vshrl.u32 %v205, 16
      %v241 = vor.u32 %v239, %v237
      %v253 = vunpack.c.l.b16 %v181
      %v254 = vunpack.c.l.b16 %v182
      %v255 = vunpack.c.l.b16 %v183
      %v256 = vunpack.c.l.b16 %v184
      %v257 = vunpack.c.l.b16 %v185
      %v258 = vunpack.c.l.b16 %v186
      %v259 = vunpack.c.l.b16 %v187
      %v260 = vpack.c.b16 %v254, %v253
      %v261 = vpack.c.b16 %v256, %v255
      %v262 = vpack.c.b16 %v258, %v257
      %v263 = vpack.c.b16 %v259, %v259
      %v269 = vshrl.u32 %v260, 16
      %v271 = vshll.u32 %v260, 16
      %v273 = vrot.slane %v271, 1
      %v274 = vor.u32 %v269, %v273
      %v276 = vshll.u32 %v261, 16
      %v278 = vrot.slane %v276, 1
      %v279 = vsel %vm210, %v274, %v278
      %v280 = vshrl.u32 %v261, 16
      %v282 = vor.u32 %v280, %v278
      %v284 = vshll.u32 %v262, 16
      %v286 = vrot.slane %v284, 1
      %v287 = vsel %vm210, %v282, %v286
      %v288 = vshrl.u32 %v262, 16
      %v290 = vor.u32 %v288, %v286
      %v292 = vshll.u32 %v263, 16
      %v294 = vrot.slane %v292, 1
      %v295 = vsel %vm210, %v290, %v294
      %v296 = vshrl.u32 %v263, 16
      %v298 = vor.u32 %v296, %v294
      %v303 = vld [vmem:[%s1] sm:$0xff]
      %v304 = vld [vmem:[%s1 + $0x8] sm:$0xff]
      %v305 = vld [vmem:[%s1 + $0x10] sm:$0xff]
      %v306 = vld [vmem:[%s1 + $0x18] sm:$0xff]
      %v307 = vld [vmem:[%s1 + $0x20] sm:$0xff]
      %v308 = vld [vmem:[%s1 + $0x28] sm:$0xff]
      %v309 = vld [vmem:[%s1 + $0x30] sm:$0xff]
      %v310 = vld [vmem:[%s1 + $0x38] sm:$0xff]
      %v311 = vld [vmem:[%s1 + $0x40] sm:$0xff]
      %v312 = vld [vmem:[%s1 + $0x48] sm:$0xff]
      %v313 = vld [vmem:[%s1 + $0x50] sm:$0xff]
      %v314 = vld [vmem:[%s1 + $0x58] sm:$0xff]
      %v315 = vld [vmem:[%s1 + $0x60] sm:$0xff]
      %v316 = vld [vmem:[%s1 + $0x68] sm:$0xff]
      %v317 = vld [vmem:[%s1 + $0x70] sm:$0xff]
      %v318 = vld [vmem:[%s1 + $0x78] sm:$0xff]
      %v319 = vld [vmem:[%s1 + $0x80] sm:$0xff]
      %v320 = vld [vmem:[%s1 + $0x88] sm:$0xff]
      %v321 = vld [vmem:[%s1 + $0x90] sm:$0xff]
      %v322 = vld [vmem:[%s1 + $0x98] sm:$0xff]
      %v323 = vld [vmem:[%s1 + $0xa0] sm:$0xff]
      %v324 = vld [vmem:[%s1 + $0xa8] sm:$0xff]
      %v325 = vld [vmem:[%s1 + $0xb0] sm:$0xff]
      %v326 = vld [vmem:[%s1 + $0xb8] sm:$0xff]
      %v327 = vld [vmem:[%s1 + $0xc0] sm:$0xff]
      %v328 = vld [vmem:[%s1 + $0xc8] sm:$0xff]
      %v329 = vld [vmem:[%s1 + $0xd0] sm:$0xff]
      %v330 = vld [vmem:[%s1 + $0xd8] sm:$0xff]
      %v331 = vld [vmem:[%s1 + $0xe0] sm:$0xff]
      %v332 = vld [vmem:[%s1 + $0xe8] sm:$0xff]
      %v333 = vld [vmem:[%s1 + $0xf0] sm:$0xff]
      %v334 = vld [vmem:[%s1 + $0xf8] sm:$0xff]
      %v335 = vld [vmem:[%s1 + $0x100] sm:$0xff]
      %v336 = vld [vmem:[%s1 + $0x108] sm:$0xff]
      %v337 = vld [vmem:[%s1 + $0x110] sm:$0xff]
      %v338 = vld [vmem:[%s1 + $0x118] sm:$0xff]
      %v339 = vld [vmem:[%s1 + $0x120] sm:$0xff]
      %v340 = vld [vmem:[%s1 + $0x128] sm:$0xff]
      %v341 = vld [vmem:[%s1 + $0x130] sm:$0xff]
      %v342 = vld [vmem:[%s1 + $0x138] sm:$0xff]
      %v343 = vld [vmem:[%s1 + $0x140] sm:$0xff]
      %v344 = vld [vmem:[%s1 + $0x148] sm:$0xff]
      %v345 = vld [vmem:[%s1 + $0x150] sm:$0xff]
      %v346 = vld [vmem:[%s1 + $0x158] sm:$0xff]
      %v347 = vld [vmem:[%s1 + $0x160] sm:$0xff]
      %v348 = vld [vmem:[%s1 + $0x168] sm:$0xff]
      %v349 = vld [vmem:[%s1 + $0x170] sm:$0xff]
      %v350 = vld [vmem:[%s1 + $0x178] sm:$0xff]
      %v351 = vld [vmem:[%s1 + $0x180] sm:$0xff]
      %v352 = vld [vmem:[%s1 + $0x188] sm:$0xff]
      %v353 = vld [vmem:[%s1 + $0x190] sm:$0xff]
      %v354 = vld [vmem:[%s1 + $0x198] sm:$0xff]
      %v355 = vld [vmem:[%s1 + $0x1a0] sm:$0xff]
      %v356 = vld [vmem:[%s1 + $0x1a8] sm:$0xff]
      %v357 = vld [vmem:[%s1 + $0x1b0] sm:$0xff]
      %v358 = vld [vmem:[%s1 + $0x1b8] sm:$0xff]
      %v359 = vld [vmem:[%s1 + $0x1c0] sm:$0xff]
      %v360 = vld [vmem:[%s1 + $0x1c8] sm:$0xff]
      %v361 = vld [vmem:[%s1 + $0x1d0] sm:$0xff]
      %v362 = vld [vmem:[%s1 + $0x1d8] sm:$0xff]
      %v363 = vld [vmem:[%s1 + $0x1e0] sm:$0xff]
      %v364 = vld [vmem:[%s1 + $0x1e8] sm:$0xff]
      %v365 = vld [vmem:[%s1 + $0x1f0] sm:$0xff]
      %v366 = vld [vmem:[%s1 + $0x1f8] sm:$0xff]
      %v431 = vunpack.c.l.b16 %v303
      %v432 = vunpack.c.h.b16 %v303
      %v433 = vunpack.c.l.b16 %v304
      %v434 = vunpack.c.h.b16 %v304
      %v435 = vunpack.c.l.b16 %v305
      %v436 = vunpack.c.h.b16 %v305
      %v437 = vunpack.c.l.b16 %v306
      %v438 = vunpack.c.h.b16 %v306
      %v439 = vunpack.c.l.b16 %v307
      %v440 = vunpack.c.h.b16 %v307
      %v441 = vunpack.c.l.b16 %v308
      %v442 = vunpack.c.h.b16 %v308
      %v443 = vunpack.c.l.b16 %v309
      %v444 = vunpack.c.h.b16 %v309
      %v445 = vunpack.c.l.b16 %v310
      %v446 = vunpack.c.h.b16 %v310
      %v447 = vunpack.c.l.b16 %v311
      %v448 = vunpack.c.h.b16 %v311
      %v449 = vunpack.c.l.b16 %v312
      %v450 = vunpack.c.h.b16 %v312
      %v451 = vunpack.c.l.b16 %v313
      %v452 = vunpack.c.h.b16 %v313
      %v453 = vunpack.c.l.b16 %v314
      %v454 = vunpack.c.h.b16 %v314
      %v455 = vunpack.c.l.b16 %v315
      %v456 = vunpack.c.h.b16 %v315
      %v457 = vunpack.c.l.b16 %v316
      %v458 = vunpack.c.h.b16 %v316
      %v459 = vunpack.c.l.b16 %v317
      %v460 = vunpack.c.h.b16 %v317
      %v461 = vunpack.c.l.b16 %v318
      %v462 = vunpack.c.h.b16 %v318
      %v463 = vunpack.c.l.b16 %v319
      %v464 = vunpack.c.h.b16 %v319
      %v465 = vunpack.c.l.b16 %v320
      %v466 = vunpack.c.h.b16 %v320
      %v467 = vunpack.c.l.b16 %v321
      %v468 = vunpack.c.h.b16 %v321
      %v469 = vunpack.c.l.b16 %v322
      %v470 = vunpack.c.h.b16 %v322
      %v471 = vunpack.c.l.b16 %v323
      %v472 = vunpack.c.h.b16 %v323
      %v473 = vunpack.c.l.b16 %v324
      %v474 = vunpack.c.h.b16 %v324
      %v475 = vunpack.c.l.b16 %v325
      %v476 = vunpack.c.h.b16 %v325
      %v477 = vunpack.c.l.b16 %v326
      %v478 = vunpack.c.h.b16 %v326
      %v479 = vunpack.c.l.b16 %v327
      %v480 = vunpack.c.h.b16 %v327
      %v481 = vunpack.c.l.b16 %v328
      %v482 = vunpack.c.h.b16 %v328
      %v483 = vunpack.c.l.b16 %v329
      %v484 = vunpack.c.h.b16 %v329
      %v485 = vunpack.c.l.b16 %v330
      %v486 = vunpack.c.h.b16 %v330
      %v487 = vunpack.c.l.b16 %v331
      %v488 = vunpack.c.h.b16 %v331
      %v489 = vunpack.c.l.b16 %v332
      %v490 = vunpack.c.h.b16 %v332
      %v491 = vunpack.c.l.b16 %v333
      %v492 = vunpack.c.h.b16 %v333
      %v493 = vunpack.c.l.b16 %v334
      %v494 = vunpack.c.h.b16 %v334
      %v495 = vunpack.c.l.b16 %v335
      %v496 = vunpack.c.h.b16 %v335
      %v497 = vunpack.c.l.b16 %v336
      %v498 = vunpack.c.h.b16 %v336
      %v499 = vunpack.c.l.b16 %v337
      %v500 = vunpack.c.h.b16 %v337
      %v501 = vunpack.c.l.b16 %v338
      %v502 = vunpack.c.h.b16 %v338
      %v503 = vunpack.c.l.b16 %v339
      %v504 = vunpack.c.h.b16 %v339
      %v505 = vunpack.c.l.b16 %v340
      %v506 = vunpack.c.h.b16 %v340
      %v507 = vunpack.c.l.b16 %v341
      %v508 = vunpack.c.h.b16 %v341
      %v509 = vunpack.c.l.b16 %v342
      %v510 = vunpack.c.h.b16 %v342
      %v511 = vunpack.c.l.b16 %v343
      %v512 = vunpack.c.h.b16 %v343
      %v513 = vunpack.c.l.b16 %v344
      %v514 = vunpack.c.h.b16 %v344
      %v515 = vunpack.c.l.b16 %v345
      %v516 = vunpack.c.h.b16 %v345
      %v517 = vunpack.c.l.b16 %v346
      %v518 = vunpack.c.h.b16 %v346
      %v519 = vunpack.c.l.b16 %v347
      %v520 = vunpack.c.h.b16 %v347
      %v521 = vunpack.c.l.b16 %v348
      %v522 = vunpack.c.h.b16 %v348
      %v523 = vunpack.c.l.b16 %v349
      %v524 = vunpack.c.h.b16 %v349
      %v525 = vunpack.c.l.b16 %v350
      %v526 = vunpack.c.h.b16 %v350
      %v527 = vunpack.c.l.b16 %v351
      %v528 = vunpack.c.h.b16 %v351
      %v529 = vunpack.c.l.b16 %v352
      %v530 = vunpack.c.h.b16 %v352
      %v531 = vunpack.c.l.b16 %v353
      %v532 = vunpack.c.h.b16 %v353
      %v533 = vunpack.c.l.b16 %v354
      %v534 = vunpack.c.h.b16 %v354
      %v535 = vunpack.c.l.b16 %v355
      %v536 = vunpack.c.h.b16 %v355
      %v537 = vunpack.c.l.b16 %v356
      %v538 = vunpack.c.h.b16 %v356
      %v539 = vunpack.c.l.b16 %v357
      %v540 = vunpack.c.h.b16 %v357
      %v541 = vunpack.c.l.b16 %v358
      %v542 = vunpack.c.h.b16 %v358
      %v543 = vunpack.c.l.b16 %v359
      %v544 = vunpack.c.h.b16 %v359
      %v545 = vunpack.c.l.b16 %v360
      %v546 = vunpack.c.h.b16 %v360
      %v547 = vunpack.c.l.b16 %v361
      %v548 = vunpack.c.h.b16 %v361
      %v549 = vunpack.c.l.b16 %v362
      %v550 = vunpack.c.h.b16 %v362
      %v551 = vunpack.c.l.b16 %v363
      %v552 = vunpack.c.h.b16 %v363
      %v553 = vunpack.c.l.b16 %v364
      %v554 = vunpack.c.h.b16 %v364
      %v555 = vunpack.c.l.b16 %v365
      %v556 = vunpack.c.h.b16 %v365
      %v557 = vunpack.c.l.b16 %v366
      %v558 = vunpack.c.h.b16 %v366
      %v559 = vpack.c.b16 %v433, %v431
      %v560 = vpack.c.b16 %v434, %v432
      %v561 = vpack.c.b16 %v437, %v435
      %v562 = vpack.c.b16 %v438, %v436
      %v563 = vpack.c.b16 %v441, %v439
      %v564 = vpack.c.b16 %v442, %v440
      %v565 = vpack.c.b16 %v445, %v443
      %v566 = vpack.c.b16 %v446, %v444
      %v567 = vpack.c.b16 %v449, %v447
      %v568 = vpack.c.b16 %v450, %v448
      %v569 = vpack.c.b16 %v453, %v451
      %v570 = vpack.c.b16 %v454, %v452
      %v571 = vpack.c.b16 %v457, %v455
      %v572 = vpack.c.b16 %v458, %v456
      %v573 = vpack.c.b16 %v461, %v459
      %v574 = vpack.c.b16 %v462, %v460
      %v575 = vpack.c.b16 %v465, %v463
      %v576 = vpack.c.b16 %v466, %v464
      %v577 = vpack.c.b16 %v469, %v467
      %v578 = vpack.c.b16 %v470, %v468
      %v579 = vpack.c.b16 %v473, %v471
      %v580 = vpack.c.b16 %v474, %v472
      %v581 = vpack.c.b16 %v477, %v475
      %v582 = vpack.c.b16 %v478, %v476
      %v583 = vpack.c.b16 %v481, %v479
      %v584 = vpack.c.b16 %v482, %v480
      %v585 = vpack.c.b16 %v485, %v483
      %v586 = vpack.c.b16 %v486, %v484
      %v587 = vpack.c.b16 %v489, %v487
      %v588 = vpack.c.b16 %v490, %v488
      %v589 = vpack.c.b16 %v493, %v491
      %v590 = vpack.c.b16 %v494, %v492
      %v591 = vpack.c.b16 %v497, %v495
      %v592 = vpack.c.b16 %v498, %v496
      %v593 = vpack.c.b16 %v501, %v499
      %v594 = vpack.c.b16 %v502, %v500
      %v595 = vpack.c.b16 %v505, %v503
      %v596 = vpack.c.b16 %v506, %v504
      %v597 = vpack.c.b16 %v509, %v507
      %v598 = vpack.c.b16 %v510, %v508
      %v599 = vpack.c.b16 %v513, %v511
      %v600 = vpack.c.b16 %v514, %v512
      %v601 = vpack.c.b16 %v517, %v515
      %v602 = vpack.c.b16 %v518, %v516
      %v603 = vpack.c.b16 %v521, %v519
      %v604 = vpack.c.b16 %v522, %v520
      %v605 = vpack.c.b16 %v525, %v523
      %v606 = vpack.c.b16 %v526, %v524
      %v607 = vpack.c.b16 %v529, %v527
      %v608 = vpack.c.b16 %v530, %v528
      %v609 = vpack.c.b16 %v533, %v531
      %v610 = vpack.c.b16 %v534, %v532
      %v611 = vpack.c.b16 %v537, %v535
      %v612 = vpack.c.b16 %v538, %v536
      %v613 = vpack.c.b16 %v541, %v539
      %v614 = vpack.c.b16 %v542, %v540
      %v615 = vpack.c.b16 %v545, %v543
      %v616 = vpack.c.b16 %v546, %v544
      %v617 = vpack.c.b16 %v549, %v547
      %v618 = vpack.c.b16 %v550, %v548
      %v619 = vpack.c.b16 %v553, %v551
      %v620 = vpack.c.b16 %v554, %v552
      %v621 = vpack.c.b16 %v557, %v555
      %v622 = vpack.c.b16 %v558, %v556
      %687 = vmatprep.subr.bf16.mxu0 %v574
      %688 = vmatpush1.bf16.msra.mxu0 %v573
      %689 = vmatprep.subr.bf16.mxu0 %v572
      %690 = vmatpush1.bf16.msra.mxu0 %v571
      %691 = vmatprep.subr.bf16.mxu0 %v570
      %692 = vmatpush1.bf16.msra.mxu0 %v569
      %693 = vmatprep.subr.bf16.mxu0 %v568
      %694 = vmatpush1.bf16.msra.mxu0 %v567
      %695 = vmatprep.subr.bf16.mxu0 %v566
      %696 = vmatpush1.bf16.msra.mxu0 %v565
      %697 = vmatprep.subr.bf16.mxu0 %v564
      %698 = vmatpush1.bf16.msra.mxu0 %v563
      %699 = vmatprep.subr.bf16.mxu0 %v562
      %700 = vmatpush1.bf16.msra.mxu0 %v561
      %701 = vmatprep.subr.bf16.mxu0 %v560
      %702 = vmatpush1.bf16.msra.mxu0 %v559
      %703 = vmatprep.subr.bf16.mxu0 %v590
      %704 = vmatpush2.bf16.msra.mxu0 %v589
      %705 = vmatprep.subr.bf16.mxu0 %v588
      %706 = vmatpush2.bf16.msra.mxu0 %v587
      %707 = vmatprep.subr.bf16.mxu0 %v586
      %708 = vmatpush2.bf16.msra.mxu0 %v585
      %709 = vmatprep.subr.bf16.mxu0 %v584
      %710 = vmatpush2.bf16.msra.mxu0 %v583
      %711 = vmatprep.subr.bf16.mxu0 %v582
      %712 = vmatpush2.bf16.msra.mxu0 %v581
      %713 = vmatprep.subr.bf16.mxu0 %v580
      %714 = vmatpush2.bf16.msra.mxu0 %v579
      %715 = vmatprep.subr.bf16.mxu0 %v578
      %716 = vmatpush2.bf16.msra.mxu0 %v577
      %717 = vmatprep.subr.bf16.mxu0 %v576
      %718 = vmatpush2.bf16.msra.mxu0 %v575
      %719 = vmatprep.mubr.bf16.mxu0 %v222
      %720 = vmatmul.mubr.bf16.gmra.mxu0 %v202
      %v721 = vpop.f32.mrf.mxu0
      %v722 = vadd.f32 0.0, %v721
      %v723 = vpop.f32.mrf.mxu0
      %v724 = vadd.f32 0.0, %v723
      %v725 = vpop.f32.mrf.mxu0
      %v726 = vadd.f32 0.0, %v725
      %v727 = vpop.f32.mrf.mxu0
      %v728 = vadd.f32 0.0, %v727
      %729 = vmatprep.mubr.bf16.mxu0 %v230
      %730 = vmatmul.mubr.bf16.gmra.mxu0 %v203
      %v731 = vpop.f32.mrf.mxu0
      %v732 = vadd.f32 0.0, %v731
      %v733 = vpop.f32.mrf.mxu0
      %v734 = vadd.f32 0.0, %v733
      %v735 = vpop.f32.mrf.mxu0
      %v736 = vadd.f32 0.0, %v735
      %v737 = vpop.f32.mrf.mxu0
      %v738 = vadd.f32 0.0, %v737
      %739 = vmatprep.mubr.bf16.mxu0 %v238
      %740 = vmatmul.mubr.bf16.gmra.mxu0 %v204
      %v741 = vpop.f32.mrf.mxu0
      %v742 = vadd.f32 0.0, %v741
      %v743 = vpop.f32.mrf.mxu0
      %v744 = vadd.f32 0.0, %v743
      %v745 = vpop.f32.mrf.mxu0
      %v746 = vadd.f32 0.0, %v745
      %v747 = vpop.f32.mrf.mxu0
      %v748 = vadd.f32 0.0, %v747
      %749 = vmatprep.mubr.bf16.mxu0 %v241
      %750 = vmatmul.mubr.bf16.gmra.mxu0 %v205
      %v751 = vpop.f32.mrf.mxu0
      %v752 = vadd.f32 0.0, %v751
      %v753 = vpop.f32.mrf.mxu0
      %v754 = vadd.f32 0.0, %v753
      %v755 = vpop.f32.mrf.mxu0
      %v756 = vpop.f32.mrf.mxu0
      %757 = vdwg.mxu0
      %758 = vmatprep.subr.bf16.mxu0 %v606
      %759 = vmatpush1.bf16.msra.mxu0 %v605
      %760 = vmatprep.subr.bf16.mxu0 %v604
      %761 = vmatpush1.bf16.msra.mxu0 %v603
      %762 = vmatprep.subr.bf16.mxu0 %v602
      %763 = vmatpush1.bf16.msra.mxu0 %v601
      %764 = vmatprep.subr.bf16.mxu0 %v600
      %765 = vmatpush1.bf16.msra.mxu0 %v599
      %766 = vmatprep.subr.bf16.mxu0 %v598
      %767 = vmatpush1.bf16.msra.mxu0 %v597
      %768 = vmatprep.subr.bf16.mxu0 %v596
      %769 = vmatpush1.bf16.msra.mxu0 %v595
      %770 = vmatprep.subr.bf16.mxu0 %v594
      %771 = vmatpush1.bf16.msra.mxu0 %v593
      %772 = vmatprep.subr.bf16.mxu0 %v592
      %773 = vmatpush1.bf16.msra.mxu0 %v591
      %774 = vmatprep.subr.bf16.mxu0 %v622
      %775 = vmatpush2.bf16.msra.mxu0 %v621
      %776 = vmatprep.subr.bf16.mxu0 %v620
      %777 = vmatpush2.bf16.msra.mxu0 %v619
      %778 = vmatprep.subr.bf16.mxu0 %v618
      %779 = vmatpush2.bf16.msra.mxu0 %v617
      %780 = vmatprep.subr.bf16.mxu0 %v616
      %781 = vmatpush2.bf16.msra.mxu0 %v615
      %782 = vmatprep.subr.bf16.mxu0 %v614
      %783 = vmatpush2.bf16.msra.mxu0 %v613
      %784 = vmatprep.subr.bf16.mxu0 %v612
      %785 = vmatpush2.bf16.msra.mxu0 %v611
      %786 = vmatprep.subr.bf16.mxu0 %v610
      %787 = vmatpush2.bf16.msra.mxu0 %v609
      %788 = vmatprep.subr.bf16.mxu0 %v608
      %789 = vmatpush2.bf16.msra.mxu0 %v607
      %790 = vmatprep.mubr.bf16.mxu0 %v279
      %791 = vmatmul.mubr.bf16.gmra.mxu0 %v260
      %v792 = vpop.f32.mrf.mxu0
      %v793 = vadd.f32 %v722, %v792
      %v794 = vpop.f32.mrf.mxu0
      %v795 = vadd.f32 %v724, %v794
      %v796 = vpop.f32.mrf.mxu0
      %v797 = vadd.f32 %v726, %v796
      %v798 = vpop.f32.mrf.mxu0
      %v799 = vadd.f32 %v728, %v798
      %800 = vmatprep.mubr.bf16.mxu0 %v287
      %801 = vmatmul.mubr.bf16.gmra.mxu0 %v261
      %v802 = vpop.f32.mrf.mxu0
      %v803 = vadd.f32 %v732, %v802
      %v804 = vpop.f32.mrf.mxu0
      %v805 = vadd.f32 %v734, %v804
      %v806 = vpop.f32.mrf.mxu0
      %v807 = vadd.f32 %v736, %v806
      %v808 = vpop.f32.mrf.mxu0
      %v809 = vadd.f32 %v738, %v808
      %810 = vmatprep.mubr.bf16.mxu0 %v295
      %811 = vmatmul.mubr.bf16.gmra.mxu0 %v262
      %v812 = vpop.f32.mrf.mxu0
      %v813 = vadd.f32 %v742, %v812
      %v814 = vpop.f32.mrf.mxu0
      %v815 = vadd.f32 %v744, %v814
      %v816 = vpop.f32.mrf.mxu0
      %v817 = vadd.f32 %v746, %v816
      %v818 = vpop.f32.mrf.mxu0
      %v819 = vadd.f32 %v748, %v818
      %820 = vmatprep.mubr.bf16.mxu0 %v298
      %821 = vmatmul.mubr.bf16.gmra.mxu0 %v263
      %v822 = vpop.f32.mrf.mxu0
      %v823 = vadd.f32 %v752, %v822
      %v824 = vpop.f32.mrf.mxu0
      %v825 = vadd.f32 %v754, %v824
      %v826 = vpop.f32.mrf.mxu0
      %v827 = vpop.f32.mrf.mxu0
      %828 = vdwg.mxu0
      %836 = vrot.lane.b32.xlu0 %v793, 64
      %v837 = vpop.permute.xlu0 %836
      %838 = vrot.lane.b32.xlu0 %v797, 64
      %v839 = vpop.permute.xlu0 %838
      %840 = vrot.lane.b32.xlu0 %v803, 64
      %v841 = vpop.permute.xlu0 %840
      %842 = vrot.lane.b32.xlu0 %v807, 64
      %v843 = vpop.permute.xlu0 %842
      %844 = vrot.lane.b32.xlu0 %v813, 64
      %v845 = vpop.permute.xlu0 %844
      %846 = vrot.lane.b32.xlu0 %v817, 64
      %v847 = vpop.permute.xlu0 %846
      %848 = vrot.lane.b32.xlu0 %v823, 64
      %v849 = vpop.permute.xlu0 %848
      %v857 = vmax.f32 %v793, %v837
      %v858 = vmax.f32 %v797, %v839
      %v859 = vmax.f32 %v803, %v841
      %v860 = vmax.f32 %v807, %v843
      %v861 = vmax.f32 %v813, %v845
      %v862 = vmax.f32 %v817, %v847
      %v863 = vmax.f32 %v823, %v849
      %v864 = vmax.f32 %v857, %v795
      %v865 = vmax.f32 %v858, %v799
      %v866 = vmax.f32 %v859, %v805
      %v867 = vmax.f32 %v860, %v809
      %v868 = vmax.f32 %v861, %v815
      %v869 = vmax.f32 %v862, %v819
      %v870 = vmax.f32 %v863, %v825
      %878 = vrot.lane.b32.xlu0 %v795, 64
      %v879 = vpop.permute.xlu0 %878
      %880 = vrot.lane.b32.xlu0 %v799, 64
      %v881 = vpop.permute.xlu0 %880
      %882 = vrot.lane.b32.xlu0 %v805, 64
      %v883 = vpop.permute.xlu0 %882
      %884 = vrot.lane.b32.xlu0 %v809, 64
      %v885 = vpop.permute.xlu0 %884
      %886 = vrot.lane.b32.xlu0 %v815, 64
      %v887 = vpop.permute.xlu0 %886
      %888 = vrot.lane.b32.xlu0 %v819, 64
      %v889 = vpop.permute.xlu0 %888
      %890 = vrot.lane.b32.xlu0 %v825, 64
      %v891 = vpop.permute.xlu0 %890
      %v899 = vmax.f32 %v864, %v879
      %v900 = vmax.f32 %v865, %v881
      %v901 = vmax.f32 %v866, %v883
      %v902 = vmax.f32 %v867, %v885
      %v903 = vmax.f32 %v868, %v887
      %v904 = vmax.f32 %v869, %v889
      %v905 = vmax.f32 %v870, %v891
      %v906 = vld [vmem:[%s2] sm:$0x1]
      %v908 = vlaneseq
      %v909 = vshrl.u32 %v908, 7
      %v910 = vsub.s32 0, %v909
      %v911 = vrot.slane %v906, %v910
      %v913 = vadd.f32 %v899, %v911
      %v914 = vadd.f32 %v900, %v911
      %v915 = vadd.f32 %v901, %v911
      %v916 = vadd.f32 %v902, %v911
      %v917 = vadd.f32 %v903, %v911
      %v918 = vadd.f32 %v904, %v911
      %v919 = vadd.f32 %v905, %v911
      %v920 = vmax.f32 %v913, 0.0
      %v921 = vmax.f32 %v914, 0.0
      %v922 = vmax.f32 %v915, 0.0
      %v923 = vmax.f32 %v916, 0.0
      %v924 = vmax.f32 %v917, 0.0
      %v925 = vmax.f32 %v918, 0.0
      %v926 = vmax.f32 %v919, 0.0
      %v927 = vpack.c.bf16 %v921, %v920
      %v928 = vpack.c.bf16 %v923, %v922
      %v929 = vpack.c.bf16 %v925, %v924
      %v930 = vpack.c.bf16 %v926, %v926
      %v935 = vunpack.c.l.b16 %v927
      %v936 = vunpack.c.h.b16 %v927
      %v937 = vunpack.c.l.b16 %v928
      %v938 = vunpack.c.h.b16 %v928
      %v939 = vunpack.c.l.b16 %v929
      %v940 = vunpack.c.h.b16 %v929
      %v941 = vunpack.c.l.b16 %v930
      %v942 = vpack.c.b16 %v935, %v935
      %v943 = vpack.c.b16 %v936, %v936
      %v944 = vpack.c.b16 %v937, %v937
      %v945 = vpack.c.b16 %v938, %v938
      %v946 = vpack.c.b16 %v939, %v939
      %v947 = vpack.c.b16 %v940, %v940
      %v948 = vpack.c.b16 %v941, %v941
      %vm956 = vcmask 519168
      %957 = vst.msk [vmem:[%s172] sm:$0xf] %vm956, %v942
      %958 = vst.msk [vmem:[%s172 + $0x4] sm:$0xf] %vm956, %v943
      %959 = vst.msk [vmem:[%s172 + $0x8] sm:$0xf] %vm956, %v944
      %960 = vst.msk [vmem:[%s172 + $0xc] sm:$0xf] %vm956, %v945
      %961 = vst.msk [vmem:[%s172 + $0x10] sm:$0xf] %vm956, %v946
      %962 = vst.msk [vmem:[%s172 + $0x14] sm:$0xf] %vm956, %v947
      %vm963 = vcmask 519168
      %vm964 = vsmask.f32 3328
      %vm965 = vmand %vm963, %vm964
      %v966 = vld [vmem:[%s172 + $0x18] sm:$0xf]
      %v967 = vsel %vm965, %v948, %v966
      %968 = vst [vmem:[%s172 + $0x18] sm:$0xf] %v967
      %s969 = smul.u32 8, %s14
      %p970 = scmp.lt.s32.totalorder %s969, 15
      %s971 = scalar_select %p970, %s969, 15
      %s972 = smul.addr %s971, 4
      %s973 = scalar_lea.vmem %s3, %s972
      // Predicated region
      $region33: #{simple_cnn_forward.3} parent=31 // pred_check
        %p974 = pneg %p100
      $region34: #{simple_cnn_forward.3} parent=31 // pred_check_branch
        %976 = sbr.rel (%p974) target = $region36
      $region35: #{simple_cnn_forward.3} parent=31 // pred_region
        %s977 = smul.u32 8, %s14
      $region36: #{simple_cnn_forward.3} parent=31 // pred_fallthru
        _
    $region32: #{simple_cnn_forward.3} parent=5 // pred_fallthru
      _
    %p978 = scmp.le.s32.totalorder 2, %s9
    // Predicated region
    $region37: #{simple_cnn_forward.3} parent=5 // pred_check
      %p979 = pneg %p978
    $region38: #{simple_cnn_forward.3} parent=5 // pred_check_branch
      %981 = sbr.rel (%p979) target = $region40
    $region39: #{simple_cnn_forward.3} parent=5 // pred_region
      %s982 = ssub.s32 %s9, 2
      // Predicated region
      $region41: #{simple_cnn_forward.3} parent=39 // pred_check
        %p983 = pneg %p106
      $region42: #{simple_cnn_forward.3} parent=39 // pred_check_branch
        %985 = sbr.rel (%p983) target = $region44
      $region43: #{simple_cnn_forward.3} parent=39 // pred_region
        %s986 = smul.u32 8, %s15
        %p987 = scmp.lt.s32.totalorder %s986, 15
        %s988 = scalar_select %p987, %s986, 15
        %s989 = smul.addr %s988, 4
        %s990 = scalar_lea.vmem %s3, %s989
      $region44: #{simple_cnn_forward.3} parent=39 // pred_fallthru
        _
    $region40: #{simple_cnn_forward.3} parent=5 // pred_fallthru
      _
  $region6: #{simple_cnn_forward.3} parent=0 // loop_footer
    %s13 = sadd.s32 1, %s9
  $region7: #{simple_cnn_forward.3} parent=0 // loop_footer_branch
    %8 = sbr.rel target = $region3
  $region8: #{simple_cnn_forward.3} parent=0 // loop_exit
    _

// kernel: simple_cnn_forward.4
$region0: #{simple_cnn_forward.4}
  #allocation0 [shape = 'u32[]', space=smem, size = 0x4, offset = 0x4, fixed_abs, tag = 'smem constant byte address 0x4 - core index']
  #allocation1 [shape = 'u32[144,128]{1,0:T(1,128)}', space=vmem, size = 0x12000, scoped, tag = 'internal scratch']
  %s0 = inlined_call_operand.vmem [shape: bf16[80,256], index: 0, kind: input, shape index: {}]
  %s1 = inlined_call_operand.vmem [shape: bf16[1024,512], index: 1, kind: input, shape index: {}]
  %s2 = inlined_call_operand.vmem [shape: f32[1,128], index: 2, kind: input, shape index: {}]
  %s3 = inlined_call_operand.vmem [shape: bf16[80,128], index: 3, kind: output, shape index: {}]
  %s4 = sld [smem:[#allocation0]]
  $region45: #{simple_cnn_forward.4} parent=0
    _
  %s6 = ssub.s32 1, %s4
  %s7 = scalar_select 0, %s6, %s4
  loop: start=0, step=1, limit=4
  $region2: #{simple_cnn_forward.4} parent=0 // loop_pre_header
    _
  $region3: #{simple_cnn_forward.4} parent=0 // loop_header
    %s9 = sphi 0, %s13
    %p10 = scmp.ge.s32.totalorder %s9, 4
    %s19 = sphi 0, %s21
    %s22 = sphi 0, %s19
    %s23 = sphi 0, %s22
    %s39 = sphi 0, %s23
    %s43 = sphi 0, %s43
    %s45 = sphi 0, %s43
    %s46 = sphi 0, %s45
    %s60 = sphi 0, %s46
    %s64 = sphi 0, %s64
    %s66 = sphi 0, %s64
    %s67 = sphi 0, %s66
    %s81 = sphi 0, %s67
    %s87 = sphi 0, %s89
    %s90 = sphi 0, %s87
    %s91 = sphi 0, %s90
    %s107 = sphi 0, %s91
  $region4: #{simple_cnn_forward.4} parent=0 // loop_header_branch
    %12 = sbr.rel (%p10) target = $region8
  $region5: #{simple_cnn_forward.4} parent=0 // loop_body
    %s14 = ssub.s32 %s9, 1
    %s15 = ssub.s32 %s9, 2
    %s16 = sadd.s32 %s9, 1
    %s17 = ssub.s32 %s9, %s16
    %p18 = scmp.eq.s32.totalorder %s17, 0
    %s20 = sadd.s32 %s19, 1
    %s21 = scalar_select %p18, %s19, %s20
    %p24 = pneg %p18
    %p25 = scmp.eq.s32.totalorder %s9, 1
    %p26 = por %p24, %p25
    %p27 = scmp.ne.s32.totalorder %s19, %s22
    %p28 = scmp.eq.s32.totalorder %s9, 0
    %p29 = por %p27, %p28
    %p30 = scmp.ne.s32.totalorder %s19, %s22
    %p31 = scmp.eq.s32.totalorder %s14, 1
    %p32 = por %p30, %p31
    %p33 = scmp.ne.s32.totalorder %s22, %s23
    %p34 = scmp.eq.s32.totalorder %s14, 0
    %p35 = por %p33, %p34
    %p36 = scmp.ne.s32.totalorder %s22, %s23
    %p37 = scmp.eq.s32.totalorder %s15, 1
    %p38 = por %p36, %p37
    %p40 = scmp.ne.s32.totalorder %s23, %s39
    %p41 = scmp.eq.s32.totalorder %s15, 0
    %p42 = por %p40, %p41
    %s44 = sadd.s32 %s43, 1
    %p47 = scmp.eq.s32.totalorder %s9, 1
    %p48 = scmp.ne.s32.totalorder %s43, %s45
    %p49 = scmp.eq.s32.totalorder %s9, 0
    %p50 = por %p48, %p49
    %p51 = scmp.ne.s32.totalorder %s43, %s45
    %p52 = scmp.eq.s32.totalorder %s14, 1
    %p53 = por %p51, %p52
    %p54 = scmp.ne.s32.totalorder %s45, %s46
    %p55 = scmp.eq.s32.totalorder %s14, 0
    %p56 = por %p54, %p55
    %p57 = scmp.ne.s32.totalorder %s45, %s46
    %p58 = scmp.eq.s32.totalorder %s15, 1
    %p59 = por %p57, %p58
    %p61 = scmp.ne.s32.totalorder %s46, %s60
    %p62 = scmp.eq.s32.totalorder %s15, 0
    %p63 = por %p61, %p62
    %s65 = sadd.s32 %s64, 1
    %p68 = scmp.eq.s32.totalorder %s9, 1
    %p69 = scmp.ne.s32.totalorder %s64, %s66
    %p70 = scmp.eq.s32.totalorder %s9, 0
    %p71 = por %p69, %p70
    %p72 = scmp.ne.s32.totalorder %s64, %s66
    %p73 = scmp.eq.s32.totalorder %s14, 1
    %p74 = por %p72, %p73
    %p75 = scmp.ne.s32.totalorder %s66, %s67
    %p76 = scmp.eq.s32.totalorder %s14, 0
    %p77 = por %p75, %p76
    %p78 = scmp.ne.s32.totalorder %s66, %s67
    %p79 = scmp.eq.s32.totalorder %s15, 1
    %p80 = por %p78, %p79
    %p82 = scmp.ne.s32.totalorder %s67, %s81
    %p83 = scmp.eq.s32.totalorder %s15, 0
    %p84 = por %p82, %p83
    %s85 = ssub.s32 %s9, %s16
    %p86 = scmp.eq.s32.totalorder %s85, 0
    %s88 = sadd.s32 %s87, 1
    %s89 = scalar_select %p86, %s87, %s88
    %p92 = pneg %p86
    %p93 = scmp.eq.s32.totalorder %s9, 1
    %p94 = por %p92, %p93
    %p95 = scmp.ne.s32.totalorder %s87, %s90
    %p96 = scmp.eq.s32.totalorder %s9, 0
    %p97 = por %p95, %p96
    %p98 = scmp.ne.s32.totalorder %s87, %s90
    %p99 = scmp.eq.s32.totalorder %s14, 1
    %p100 = por %p98, %p99
    %p101 = scmp.ne.s32.totalorder %s90, %s91
    %p102 = scmp.eq.s32.totalorder %s14, 0
    %p103 = por %p101, %p102
    %p104 = scmp.ne.s32.totalorder %s90, %s91
    %p105 = scmp.eq.s32.totalorder %s15, 1
    %p106 = por %p104, %p105
    %p108 = scmp.ne.s32.totalorder %s91, %s107
    %p109 = scmp.eq.s32.totalorder %s15, 0
    %p110 = por %p108, %p109
    %p111 = scmp.le.s32.totalorder 1, %s9
    %p112 = scmp.lt.s32.totalorder %s9, 3
    %p113 = pnand %p111, %p112
    %p114 = pneg %p113
    // Predicated region
    $region9: #{simple_cnn_forward.4} parent=5 // pred_check
      _
    $region10: #{simple_cnn_forward.4} parent=5 // pred_check_branch
      %116 = sbr.rel (%p113) target = $region12
    $region11: #{simple_cnn_forward.4} parent=5 // pred_region
      %s117 = ssub.s32 %s9, 1
      // Predicated region
      $region13: #{simple_cnn_forward.4} parent=11 // pred_check
        %p118 = pneg %p56
      $region14: #{simple_cnn_forward.4} parent=11 // pred_check_branch
        %120 = sbr.rel (%p118) target = $region16
      $region15: #{simple_cnn_forward.4} parent=11 // pred_region
        _
      $region16: #{simple_cnn_forward.4} parent=11 // pred_fallthru
        _
      // Predicated region
      $region17: #{simple_cnn_forward.4} parent=11 // pred_check
        %p121 = pneg %p77
      $region18: #{simple_cnn_forward.4} parent=11 // pred_check_branch
        %123 = sbr.rel (%p121) target = $region20
      $region19: #{simple_cnn_forward.4} parent=11 // pred_region
        _
      $region20: #{simple_cnn_forward.4} parent=11 // pred_fallthru
        _
    $region12: #{simple_cnn_forward.4} parent=5 // pred_fallthru
      _
    %p124 = scmp.lt.s32.totalorder %s9, 2
    // Predicated region
    $region21: #{simple_cnn_forward.4} parent=5 // pred_check
      %p125 = pneg %p124
    $region22: #{simple_cnn_forward.4} parent=5 // pred_check_branch
      %127 = sbr.rel (%p125) target = $region24
    $region23: #{simple_cnn_forward.4} parent=5 // pred_region
      // Predicated region
      $region25: #{simple_cnn_forward.4} parent=23 // pred_check
        %p128 = pneg %p29
      $region26: #{simple_cnn_forward.4} parent=23 // pred_check_branch
        %130 = sbr.rel (%p128) target = $region28
      $region27: #{simple_cnn_forward.4} parent=23 // pred_region
        %s131 = smul.u32 5, %s9
        %p132 = scmp.lt.s32.totalorder %s131, 9
        %s133 = scalar_select %p132, %s131, 9
        %s134 = smul.addr %s133, 2
        %s135 = smul.addr %s134, 4
        %s136 = scalar_lea.vmem %s0, %s135
        %s137 = smul.u32 5, %s9
      $region28: #{simple_cnn_forward.4} parent=23 // pred_fallthru
        _
    $region24: #{simple_cnn_forward.4} parent=5 // pred_fallthru
      _
    %p138 = scmp.le.s32.totalorder 1, %s9
    %p139 = scmp.lt.s32.totalorder %s9, 3
    %p140 = pnand %p138, %p139
    %p141 = pneg %p140
    // Predicated region
    $region29: #{simple_cnn_forward.4} parent=5 // pred_check
      _
    $region30: #{simple_cnn_forward.4} parent=5 // pred_check_branch
      %143 = sbr.rel (%p140) target = $region32
    $region31: #{simple_cnn_forward.4} parent=5 // pred_region
      %s144 = ssub.s32 %s9, 1
      %s145 = smul.u32 5, %s14
      %p146 = scmp.lt.s32.totalorder %s145, 9
      %s147 = scalar_select %p146, %s145, 9
      %s148 = smul.addr %s147, 2
      %s149 = smul.addr %s148, 4
      %s150 = scalar_lea.vmem %s0, %s149
      %p151 = pneg %p35
      %p152 = pneg %p32
      %p153 = pneg %p56
      %p154 = pneg %p53
      %p155 = pneg %p77
      %p156 = pneg %p74
      %p157 = pneg %p103
      %p158 = pneg %p100
      %s159 = smul.u32 5, %s14
      %p160 = scmp.lt.s32.totalorder %s159, 9
      %s161 = scalar_select %p160, %s159, 9
      %s162 = smul.addr %s161, 4
      %s163 = scalar_lea.vmem %s3, %s162
      %s164 = smul.u32 5, %s14
      %p165 = scmp.lt.s32.totalorder %s164, 9
      %s166 = scalar_select %p165, %s164, 9
      %s167 = smul.addr %s166, 2
      %s168 = smul.addr %s167, 4
      %s169 = scalar_lea.vmem %s0, %s168
      %s170 = smul.u32 5, %s14
      %s171 = smul.u32 5, %s14
      %p172 = scmp.lt.s32.totalorder %s171, 9
      %s173 = scalar_select %p172, %s171, 9
      %s174 = smul.addr %s173, 4
      %s175 = scalar_lea.vmem %s3, %s174
      %s176 = smul.u32 5, %s14
      %v177 = vld [vmem:[%s169] sm:$0xff]
      %v178 = vld [vmem:[%s169 + $0x8] sm:$0xff]
      %v179 = vld [vmem:[%s169 + $0x10] sm:$0xff]
      %v180 = vld [vmem:[%s169 + $0x18] sm:$0xff]
      %v181 = vld [vmem:[%s169 + $0x8] sm:$0xff]
      %v182 = vld [vmem:[%s169 + $0x10] sm:$0xff]
      %v183 = vld [vmem:[%s169 + $0x18] sm:$0xff]
      %v184 = vld [vmem:[%s169 + $0x20] sm:$0xff]
      %v189 = vunpack.c.l.b16 %v177
      %v190 = vunpack.c.h.b16 %v177
      %v191 = vunpack.c.l.b16 %v178
      %v192 = vunpack.c.h.b16 %v178
      %v193 = vunpack.c.l.b16 %v179
      %v194 = vunpack.c.h.b16 %v179
      %v195 = vunpack.c.l.b16 %v180
      %v196 = vunpack.c.h.b16 %v180
      %v197 = vpack.c.b16 %v191, %v189
      %v198 = vpack.c.b16 %v192, %v190
      %v199 = vpack.c.b16 %v195, %v193
      %v200 = vpack.c.b16 %v196, %v194
      %vm205 = vsmask.f32 7424
      %v207 = vshrl.u32 %v197, 16
      %v209 = vshll.u32 %v197, 16
      %v211 = vrot.slane %v209, 1
      %v212 = vor.u32 %v207, %v211
      %v214 = vshll.u32 %v199, 16
      %v216 = vrot.slane %v214, 1
      %v217 = vsel %vm205, %v212, %v216
      %v219 = vshrl.u32 %v198, 16
      %v221 = vshll.u32 %v198, 16
      %v223 = vrot.slane %v221, 1
      %v224 = vor.u32 %v219, %v223
      %v226 = vshll.u32 %v200, 16
      %v228 = vrot.slane %v226, 1
      %v229 = vsel %vm205, %v224, %v228
      %v230 = vshrl.u32 %v199, 16
      %v232 = vor.u32 %v230, %v216
      %v233 = vshrl.u32 %v200, 16
      %v235 = vor.u32 %v233, %v228
      %v244 = vunpack.c.l.b16 %v181
      %v245 = vunpack.c.h.b16 %v181
      %v246 = vunpack.c.l.b16 %v182
      %v247 = vunpack.c.h.b16 %v182
      %v248 = vunpack.c.l.b16 %v183
      %v249 = vunpack.c.h.b16 %v183
      %v250 = vunpack.c.l.b16 %v184
      %v251 = vunpack.c.h.b16 %v184
      %v252 = vpack.c.b16 %v246, %v244
      %v253 = vpack.c.b16 %v247, %v245
      %v254 = vpack.c.b16 %v250, %v248
      %v255 = vpack.c.b16 %v251, %v249
      %v261 = vshrl.u32 %v252, 16
      %v263 = vshll.u32 %v252, 16
      %v265 = vrot.slane %v263, 1
      %v266 = vor.u32 %v261, %v265
      %v268 = vshll.u32 %v254, 16
      %v270 = vrot.slane %v268, 1
      %v271 = vsel %vm205, %v266, %v270
      %v273 = vshrl.u32 %v253, 16
      %v275 = vshll.u32 %v253, 16
      %v277 = vrot.slane %v275, 1
      %v278 = vor.u32 %v273, %v277
      %v280 = vshll.u32 %v255, 16
      %v282 = vrot.slane %v280, 1
      %v283 = vsel %vm205, %v278, %v282
      %v284 = vshrl.u32 %v254, 16
      %v286 = vor.u32 %v284, %v270
      %v287 = vshrl.u32 %v255, 16
      %v289 = vor.u32 %v287, %v282
      %v294 = vld [vmem:[%s1] sm:$0xff]
      %v295 = vld [vmem:[%s1 + $0x8] sm:$0xff]
      %v296 = vld [vmem:[%s1 + $0x10] sm:$0xff]
      %v297 = vld [vmem:[%s1 + $0x18] sm:$0xff]
      %v298 = vld [vmem:[%s1 + $0x20] sm:$0xff]
      %v299 = vld [vmem:[%s1 + $0x28] sm:$0xff]
      %v300 = vld [vmem:[%s1 + $0x30] sm:$0xff]
      %v301 = vld [vmem:[%s1 + $0x38] sm:$0xff]
      %v302 = vld [vmem:[%s1 + $0x40] sm:$0xff]
      %v303 = vld [vmem:[%s1 + $0x48] sm:$0xff]
      %v304 = vld [vmem:[%s1 + $0x50] sm:$0xff]
      %v305 = vld [vmem:[%s1 + $0x58] sm:$0xff]
      %v306 = vld [vmem:[%s1 + $0x60] sm:$0xff]
      %v307 = vld [vmem:[%s1 + $0x68] sm:$0xff]
      %v308 = vld [vmem:[%s1 + $0x70] sm:$0xff]
      %v309 = vld [vmem:[%s1 + $0x78] sm:$0xff]
      %v310 = vld [vmem:[%s1 + $0x80] sm:$0xff]
      %v311 = vld [vmem:[%s1 + $0x88] sm:$0xff]
      %v312 = vld [vmem:[%s1 + $0x90] sm:$0xff]
      %v313 = vld [vmem:[%s1 + $0x98] sm:$0xff]
      %v314 = vld [vmem:[%s1 + $0xa0] sm:$0xff]
      %v315 = vld [vmem:[%s1 + $0xa8] sm:$0xff]
      %v316 = vld [vmem:[%s1 + $0xb0] sm:$0xff]
      %v317 = vld [vmem:[%s1 + $0xb8] sm:$0xff]
      %v318 = vld [vmem:[%s1 + $0xc0] sm:$0xff]
      %v319 = vld [vmem:[%s1 + $0xc8] sm:$0xff]
      %v320 = vld [vmem:[%s1 + $0xd0] sm:$0xff]
      %v321 = vld [vmem:[%s1 + $0xd8] sm:$0xff]
      %v322 = vld [vmem:[%s1 + $0xe0] sm:$0xff]
      %v323 = vld [vmem:[%s1 + $0xe8] sm:$0xff]
      %v324 = vld [vmem:[%s1 + $0xf0] sm:$0xff]
      %v325 = vld [vmem:[%s1 + $0xf8] sm:$0xff]
      %v326 = vld [vmem:[%s1 + $0x100] sm:$0xff]
      %v327 = vld [vmem:[%s1 + $0x108] sm:$0xff]
      %v328 = vld [vmem:[%s1 + $0x110] sm:$0xff]
      %v329 = vld [vmem:[%s1 + $0x118] sm:$0xff]
      %v330 = vld [vmem:[%s1 + $0x120] sm:$0xff]
      %v331 = vld [vmem:[%s1 + $0x128] sm:$0xff]
      %v332 = vld [vmem:[%s1 + $0x130] sm:$0xff]
      %v333 = vld [vmem:[%s1 + $0x138] sm:$0xff]
      %v334 = vld [vmem:[%s1 + $0x140] sm:$0xff]
      %v335 = vld [vmem:[%s1 + $0x148] sm:$0xff]
      %v336 = vld [vmem:[%s1 + $0x150] sm:$0xff]
      %v337 = vld [vmem:[%s1 + $0x158] sm:$0xff]
      %v338 = vld [vmem:[%s1 + $0x160] sm:$0xff]
      %v339 = vld [vmem:[%s1 + $0x168] sm:$0xff]
      %v340 = vld [vmem:[%s1 + $0x170] sm:$0xff]
      %v341 = vld [vmem:[%s1 + $0x178] sm:$0xff]
      %v342 = vld [vmem:[%s1 + $0x180] sm:$0xff]
      %v343 = vld [vmem:[%s1 + $0x188] sm:$0xff]
      %v344 = vld [vmem:[%s1 + $0x190] sm:$0xff]
      %v345 = vld [vmem:[%s1 + $0x198] sm:$0xff]
      %v346 = vld [vmem:[%s1 + $0x1a0] sm:$0xff]
      %v347 = vld [vmem:[%s1 + $0x1a8] sm:$0xff]
      %v348 = vld [vmem:[%s1 + $0x1b0] sm:$0xff]
      %v349 = vld [vmem:[%s1 + $0x1b8] sm:$0xff]
      %v350 = vld [vmem:[%s1 + $0x1c0] sm:$0xff]
      %v351 = vld [vmem:[%s1 + $0x1c8] sm:$0xff]
      %v352 = vld [vmem:[%s1 + $0x1d0] sm:$0xff]
      %v353 = vld [vmem:[%s1 + $0x1d8] sm:$0xff]
      %v354 = vld [vmem:[%s1 + $0x1e0] sm:$0xff]
      %v355 = vld [vmem:[%s1 + $0x1e8] sm:$0xff]
      %v356 = vld [vmem:[%s1 + $0x1f0] sm:$0xff]
      %v357 = vld [vmem:[%s1 + $0x1f8] sm:$0xff]
      %v358 = vld [vmem:[%s1 + $0x200] sm:$0xff]
      %v359 = vld [vmem:[%s1 + $0x208] sm:$0xff]
      %v360 = vld [vmem:[%s1 + $0x210] sm:$0xff]
      %v361 = vld [vmem:[%s1 + $0x218] sm:$0xff]
      %v362 = vld [vmem:[%s1 + $0x220] sm:$0xff]
      %v363 = vld [vmem:[%s1 + $0x228] sm:$0xff]
      %v364 = vld [vmem:[%s1 + $0x230] sm:$0xff]
      %v365 = vld [vmem:[%s1 + $0x238] sm:$0xff]
      %v366 = vld [vmem:[%s1 + $0x240] sm:$0xff]
      %v367 = vld [vmem:[%s1 + $0x248] sm:$0xff]
      %v368 = vld [vmem:[%s1 + $0x250] sm:$0xff]
      %v369 = vld [vmem:[%s1 + $0x258] sm:$0xff]
      %v370 = vld [vmem:[%s1 + $0x260] sm:$0xff]
      %v371 = vld [vmem:[%s1 + $0x268] sm:$0xff]
      %v372 = vld [vmem:[%s1 + $0x270] sm:$0xff]
      %v373 = vld [vmem:[%s1 + $0x278] sm:$0xff]
      %v374 = vld [vmem:[%s1 + $0x280] sm:$0xff]
      %v375 = vld [vmem:[%s1 + $0x288] sm:$0xff]
      %v376 = vld [vmem:[%s1 + $0x290] sm:$0xff]
      %v377 = vld [vmem:[%s1 + $0x298] sm:$0xff]
      %v378 = vld [vmem:[%s1 + $0x2a0] sm:$0xff]
      %v379 = vld [vmem:[%s1 + $0x2a8] sm:$0xff]
      %v380 = vld [vmem:[%s1 + $0x2b0] sm:$0xff]
      %v381 = vld [vmem:[%s1 + $0x2b8] sm:$0xff]
      %v382 = vld [vmem:[%s1 + $0x2c0] sm:$0xff]
      %v383 = vld [vmem:[%s1 + $0x2c8] sm:$0xff]
      %v384 = vld [vmem:[%s1 + $0x2d0] sm:$0xff]
      %v385 = vld [vmem:[%s1 + $0x2d8] sm:$0xff]
      %v386 = vld [vmem:[%s1 + $0x2e0] sm:$0xff]
      %v387 = vld [vmem:[%s1 + $0x2e8] sm:$0xff]
      %v388 = vld [vmem:[%s1 + $0x2f0] sm:$0xff]
      %v389 = vld [vmem:[%s1 + $0x2f8] sm:$0xff]
      %v390 = vld [vmem:[%s1 + $0x300] sm:$0xff]
      %v391 = vld [vmem:[%s1 + $0x308] sm:$0xff]
      %v392 = vld [vmem:[%s1 + $0x310] sm:$0xff]
      %v393 = vld [vmem:[%s1 + $0x318] sm:$0xff]
      %v394 = vld [vmem:[%s1 + $0x320] sm:$0xff]
      %v395 = vld [vmem:[%s1 + $0x328] sm:$0xff]
      %v396 = vld [vmem:[%s1 + $0x330] sm:$0xff]
      %v397 = vld [vmem:[%s1 + $0x338] sm:$0xff]
      %v398 = vld [vmem:[%s1 + $0x340] sm:$0xff]
      %v399 = vld [vmem:[%s1 + $0x348] sm:$0xff]
      %v400 = vld [vmem:[%s1 + $0x350] sm:$0xff]
      %v401 = vld [vmem:[%s1 + $0x358] sm:$0xff]
      %v402 = vld [vmem:[%s1 + $0x360] sm:$0xff]
      %v403 = vld [vmem:[%s1 + $0x368] sm:$0xff]
      %v404 = vld [vmem:[%s1 + $0x370] sm:$0xff]
      %v405 = vld [vmem:[%s1 + $0x378] sm:$0xff]
      %v406 = vld [vmem:[%s1 + $0x380] sm:$0xff]
      %v407 = vld [vmem:[%s1 + $0x388] sm:$0xff]
      %v408 = vld [vmem:[%s1 + $0x390] sm:$0xff]
      %v409 = vld [vmem:[%s1 + $0x398] sm:$0xff]
      %v410 = vld [vmem:[%s1 + $0x3a0] sm:$0xff]
      %v411 = vld [vmem:[%s1 + $0x3a8] sm:$0xff]
      %v412 = vld [vmem:[%s1 + $0x3b0] sm:$0xff]
      %v413 = vld [vmem:[%s1 + $0x3b8] sm:$0xff]
      %v414 = vld [vmem:[%s1 + $0x3c0] sm:$0xff]
      %v415 = vld [vmem:[%s1 + $0x3c8] sm:$0xff]
      %v416 = vld [vmem:[%s1 + $0x3d0] sm:$0xff]
      %v417 = vld [vmem:[%s1 + $0x3d8] sm:$0xff]
      %v418 = vld [vmem:[%s1 + $0x3e0] sm:$0xff]
      %v419 = vld [vmem:[%s1 + $0x3e8] sm:$0xff]
      %v420 = vld [vmem:[%s1 + $0x3f0] sm:$0xff]
      %v421 = vld [vmem:[%s1 + $0x3f8] sm:$0xff]
      %v422 = vld [vmem:[%s1 + $0x400] sm:$0xff]
      %v423 = vld [vmem:[%s1 + $0x408] sm:$0xff]
      %v424 = vld [vmem:[%s1 + $0x410] sm:$0xff]
      %v425 = vld [vmem:[%s1 + $0x418] sm:$0xff]
      %v426 = vld [vmem:[%s1 + $0x420] sm:$0xff]
      %v427 = vld [vmem:[%s1 + $0x428] sm:$0xff]
      %v428 = vld [vmem:[%s1 + $0x430] sm:$0xff]
      %v429 = vld [vmem:[%s1 + $0x438] sm:$0xff]
      %v430 = vld [vmem:[%s1 + $0x440] sm:$0xff]
      %v431 = vld [vmem:[%s1 + $0x448] sm:$0xff]
      %v432 = vld [vmem:[%s1 + $0x450] sm:$0xff]
      %v433 = vld [vmem:[%s1 + $0x458] sm:$0xff]
      %v434 = vld [vmem:[%s1 + $0x460] sm:$0xff]
      %v435 = vld [vmem:[%s1 + $0x468] sm:$0xff]
      %v436 = vld [vmem:[%s1 + $0x470] sm:$0xff]
      %v437 = vld [vmem:[%s1 + $0x478] sm:$0xff]
      %v438 = vld [vmem:[%s1 + $0x480] sm:$0xff]
      %v439 = vld [vmem:[%s1 + $0x488] sm:$0xff]
      %v440 = vld [vmem:[%s1 + $0x490] sm:$0xff]
      %v441 = vld [vmem:[%s1 + $0x498] sm:$0xff]
      %v442 = vld [vmem:[%s1 + $0x4a0] sm:$0xff]
      %v443 = vld [vmem:[%s1 + $0x4a8] sm:$0xff]
      %v444 = vld [vmem:[%s1 + $0x4b0] sm:$0xff]
      %v445 = vld [vmem:[%s1 + $0x4b8] sm:$0xff]
      %v446 = vld [vmem:[%s1 + $0x4c0] sm:$0xff]
      %v447 = vld [vmem:[%s1 + $0x4c8] sm:$0xff]
      %v448 = vld [vmem:[%s1 + $0x4d0] sm:$0xff]
      %v449 = vld [vmem:[%s1 + $0x4d8] sm:$0xff]
      %v450 = vld [vmem:[%s1 + $0x4e0] sm:$0xff]
      %v451 = vld [vmem:[%s1 + $0x4e8] sm:$0xff]
      %v452 = vld [vmem:[%s1 + $0x4f0] sm:$0xff]
      %v453 = vld [vmem:[%s1 + $0x4f8] sm:$0xff]
      %v454 = vld [vmem:[%s1 + $0x500] sm:$0xff]
      %v455 = vld [vmem:[%s1 + $0x508] sm:$0xff]
      %v456 = vld [vmem:[%s1 + $0x510] sm:$0xff]
      %v457 = vld [vmem:[%s1 + $0x518] sm:$0xff]
      %v458 = vld [vmem:[%s1 + $0x520] sm:$0xff]
      %v459 = vld [vmem:[%s1 + $0x528] sm:$0xff]
      %v460 = vld [vmem:[%s1 + $0x530] sm:$0xff]
      %v461 = vld [vmem:[%s1 + $0x538] sm:$0xff]
      %v462 = vld [vmem:[%s1 + $0x540] sm:$0xff]
      %v463 = vld [vmem:[%s1 + $0x548] sm:$0xff]
      %v464 = vld [vmem:[%s1 + $0x550] sm:$0xff]
      %v465 = vld [vmem:[%s1 + $0x558] sm:$0xff]
      %v466 = vld [vmem:[%s1 + $0x560] sm:$0xff]
      %v467 = vld [vmem:[%s1 + $0x568] sm:$0xff]
      %v468 = vld [vmem:[%s1 + $0x570] sm:$0xff]
      %v469 = vld [vmem:[%s1 + $0x578] sm:$0xff]
      %v470 = vld [vmem:[%s1 + $0x580] sm:$0xff]
      %v471 = vld [vmem:[%s1 + $0x588] sm:$0xff]
      %v472 = vld [vmem:[%s1 + $0x590] sm:$0xff]
      %v473 = vld [vmem:[%s1 + $0x598] sm:$0xff]
      %v474 = vld [vmem:[%s1 + $0x5a0] sm:$0xff]
      %v475 = vld [vmem:[%s1 + $0x5a8] sm:$0xff]
      %v476 = vld [vmem:[%s1 + $0x5b0] sm:$0xff]
      %v477 = vld [vmem:[%s1 + $0x5b8] sm:$0xff]
      %v478 = vld [vmem:[%s1 + $0x5c0] sm:$0xff]
      %v479 = vld [vmem:[%s1 + $0x5c8] sm:$0xff]
      %v480 = vld [vmem:[%s1 + $0x5d0] sm:$0xff]
      %v481 = vld [vmem:[%s1 + $0x5d8] sm:$0xff]
      %v482 = vld [vmem:[%s1 + $0x5e0] sm:$0xff]
      %v483 = vld [vmem:[%s1 + $0x5e8] sm:$0xff]
      %v484 = vld [vmem:[%s1 + $0x5f0] sm:$0xff]
      %v485 = vld [vmem:[%s1 + $0x5f8] sm:$0xff]
      %v486 = vld [vmem:[%s1 + $0x600] sm:$0xff]
      %v487 = vld [vmem:[%s1 + $0x608] sm:$0xff]
      %v488 = vld [vmem:[%s1 + $0x610] sm:$0xff]
      %v489 = vld [vmem:[%s1 + $0x618] sm:$0xff]
      %v490 = vld [vmem:[%s1 + $0x620] sm:$0xff]
      %v491 = vld [vmem:[%s1 + $0x628] sm:$0xff]
      %v492 = vld [vmem:[%s1 + $0x630] sm:$0xff]
      %v493 = vld [vmem:[%s1 + $0x638] sm:$0xff]
      %v494 = vld [vmem:[%s1 + $0x640] sm:$0xff]
      %v495 = vld [vmem:[%s1 + $0x648] sm:$0xff]
      %v496 = vld [vmem:[%s1 + $0x650] sm:$0xff]
      %v497 = vld [vmem:[%s1 + $0x658] sm:$0xff]
      %v498 = vld [vmem:[%s1 + $0x660] sm:$0xff]
      %v499 = vld [vmem:[%s1 + $0x668] sm:$0xff]
      %v500 = vld [vmem:[%s1 + $0x670] sm:$0xff]
      %v501 = vld [vmem:[%s1 + $0x678] sm:$0xff]
      %v502 = vld [vmem:[%s1 + $0x680] sm:$0xff]
      %v503 = vld [vmem:[%s1 + $0x688] sm:$0xff]
      %v504 = vld [vmem:[%s1 + $0x690] sm:$0xff]
      %v505 = vld [vmem:[%s1 + $0x698] sm:$0xff]
      %v506 = vld [vmem:[%s1 + $0x6a0] sm:$0xff]
      %v507 = vld [vmem:[%s1 + $0x6a8] sm:$0xff]
      %v508 = vld [vmem:[%s1 + $0x6b0] sm:$0xff]
      %v509 = vld [vmem:[%s1 + $0x6b8] sm:$0xff]
      %v510 = vld [vmem:[%s1 + $0x6c0] sm:$0xff]
      %v511 = vld [vmem:[%s1 + $0x6c8] sm:$0xff]
      %v512 = vld [vmem:[%s1 + $0x6d0] sm:$0xff]
      %v513 = vld [vmem:[%s1 + $0x6d8] sm:$0xff]
      %v514 = vld [vmem:[%s1 + $0x6e0] sm:$0xff]
      %v515 = vld [vmem:[%s1 + $0x6e8] sm:$0xff]
      %v516 = vld [vmem:[%s1 + $0x6f0] sm:$0xff]
      %v517 = vld [vmem:[%s1 + $0x6f8] sm:$0xff]
      %v518 = vld [vmem:[%s1 + $0x700] sm:$0xff]
      %v519 = vld [vmem:[%s1 + $0x708] sm:$0xff]
      %v520 = vld [vmem:[%s1 + $0x710] sm:$0xff]
      %v521 = vld [vmem:[%s1 + $0x718] sm:$0xff]
      %v522 = vld [vmem:[%s1 + $0x720] sm:$0xff]
      %v523 = vld [vmem:[%s1 + $0x728] sm:$0xff]
      %v524 = vld [vmem:[%s1 + $0x730] sm:$0xff]
      %v525 = vld [vmem:[%s1 + $0x738] sm:$0xff]
      %v526 = vld [vmem:[%s1 + $0x740] sm:$0xff]
      %v527 = vld [vmem:[%s1 + $0x748] sm:$0xff]
      %v528 = vld [vmem:[%s1 + $0x750] sm:$0xff]
      %v529 = vld [vmem:[%s1 + $0x758] sm:$0xff]
      %v530 = vld [vmem:[%s1 + $0x760] sm:$0xff]
      %v531 = vld [vmem:[%s1 + $0x768] sm:$0xff]
      %v532 = vld [vmem:[%s1 + $0x770] sm:$0xff]
      %v533 = vld [vmem:[%s1 + $0x778] sm:$0xff]
      %v534 = vld [vmem:[%s1 + $0x780] sm:$0xff]
      %v535 = vld [vmem:[%s1 + $0x788] sm:$0xff]
      %v536 = vld [vmem:[%s1 + $0x790] sm:$0xff]
      %v537 = vld [vmem:[%s1 + $0x798] sm:$0xff]
      %v538 = vld [vmem:[%s1 + $0x7a0] sm:$0xff]
      %v539 = vld [vmem:[%s1 + $0x7a8] sm:$0xff]
      %v540 = vld [vmem:[%s1 + $0x7b0] sm:$0xff]
      %v541 = vld [vmem:[%s1 + $0x7b8] sm:$0xff]
      %v542 = vld [vmem:[%s1 + $0x7c0] sm:$0xff]
      %v543 = vld [vmem:[%s1 + $0x7c8] sm:$0xff]
      %v544 = vld [vmem:[%s1 + $0x7d0] sm:$0xff]
      %v545 = vld [vmem:[%s1 + $0x7d8] sm:$0xff]
      %v546 = vld [vmem:[%s1 + $0x7e0] sm:$0xff]
      %v547 = vld [vmem:[%s1 + $0x7e8] sm:$0xff]
      %v548 = vld [vmem:[%s1 + $0x7f0] sm:$0xff]
      %v549 = vld [vmem:[%s1 + $0x7f8] sm:$0xff]
      %v806 = vunpack.c.l.b16 %v294
      %v807 = vunpack.c.h.b16 %v294
      %v808 = vunpack.c.l.b16 %v295
      %v809 = vunpack.c.h.b16 %v295
      %v810 = vunpack.c.l.b16 %v296
      %v811 = vunpack.c.h.b16 %v296
      %v812 = vunpack.c.l.b16 %v297
      %v813 = vunpack.c.h.b16 %v297
      %v814 = vunpack.c.l.b16 %v298
      %v815 = vunpack.c.h.b16 %v298
      %v816 = vunpack.c.l.b16 %v299
      %v817 = vunpack.c.h.b16 %v299
      %v818 = vunpack.c.l.b16 %v300
      %v819 = vunpack.c.h.b16 %v300
      %v820 = vunpack.c.l.b16 %v301
      %v821 = vunpack.c.h.b16 %v301
      %v822 = vunpack.c.l.b16 %v302
      %v823 = vunpack.c.h.b16 %v302
      %v824 = vunpack.c.l.b16 %v303
      %v825 = vunpack.c.h.b16 %v303
      %v826 = vunpack.c.l.b16 %v304
      %v827 = vunpack.c.h.b16 %v304
      %v828 = vunpack.c.l.b16 %v305
      %v829 = vunpack.c.h.b16 %v305
      %v830 = vunpack.c.l.b16 %v306
      %v831 = vunpack.c.h.b16 %v306
      %v832 = vunpack.c.l.b16 %v307
      %v833 = vunpack.c.h.b16 %v307
      %v834 = vunpack.c.l.b16 %v308
      %v835 = vunpack.c.h.b16 %v308
      %v836 = vunpack.c.l.b16 %v309
      %v837 = vunpack.c.h.b16 %v309
      %v838 = vunpack.c.l.b16 %v310
      %v839 = vunpack.c.h.b16 %v310
      %v840 = vunpack.c.l.b16 %v311
      %v841 = vunpack.c.h.b16 %v311
      %v842 = vunpack.c.l.b16 %v312
      %v843 = vunpack.c.h.b16 %v312
      %v844 = vunpack.c.l.b16 %v313
      %v845 = vunpack.c.h.b16 %v313
      %v846 = vunpack.c.l.b16 %v314
      %v847 = vunpack.c.h.b16 %v314
      %v848 = vunpack.c.l.b16 %v315
      %v849 = vunpack.c.h.b16 %v315
      %v850 = vunpack.c.l.b16 %v316
      %v851 = vunpack.c.h.b16 %v316
      %v852 = vunpack.c.l.b16 %v317
      %v853 = vunpack.c.h.b16 %v317
      %v854 = vunpack.c.l.b16 %v318
      %v855 = vunpack.c.h.b16 %v318
      %v856 = vunpack.c.l.b16 %v319
      %v857 = vunpack.c.h.b16 %v319
      %v858 = vunpack.c.l.b16 %v320
      %v859 = vunpack.c.h.b16 %v320
      %v860 = vunpack.c.l.b16 %v321
      %v861 = vunpack.c.h.b16 %v321
      %v862 = vunpack.c.l.b16 %v322
      %v863 = vunpack.c.h.b16 %v322
      %v864 = vunpack.c.l.b16 %v323
      %v865 = vunpack.c.h.b16 %v323
      %v866 = vunpack.c.l.b16 %v324
      %v867 = vunpack.c.h.b16 %v324
      %v868 = vunpack.c.l.b16 %v325
      %v869 = vunpack.c.h.b16 %v325
      %v870 = vunpack.c.l.b16 %v326
      %v871 = vunpack.c.h.b16 %v326
      %v872 = vunpack.c.l.b16 %v327
      %v873 = vunpack.c.h.b16 %v327
      %v874 = vunpack.c.l.b16 %v328
      %v875 = vunpack.c.h.b16 %v328
      %v876 = vunpack.c.l.b16 %v329
      %v877 = vunpack.c.h.b16 %v329
      %v878 = vunpack.c.l.b16 %v330
      %v879 = vunpack.c.h.b16 %v330
      %v880 = vunpack.c.l.b16 %v331
      %v881 = vunpack.c.h.b16 %v331
      %v882 = vunpack.c.l.b16 %v332
      %v883 = vunpack.c.h.b16 %v332
      %v884 = vunpack.c.l.b16 %v333
      %v885 = vunpack.c.h.b16 %v333
      %v886 = vunpack.c.l.b16 %v334
      %v887 = vunpack.c.h.b16 %v334
      %v888 = vunpack.c.l.b16 %v335
      %v889 = vunpack.c.h.b16 %v335
      %v890 = vunpack.c.l.b16 %v336
      %v891 = vunpack.c.h.b16 %v336
      %v892 = vunpack.c.l.b16 %v337
      %v893 = vunpack.c.h.b16 %v337
      %v894 = vunpack.c.l.b16 %v338
      %v895 = vunpack.c.h.b16 %v338
      %v896 = vunpack.c.l.b16 %v339
      %v897 = vunpack.c.h.b16 %v339
      %v898 = vunpack.c.l.b16 %v340
      %v899 = vunpack.c.h.b16 %v340
      %v900 = vunpack.c.l.b16 %v341
      %v901 = vunpack.c.h.b16 %v341
      %v902 = vunpack.c.l.b16 %v342
      %v903 = vunpack.c.h.b16 %v342
      %v904 = vunpack.c.l.b16 %v343
      %v905 = vunpack.c.h.b16 %v343
      %v906 = vunpack.c.l.b16 %v344
      %v907 = vunpack.c.h.b16 %v344
      %v908 = vunpack.c.l.b16 %v345
      %v909 = vunpack.c.h.b16 %v345
      %v910 = vunpack.c.l.b16 %v346
      %v911 = vunpack.c.h.b16 %v346
      %v912 = vunpack.c.l.b16 %v347
      %v913 = vunpack.c.h.b16 %v347
      %v914 = vunpack.c.l.b16 %v348
      %v915 = vunpack.c.h.b16 %v348
      %v916 = vunpack.c.l.b16 %v349
      %v917 = vunpack.c.h.b16 %v349
      %v918 = vunpack.c.l.b16 %v350
      %v919 = vunpack.c.h.b16 %v350
      %v920 = vunpack.c.l.b16 %v351
      %v921 = vunpack.c.h.b16 %v351
      %v922 = vunpack.c.l.b16 %v352
      %v923 = vunpack.c.h.b16 %v352
      %v924 = vunpack.c.l.b16 %v353
      %v925 = vunpack.c.h.b16 %v353
      %v926 = vunpack.c.l.b16 %v354
      %v927 = vunpack.c.h.b16 %v354
      %v928 = vunpack.c.l.b16 %v355
      %v929 = vunpack.c.h.b16 %v355
      %v930 = vunpack.c.l.b16 %v356
      %v931 = vunpack.c.h.b16 %v356
      %v932 = vunpack.c.l.b16 %v357
      %v933 = vunpack.c.h.b16 %v357
      %v934 = vunpack.c.l.b16 %v358
      %v935 = vunpack.c.h.b16 %v358
      %v936 = vunpack.c.l.b16 %v359
      %v937 = vunpack.c.h.b16 %v359
      %v938 = vunpack.c.l.b16 %v360
      %v939 = vunpack.c.h.b16 %v360
      %v940 = vunpack.c.l.b16 %v361
      %v941 = vunpack.c.h.b16 %v361
      %v942 = vunpack.c.l.b16 %v362
      %v943 = vunpack.c.h.b16 %v362
      %v944 = vunpack.c.l.b16 %v363
      %v945 = vunpack.c.h.b16 %v363
      %v946 = vunpack.c.l.b16 %v364
      %v947 = vunpack.c.h.b16 %v364
      %v948 = vunpack.c.l.b16 %v365
      %v949 = vunpack.c.h.b16 %v365
      %v950 = vunpack.c.l.b16 %v366
      %v951 = vunpack.c.h.b16 %v366
      %v952 = vunpack.c.l.b16 %v367
      %v953 = vunpack.c.h.b16 %v367
      %v954 = vunpack.c.l.b16 %v368
      %v955 = vunpack.c.h.b16 %v368
      %v956 = vunpack.c.l.b16 %v369
      %v957 = vunpack.c.h.b16 %v369
      %v958 = vunpack.c.l.b16 %v370
      %v959 = vunpack.c.h.b16 %v370
      %v960 = vunpack.c.l.b16 %v371
      %v961 = vunpack.c.h.b16 %v371
      %v962 = vunpack.c.l.b16 %v372
      %v963 = vunpack.c.h.b16 %v372
      %v964 = vunpack.c.l.b16 %v373
      %v965 = vunpack.c.h.b16 %v373
      %v966 = vunpack.c.l.b16 %v374
      %v967 = vunpack.c.h.b16 %v374
      %v968 = vunpack.c.l.b16 %v375
      %v969 = vunpack.c.h.b16 %v375
      %v970 = vunpack.c.l.b16 %v376
      %v971 = vunpack.c.h.b16 %v376
      %v972 = vunpack.c.l.b16 %v377
      %v973 = vunpack.c.h.b16 %v377
      %v974 = vunpack.c.l.b16 %v378
      %v975 = vunpack.c.h.b16 %v378
      %v976 = vunpack.c.l.b16 %v379
      %v977 = vunpack.c.h.b16 %v379
      %v978 = vunpack.c.l.b16 %v380
      %v979 = vunpack.c.h.b16 %v380
      %v980 = vunpack.c.l.b16 %v381
      %v981 = vunpack.c.h.b16 %v381
      %v982 = vunpack.c.l.b16 %v382
      %v983 = vunpack.c.h.b16 %v382
      %v984 = vunpack.c.l.b16 %v383
      %v985 = vunpack.c.h.b16 %v383
      %v986 = vunpack.c.l.b16 %v384
      %v987 = vunpack.c.h.b16 %v384
      %v988 = vunpack.c.l.b16 %v385
      %v989 = vunpack.c.h.b16 %v385
      %v990 = vunpack.c.l.b16 %v386
      %v991 = vunpack.c.h.b16 %v386
      %v992 = vunpack.c.l.b16 %v387
      %v993 = vunpack.c.h.b16 %v387
      %v994 = vunpack.c.l.b16 %v388
      %v995 = vunpack.c.h.b16 %v388
      %v996 = vunpack.c.l.b16 %v389
      %v997 = vunpack.c.h.b16 %v389
      %v998 = vunpack.c.l.b16 %v390
      %v999 = vunpack.c.h.b16 %v390
      %v1000 = vunpack.c.l.b16 %v391
      %v1001 = vunpack.c.h.b16 %v391
      %v1002 = vunpack.c.l.b16 %v392
      %v1003 = vunpack.c.h.b16 %v392
      %v1004 = vunpack.c.l.b16 %v393
      %v1005 = vunpack.c.h.b16 %v393
      %v1006 = vunpack.c.l.b16 %v394
      %v1007 = vunpack.c.h.b16 %v394
      %v1008 = vunpack.c.l.b16 %v395
      %v1009 = vunpack.c.h.b16 %v395
      %v1010 = vunpack.c.l.b16 %v396
      %v1011 = vunpack.c.h.b16 %v396
      %v1012 = vunpack.c.l.b16 %v397
      %v1013 = vunpack.c.h.b16 %v397
      %v1014 = vunpack.c.l.b16 %v398
      %v1015 = vunpack.c.h.b16 %v398
      %v1016 = vunpack.c.l.b16 %v399
      %v1017 = vunpack.c.h.b16 %v399
      %v1018 = vunpack.c.l.b16 %v400
      %v1019 = vunpack.c.h.b16 %v400
      %v1020 = vunpack.c.l.b16 %v401
      %v1021 = vunpack.c.h.b16 %v401
      %v1022 = vunpack.c.l.b16 %v402
      %v1023 = vunpack.c.h.b16 %v402
      %v1024 = vunpack.c.l.b16 %v403
      %v1025 = vunpack.c.h.b16 %v403
      %v1026 = vunpack.c.l.b16 %v404
      %v1027 = vunpack.c.h.b16 %v404
      %v1028 = vunpack.c.l.b16 %v405
      %v1029 = vunpack.c.h.b16 %v405
      %v1030 = vunpack.c.l.b16 %v406
      %v1031 = vunpack.c.h.b16 %v406
      %v1032 = vunpack.c.l.b16 %v407
      %v1033 = vunpack.c.h.b16 %v407
      %v1034 = vunpack.c.l.b16 %v408
      %v1035 = vunpack.c.h.b16 %v408
      %v1036 = vunpack.c.l.b16 %v409
      %v1037 = vunpack.c.h.b16 %v409
      %v1038 = vunpack.c.l.b16 %v410
      %v1039 = vunpack.c.h.b16 %v410
      %v1040 = vunpack.c.l.b16 %v411
      %v1041 = vunpack.c.h.b16 %v411
      %v1042 = vunpack.c.l.b16 %v412
      %v1043 = vunpack.c.h.b16 %v412
      %v1044 = vunpack.c.l.b16 %v413
      %v1045 = vunpack.c.h.b16 %v413
      %v1046 = vunpack.c.l.b16 %v414
      %v1047 = vunpack.c.h.b16 %v414
      %v1048 = vunpack.c.l.b16 %v415
      %v1049 = vunpack.c.h.b16 %v415
      %v1050 = vunpack.c.l.b16 %v416
      %v1051 = vunpack.c.h.b16 %v416
      %v1052 = vunpack.c.l.b16 %v417
      %v1053 = vunpack.c.h.b16 %v417
      %v1054 = vunpack.c.l.b16 %v418
      %v1055 = vunpack.c.h.b16 %v418
      %v1056 = vunpack.c.l.b16 %v419
      %v1057 = vunpack.c.h.b16 %v419
      %v1058 = vunpack.c.l.b16 %v420
      %v1059 = vunpack.c.h.b16 %v420
      %v1060 = vunpack.c.l.b16 %v421
      %v1061 = vunpack.c.h.b16 %v421
      %v1062 = vunpack.c.l.b16 %v422
      %v1063 = vunpack.c.h.b16 %v422
      %v1064 = vunpack.c.l.b16 %v423
      %v1065 = vunpack.c.h.b16 %v423
      %v1066 = vunpack.c.l.b16 %v424
      %v1067 = vunpack.c.h.b16 %v424
      %v1068 = vunpack.c.l.b16 %v425
      %v1069 = vunpack.c.h.b16 %v425
      %v1070 = vunpack.c.l.b16 %v426
      %v1071 = vunpack.c.h.b16 %v426
      %v1072 = vunpack.c.l.b16 %v427
      %v1073 = vunpack.c.h.b16 %v427
      %v1074 = vunpack.c.l.b16 %v428
      %v1075 = vunpack.c.h.b16 %v428
      %v1076 = vunpack.c.l.b16 %v429
      %v1077 = vunpack.c.h.b16 %v429
      %v1078 = vunpack.c.l.b16 %v430
      %v1079 = vunpack.c.h.b16 %v430
      %v1080 = vunpack.c.l.b16 %v431
      %v1081 = vunpack.c.h.b16 %v431
      %v1082 = vunpack.c.l.b16 %v432
      %v1083 = vunpack.c.h.b16 %v432
      %v1084 = vunpack.c.l.b16 %v433
      %v1085 = vunpack.c.h.b16 %v433
      %v1086 = vunpack.c.l.b16 %v434
      %v1087 = vunpack.c.h.b16 %v434
      %v1088 = vunpack.c.l.b16 %v435
      %v1089 = vunpack.c.h.b16 %v435
      %v1090 = vunpack.c.l.b16 %v436
      %v1091 = vunpack.c.h.b16 %v436
      %v1092 = vunpack.c.l.b16 %v437
      %v1093 = vunpack.c.h.b16 %v437
      %v1094 = vunpack.c.l.b16 %v438
      %v1095 = vunpack.c.h.b16 %v438
      %v1096 = vunpack.c.l.b16 %v439
      %v1097 = vunpack.c.h.b16 %v439
      %v1098 = vunpack.c.l.b16 %v440
      %v1099 = vunpack.c.h.b16 %v440
      %v1100 = vunpack.c.l.b16 %v441
      %v1101 = vunpack.c.h.b16 %v441
      %v1102 = vunpack.c.l.b16 %v442
      %v1103 = vunpack.c.h.b16 %v442
      %v1104 = vunpack.c.l.b16 %v443
      %v1105 = vunpack.c.h.b16 %v443
      %v1106 = vunpack.c.l.b16 %v444
      %v1107 = vunpack.c.h.b16 %v444
      %v1108 = vunpack.c.l.b16 %v445
      %v1109 = vunpack.c.h.b16 %v445
      %v1110 = vunpack.c.l.b16 %v446
      %v1111 = vunpack.c.h.b16 %v446
      %v1112 = vunpack.c.l.b16 %v447
      %v1113 = vunpack.c.h.b16 %v447
      %v1114 = vunpack.c.l.b16 %v448
      %v1115 = vunpack.c.h.b16 %v448
      %v1116 = vunpack.c.l.b16 %v449
      %v1117 = vunpack.c.h.b16 %v449
      %v1118 = vunpack.c.l.b16 %v450
      %v1119 = vunpack.c.h.b16 %v450
      %v1120 = vunpack.c.l.b16 %v451
      %v1121 = vunpack.c.h.b16 %v451
      %v1122 = vunpack.c.l.b16 %v452
      %v1123 = vunpack.c.h.b16 %v452
      %v1124 = vunpack.c.l.b16 %v453
      %v1125 = vunpack.c.h.b16 %v453
      %v1126 = vunpack.c.l.b16 %v454
      %v1127 = vunpack.c.h.b16 %v454
      %v1128 = vunpack.c.l.b16 %v455
      %v1129 = vunpack.c.h.b16 %v455
      %v1130 = vunpack.c.l.b16 %v456
      %v1131 = vunpack.c.h.b16 %v456
      %v1132 = vunpack.c.l.b16 %v457
      %v1133 = vunpack.c.h.b16 %v457
      %v1134 = vunpack.c.l.b16 %v458
      %v1135 = vunpack.c.h.b16 %v458
      %v1136 = vunpack.c.l.b16 %v459
      %v1137 = vunpack.c.h.b16 %v459
      %v1138 = vunpack.c.l.b16 %v460
      %v1139 = vunpack.c.h.b16 %v460
      %v1140 = vunpack.c.l.b16 %v461
      %v1141 = vunpack.c.h.b16 %v461
      %v1142 = vunpack.c.l.b16 %v462
      %v1143 = vunpack.c.h.b16 %v462
      %v1144 = vunpack.c.l.b16 %v463
      %v1145 = vunpack.c.h.b16 %v463
      %v1146 = vunpack.c.l.b16 %v464
      %v1147 = vunpack.c.h.b16 %v464
      %v1148 = vunpack.c.l.b16 %v465
      %v1149 = vunpack.c.h.b16 %v465
      %v1150 = vunpack.c.l.b16 %v466
      %v1151 = vunpack.c.h.b16 %v466
      %v1152 = vunpack.c.l.b16 %v467
      %v1153 = vunpack.c.h.b16 %v467
      %v1154 = vunpack.c.l.b16 %v468
      %v1155 = vunpack.c.h.b16 %v468
      %v1156 = vunpack.c.l.b16 %v469
      %v1157 = vunpack.c.h.b16 %v469
      %v1158 = vunpack.c.l.b16 %v470
      %v1159 = vunpack.c.h.b16 %v470
      %v1160 = vunpack.c.l.b16 %v471
      %v1161 = vunpack.c.h.b16 %v471
      %v1162 = vunpack.c.l.b16 %v472
      %v1163 = vunpack.c.h.b16 %v472
      %v1164 = vunpack.c.l.b16 %v473
      %v1165 = vunpack.c.h.b16 %v473
      %v1166 = vunpack.c.l.b16 %v474
      %v1167 = vunpack.c.h.b16 %v474
      %v1168 = vunpack.c.l.b16 %v475
      %v1169 = vunpack.c.h.b16 %v475
      %v1170 = vunpack.c.l.b16 %v476
      %v1171 = vunpack.c.h.b16 %v476
      %v1172 = vunpack.c.l.b16 %v477
      %v1173 = vunpack.c.h.b16 %v477
      %v1174 = vunpack.c.l.b16 %v478
      %v1175 = vunpack.c.h.b16 %v478
      %v1176 = vunpack.c.l.b16 %v479
      %v1177 = vunpack.c.h.b16 %v479
      %v1178 = vunpack.c.l.b16 %v480
      %v1179 = vunpack.c.h.b16 %v480
      %v1180 = vunpack.c.l.b16 %v481
      %v1181 = vunpack.c.h.b16 %v481
      %v1182 = vunpack.c.l.b16 %v482
      %v1183 = vunpack.c.h.b16 %v482
      %v1184 = vunpack.c.l.b16 %v483
      %v1185 = vunpack.c.h.b16 %v483
      %v1186 = vunpack.c.l.b16 %v484
      %v1187 = vunpack.c.h.b16 %v484
      %v1188 = vunpack.c.l.b16 %v485
      %v1189 = vunpack.c.h.b16 %v485
      %v1190 = vunpack.c.l.b16 %v486
      %v1191 = vunpack.c.h.b16 %v486
      %v1192 = vunpack.c.l.b16 %v487
      %v1193 = vunpack.c.h.b16 %v487
      %v1194 = vunpack.c.l.b16 %v488
      %v1195 = vunpack.c.h.b16 %v488
      %v1196 = vunpack.c.l.b16 %v489
      %v1197 = vunpack.c.h.b16 %v489
      %v1198 = vunpack.c.l.b16 %v490
      %v1199 = vunpack.c.h.b16 %v490
      %v1200 = vunpack.c.l.b16 %v491
      %v1201 = vunpack.c.h.b16 %v491
      %v1202 = vunpack.c.l.b16 %v492
      %v1203 = vunpack.c.h.b16 %v492
      %v1204 = vunpack.c.l.b16 %v493
      %v1205 = vunpack.c.h.b16 %v493
      %v1206 = vunpack.c.l.b16 %v494
      %v1207 = vunpack.c.h.b16 %v494
      %v1208 = vunpack.c.l.b16 %v495
      %v1209 = vunpack.c.h.b16 %v495
      %v1210 = vunpack.c.l.b16 %v496
      %v1211 = vunpack.c.h.b16 %v496
      %v1212 = vunpack.c.l.b16 %v497
      %v1213 = vunpack.c.h.b16 %v497
      %v1214 = vunpack.c.l.b16 %v498
      %v1215 = vunpack.c.h.b16 %v498
      %v1216 = vunpack.c.l.b16 %v499
      %v1217 = vunpack.c.h.b16 %v499
      %v1218 = vunpack.c.l.b16 %v500
      %v1219 = vunpack.c.h.b16 %v500
      %v1220 = vunpack.c.l.b16 %v501
      %v1221 = vunpack.c.h.b16 %v501
      %v1222 = vunpack.c.l.b16 %v502
      %v1223 = vunpack.c.h.b16 %v502
      %v1224 = vunpack.c.l.b16 %v503
      %v1225 = vunpack.c.h.b16 %v503
      %v1226 = vunpack.c.l.b16 %v504
      %v1227 = vunpack.c.h.b16 %v504
      %v1228 = vunpack.c.l.b16 %v505
      %v1229 = vunpack.c.h.b16 %v505
      %v1230 = vunpack.c.l.b16 %v506
      %v1231 = vunpack.c.h.b16 %v506
      %v1232 = vunpack.c.l.b16 %v507
      %v1233 = vunpack.c.h.b16 %v507
      %v1234 = vunpack.c.l.b16 %v508
      %v1235 = vunpack.c.h.b16 %v508
      %v1236 = vunpack.c.l.b16 %v509
      %v1237 = vunpack.c.h.b16 %v509
      %v1238 = vunpack.c.l.b16 %v510
      %v1239 = vunpack.c.h.b16 %v510
      %v1240 = vunpack.c.l.b16 %v511
      %v1241 = vunpack.c.h.b16 %v511
      %v1242 = vunpack.c.l.b16 %v512
      %v1243 = vunpack.c.h.b16 %v512
      %v1244 = vunpack.c.l.b16 %v513
      %v1245 = vunpack.c.h.b16 %v513
      %v1246 = vunpack.c.l.b16 %v514
      %v1247 = vunpack.c.h.b16 %v514
      %v1248 = vunpack.c.l.b16 %v515
      %v1249 = vunpack.c.h.b16 %v515
      %v1250 = vunpack.c.l.b16 %v516
      %v1251 = vunpack.c.h.b16 %v516
      %v1252 = vunpack.c.l.b16 %v517
      %v1253 = vunpack.c.h.b16 %v517
      %v1254 = vunpack.c.l.b16 %v518
      %v1255 = vunpack.c.h.b16 %v518
      %v1256 = vunpack.c.l.b16 %v519
      %v1257 = vunpack.c.h.b16 %v519
      %v1258 = vunpack.c.l.b16 %v520
      %v1259 = vunpack.c.h.b16 %v520
      %v1260 = vunpack.c.l.b16 %v521
      %v1261 = vunpack.c.h.b16 %v521
      %v1262 = vunpack.c.l.b16 %v522
      %v1263 = vunpack.c.h.b16 %v522
      %v1264 = vunpack.c.l.b16 %v523
      %v1265 = vunpack.c.h.b16 %v523
      %v1266 = vunpack.c.l.b16 %v524
      %v1267 = vunpack.c.h.b16 %v524
      %v1268 = vunpack.c.l.b16 %v525
      %v1269 = vunpack.c.h.b16 %v525
      %v1270 = vunpack.c.l.b16 %v526
      %v1271 = vunpack.c.h.b16 %v526
      %v1272 = vunpack.c.l.b16 %v527
      %v1273 = vunpack.c.h.b16 %v527
      %v1274 = vunpack.c.l.b16 %v528
      %v1275 = vunpack.c.h.b16 %v528
      %v1276 = vunpack.c.l.b16 %v529
      %v1277 = vunpack.c.h.b16 %v529
      %v1278 = vunpack.c.l.b16 %v530
      %v1279 = vunpack.c.h.b16 %v530
      %v1280 = vunpack.c.l.b16 %v531
      %v1281 = vunpack.c.h.b16 %v531
      %v1282 = vunpack.c.l.b16 %v532
      %v1283 = vunpack.c.h.b16 %v532
      %v1284 = vunpack.c.l.b16 %v533
      %v1285 = vunpack.c.h.b16 %v533
      %v1286 = vunpack.c.l.b16 %v534
      %v1287 = vunpack.c.h.b16 %v534
      %v1288 = vunpack.c.l.b16 %v535
      %v1289 = vunpack.c.h.b16 %v535
      %v1290 = vunpack.c.l.b16 %v536
      %v1291 = vunpack.c.h.b16 %v536
      %v1292 = vunpack.c.l.b16 %v537
      %v1293 = vunpack.c.h.b16 %v537
      %v1294 = vunpack.c.l.b16 %v538
      %v1295 = vunpack.c.h.b16 %v538
      %v1296 = vunpack.c.l.b16 %v539
      %v1297 = vunpack.c.h.b16 %v539
      %v1298 = vunpack.c.l.b16 %v540
      %v1299 = vunpack.c.h.b16 %v540
      %v1300 = vunpack.c.l.b16 %v541
      %v1301 = vunpack.c.h.b16 %v541
      %v1302 = vunpack.c.l.b16 %v542
      %v1303 = vunpack.c.h.b16 %v542
      %v1304 = vunpack.c.l.b16 %v543
      %v1305 = vunpack.c.h.b16 %v543
      %v1306 = vunpack.c.l.b16 %v544
      %v1307 = vunpack.c.h.b16 %v544
      %v1308 = vunpack.c.l.b16 %v545
      %v1309 = vunpack.c.h.b16 %v545
      %v1310 = vunpack.c.l.b16 %v546
      %v1311 = vunpack.c.h.b16 %v546
      %v1312 = vunpack.c.l.b16 %v547
      %v1313 = vunpack.c.h.b16 %v547
      %v1314 = vunpack.c.l.b16 %v548
      %v1315 = vunpack.c.h.b16 %v548
      %v1316 = vunpack.c.l.b16 %v549
      %v1317 = vunpack.c.h.b16 %v549
      %v1318 = vpack.c.b16 %v810, %v806
      %v1319 = vpack.c.b16 %v811, %v807
      %v1320 = vpack.c.b16 %v812, %v808
      %v1321 = vpack.c.b16 %v813, %v809
      %v1322 = vpack.c.b16 %v818, %v814
      %v1323 = vpack.c.b16 %v819, %v815
      %v1324 = vpack.c.b16 %v820, %v816
      %v1325 = vpack.c.b16 %v821, %v817
      %v1326 = vpack.c.b16 %v826, %v822
      %v1327 = vpack.c.b16 %v827, %v823
      %v1328 = vpack.c.b16 %v828, %v824
      %v1329 = vpack.c.b16 %v829, %v825
      %v1330 = vpack.c.b16 %v834, %v830
      %v1331 = vpack.c.b16 %v835, %v831
      %v1332 = vpack.c.b16 %v836, %v832
      %v1333 = vpack.c.b16 %v837, %v833
      %v1334 = vpack.c.b16 %v842, %v838
      %v1335 = vpack.c.b16 %v843, %v839
      %v1336 = vpack.c.b16 %v844, %v840
      %v1337 = vpack.c.b16 %v845, %v841
      %v1338 = vpack.c.b16 %v850, %v846
      %v1339 = vpack.c.b16 %v851, %v847
      %v1340 = vpack.c.b16 %v852, %v848
      %v1341 = vpack.c.b16 %v853, %v849
      %v1342 = vpack.c.b16 %v858, %v854
      %v1343 = vpack.c.b16 %v859, %v855
      %v1344 = vpack.c.b16 %v860, %v856
      %v1345 = vpack.c.b16 %v861, %v857
      %v1346 = vpack.c.b16 %v866, %v862
      %v1347 = vpack.c.b16 %v867, %v863
      %v1348 = vpack.c.b16 %v868, %v864
      %v1349 = vpack.c.b16 %v869, %v865
      %v1350 = vpack.c.b16 %v874, %v870
      %v1351 = vpack.c.b16 %v875, %v871
      %v1352 = vpack.c.b16 %v876, %v872
      %v1353 = vpack.c.b16 %v877, %v873
      %v1354 = vpack.c.b16 %v882, %v878
      %v1355 = vpack.c.b16 %v883, %v879
      %v1356 = vpack.c.b16 %v884, %v880
      %v1357 = vpack.c.b16 %v885, %v881
      %v1358 = vpack.c.b16 %v890, %v886
      %v1359 = vpack.c.b16 %v891, %v887
      %v1360 = vpack.c.b16 %v892, %v888
      %v1361 = vpack.c.b16 %v893, %v889
      %v1362 = vpack.c.b16 %v898, %v894
      %v1363 = vpack.c.b16 %v899, %v895
      %v1364 = vpack.c.b16 %v900, %v896
      %v1365 = vpack.c.b16 %v901, %v897
      %v1366 = vpack.c.b16 %v906, %v902
      %v1367 = vpack.c.b16 %v907, %v903
      %v1368 = vpack.c.b16 %v908, %v904
      %v1369 = vpack.c.b16 %v909, %v905
      %v1370 = vpack.c.b16 %v914, %v910
      %v1371 = vpack.c.b16 %v915, %v911
      %v1372 = vpack.c.b16 %v916, %v912
      %v1373 = vpack.c.b16 %v917, %v913
      %v1374 = vpack.c.b16 %v922, %v918
      %v1375 = vpack.c.b16 %v923, %v919
      %v1376 = vpack.c.b16 %v924, %v920
      %v1377 = vpack.c.b16 %v925, %v921
      %v1378 = vpack.c.b16 %v930, %v926
      %v1379 = vpack.c.b16 %v931, %v927
      %v1380 = vpack.c.b16 %v932, %v928
      %v1381 = vpack.c.b16 %v933, %v929
      %v1382 = vpack.c.b16 %v938, %v934
      %v1383 = vpack.c.b16 %v939, %v935
      %v1384 = vpack.c.b16 %v940, %v936
      %v1385 = vpack.c.b16 %v941, %v937
      %v1386 = vpack.c.b16 %v946, %v942
      %v1387 = vpack.c.b16 %v947, %v943
      %v1388 = vpack.c.b16 %v948, %v944
      %v1389 = vpack.c.b16 %v949, %v945
      %v1390 = vpack.c.b16 %v954, %v950
      %v1391 = vpack.c.b16 %v955, %v951
      %v1392 = vpack.c.b16 %v956, %v952
      %v1393 = vpack.c.b16 %v957, %v953
      %v1394 = vpack.c.b16 %v962, %v958
      %v1395 = vpack.c.b16 %v963, %v959
      %v1396 = vpack.c.b16 %v964, %v960
      %v1397 = vpack.c.b16 %v965, %v961
      %v1398 = vpack.c.b16 %v970, %v966
      %v1399 = vpack.c.b16 %v971, %v967
      %v1400 = vpack.c.b16 %v972, %v968
      %v1401 = vpack.c.b16 %v973, %v969
      %v1402 = vpack.c.b16 %v978, %v974
      %v1403 = vpack.c.b16 %v979, %v975
      %v1404 = vpack.c.b16 %v980, %v976
      %v1405 = vpack.c.b16 %v981, %v977
      %v1406 = vpack.c.b16 %v986, %v982
      %v1407 = vpack.c.b16 %v987, %v983
      %v1408 = vpack.c.b16 %v988, %v984
      %v1409 = vpack.c.b16 %v989, %v985
      %v1410 = vpack.c.b16 %v994, %v990
      %v1411 = vpack.c.b16 %v995, %v991
      %v1412 = vpack.c.b16 %v996, %v992
      %v1413 = vpack.c.b16 %v997, %v993
      %v1414 = vpack.c.b16 %v1002, %v998
      %v1415 = vpack.c.b16 %v1003, %v999
      %v1416 = vpack.c.b16 %v1004, %v1000
      %v1417 = vpack.c.b16 %v1005, %v1001
      %v1418 = vpack.c.b16 %v1010, %v1006
      %v1419 = vpack.c.b16 %v1011, %v1007
      %v1420 = vpack.c.b16 %v1012, %v1008
      %v1421 = vpack.c.b16 %v1013, %v1009
      %v1422 = vpack.c.b16 %v1018, %v1014
      %v1423 = vpack.c.b16 %v1019, %v1015
      %v1424 = vpack.c.b16 %v1020, %v1016
      %v1425 = vpack.c.b16 %v1021, %v1017
      %v1426 = vpack.c.b16 %v1026, %v1022
      %v1427 = vpack.c.b16 %v1027, %v1023
      %v1428 = vpack.c.b16 %v1028, %v1024
      %v1429 = vpack.c.b16 %v1029, %v1025
      %v1430 = vpack.c.b16 %v1034, %v1030
      %v1431 = vpack.c.b16 %v1035, %v1031
      %v1432 = vpack.c.b16 %v1036, %v1032
      %v1433 = vpack.c.b16 %v1037, %v1033
      %v1434 = vpack.c.b16 %v1042, %v1038
      %v1435 = vpack.c.b16 %v1043, %v1039
      %v1436 = vpack.c.b16 %v1044, %v1040
      %v1437 = vpack.c.b16 %v1045, %v1041
      %v1438 = vpack.c.b16 %v1050, %v1046
      %v1439 = vpack.c.b16 %v1051, %v1047
      %v1440 = vpack.c.b16 %v1052, %v1048
      %v1441 = vpack.c.b16 %v1053, %v1049
      %v1442 = vpack.c.b16 %v1058, %v1054
      %v1443 = vpack.c.b16 %v1059, %v1055
      %v1444 = vpack.c.b16 %v1060, %v1056
      %v1445 = vpack.c.b16 %v1061, %v1057
      %v1446 = vpack.c.b16 %v1066, %v1062
      %v1447 = vpack.c.b16 %v1067, %v1063
      %v1448 = vpack.c.b16 %v1068, %v1064
      %v1449 = vpack.c.b16 %v1069, %v1065
      %v1450 = vpack.c.b16 %v1074, %v1070
      %v1451 = vpack.c.b16 %v1075, %v1071
      %v1452 = vpack.c.b16 %v1076, %v1072
      %v1453 = vpack.c.b16 %v1077, %v1073
      %v1454 = vpack.c.b16 %v1082, %v1078
      %v1455 = vpack.c.b16 %v1083, %v1079
      %v1456 = vpack.c.b16 %v1084, %v1080
      %v1457 = vpack.c.b16 %v1085, %v1081
      %v1458 = vpack.c.b16 %v1090, %v1086
      %v1459 = vpack.c.b16 %v1091, %v1087
      %v1460 = vpack.c.b16 %v1092, %v1088
      %v1461 = vpack.c.b16 %v1093, %v1089
      %v1462 = vpack.c.b16 %v1098, %v1094
      %v1463 = vpack.c.b16 %v1099, %v1095
      %v1464 = vpack.c.b16 %v1100, %v1096
      %v1465 = vpack.c.b16 %v1101, %v1097
      %v1466 = vpack.c.b16 %v1106, %v1102
      %v1467 = vpack.c.b16 %v1107, %v1103
      %v1468 = vpack.c.b16 %v1108, %v1104
      %v1469 = vpack.c.b16 %v1109, %v1105
      %v1470 = vpack.c.b16 %v1114, %v1110
      %v1471 = vpack.c.b16 %v1115, %v1111
      %v1472 = vpack.c.b16 %v1116, %v1112
      %v1473 = vpack.c.b16 %v1117, %v1113
      %v1474 = vpack.c.b16 %v1122, %v1118
      %v1475 = vpack.c.b16 %v1123, %v1119
      %v1476 = vpack.c.b16 %v1124, %v1120
      %v1477 = vpack.c.b16 %v1125, %v1121
      %v1478 = vpack.c.b16 %v1130, %v1126
      %v1479 = vpack.c.b16 %v1131, %v1127
      %v1480 = vpack.c.b16 %v1132, %v1128
      %v1481 = vpack.c.b16 %v1133, %v1129
      %v1482 = vpack.c.b16 %v1138, %v1134
      %v1483 = vpack.c.b16 %v1139, %v1135
      %v1484 = vpack.c.b16 %v1140, %v1136
      %v1485 = vpack.c.b16 %v1141, %v1137
      %v1486 = vpack.c.b16 %v1146, %v1142
      %v1487 = vpack.c.b16 %v1147, %v1143
      %v1488 = vpack.c.b16 %v1148, %v1144
      %v1489 = vpack.c.b16 %v1149, %v1145
      %v1490 = vpack.c.b16 %v1154, %v1150
      %v1491 = vpack.c.b16 %v1155, %v1151
      %v1492 = vpack.c.b16 %v1156, %v1152
      %v1493 = vpack.c.b16 %v1157, %v1153
      %v1494 = vpack.c.b16 %v1162, %v1158
      %v1495 = vpack.c.b16 %v1163, %v1159
      %v1496 = vpack.c.b16 %v1164, %v1160
      %v1497 = vpack.c.b16 %v1165, %v1161
      %v1498 = vpack.c.b16 %v1170, %v1166
      %v1499 = vpack.c.b16 %v1171, %v1167
      %v1500 = vpack.c.b16 %v1172, %v1168
      %v1501 = vpack.c.b16 %v1173, %v1169
      %v1502 = vpack.c.b16 %v1178, %v1174
      %v1503 = vpack.c.b16 %v1179, %v1175
      %v1504 = vpack.c.b16 %v1180, %v1176
      %v1505 = vpack.c.b16 %v1181, %v1177
      %v1506 = vpack.c.b16 %v1186, %v1182
      %v1507 = vpack.c.b16 %v1187, %v1183
      %v1508 = vpack.c.b16 %v1188, %v1184
      %v1509 = vpack.c.b16 %v1189, %v1185
      %v1510 = vpack.c.b16 %v1194, %v1190
      %v1511 = vpack.c.b16 %v1195, %v1191
      %v1512 = vpack.c.b16 %v1196, %v1192
      %v1513 = vpack.c.b16 %v1197, %v1193
      %v1514 = vpack.c.b16 %v1202, %v1198
      %v1515 = vpack.c.b16 %v1203, %v1199
      %v1516 = vpack.c.b16 %v1204, %v1200
      %v1517 = vpack.c.b16 %v1205, %v1201
      %v1518 = vpack.c.b16 %v1210, %v1206
      %v1519 = vpack.c.b16 %v1211, %v1207
      %v1520 = vpack.c.b16 %v1212, %v1208
      %v1521 = vpack.c.b16 %v1213, %v1209
      %v1522 = vpack.c.b16 %v1218, %v1214
      %v1523 = vpack.c.b16 %v1219, %v1215
      %v1524 = vpack.c.b16 %v1220, %v1216
      %v1525 = vpack.c.b16 %v1221, %v1217
      %v1526 = vpack.c.b16 %v1226, %v1222
      %v1527 = vpack.c.b16 %v1227, %v1223
      %v1528 = vpack.c.b16 %v1228, %v1224
      %v1529 = vpack.c.b16 %v1229, %v1225
      %v1530 = vpack.c.b16 %v1234, %v1230
      %v1531 = vpack.c.b16 %v1235, %v1231
      %v1532 = vpack.c.b16 %v1236, %v1232
      %v1533 = vpack.c.b16 %v1237, %v1233
      %v1534 = vpack.c.b16 %v1242, %v1238
      %v1535 = vpack.c.b16 %v1243, %v1239
      %v1536 = vpack.c.b16 %v1244, %v1240
      %v1537 = vpack.c.b16 %v1245, %v1241
      %v1538 = vpack.c.b16 %v1250, %v1246
      %v1539 = vpack.c.b16 %v1251, %v1247
      %v1540 = vpack.c.b16 %v1252, %v1248
      %v1541 = vpack.c.b16 %v1253, %v1249
      %v1542 = vpack.c.b16 %v1258, %v1254
      %v1543 = vpack.c.b16 %v1259, %v1255
      %v1544 = vpack.c.b16 %v1260, %v1256
      %v1545 = vpack.c.b16 %v1261, %v1257
      %v1546 = vpack.c.b16 %v1266, %v1262
      %v1547 = vpack.c.b16 %v1267, %v1263
      %v1548 = vpack.c.b16 %v1268, %v1264
      %v1549 = vpack.c.b16 %v1269, %v1265
      %v1550 = vpack.c.b16 %v1274, %v1270
      %v1551 = vpack.c.b16 %v1275, %v1271
      %v1552 = vpack.c.b16 %v1276, %v1272
      %v1553 = vpack.c.b16 %v1277, %v1273
      %v1554 = vpack.c.b16 %v1282, %v1278
      %v1555 = vpack.c.b16 %v1283, %v1279
      %v1556 = vpack.c.b16 %v1284, %v1280
      %v1557 = vpack.c.b16 %v1285, %v1281
      %v1558 = vpack.c.b16 %v1290, %v1286
      %v1559 = vpack.c.b16 %v1291, %v1287
      %v1560 = vpack.c.b16 %v1292, %v1288
      %v1561 = vpack.c.b16 %v1293, %v1289
      %v1562 = vpack.c.b16 %v1298, %v1294
      %v1563 = vpack.c.b16 %v1299, %v1295
      %v1564 = vpack.c.b16 %v1300, %v1296
      %v1565 = vpack.c.b16 %v1301, %v1297
      %v1566 = vpack.c.b16 %v1306, %v1302
      %v1567 = vpack.c.b16 %v1307, %v1303
      %v1568 = vpack.c.b16 %v1308, %v1304
      %v1569 = vpack.c.b16 %v1309, %v1305
      %v1570 = vpack.c.b16 %v1314, %v1310
      %v1571 = vpack.c.b16 %v1315, %v1311
      %v1572 = vpack.c.b16 %v1316, %v1312
      %v1573 = vpack.c.b16 %v1317, %v1313
      %1830 = vmatprep.subr.bf16.mxu0 %v1347
      %1831 = vmatpush1.bf16.msra.mxu0 %v1346
      %1832 = vmatprep.subr.bf16.mxu0 %v1343
      %1833 = vmatpush1.bf16.msra.mxu0 %v1342
      %1834 = vmatprep.subr.bf16.mxu0 %v1339
      %1835 = vmatpush1.bf16.msra.mxu0 %v1338
      %1836 = vmatprep.subr.bf16.mxu0 %v1335
      %1837 = vmatpush1.bf16.msra.mxu0 %v1334
      %1838 = vmatprep.subr.bf16.mxu0 %v1331
      %1839 = vmatpush1.bf16.msra.mxu0 %v1330
      %1840 = vmatprep.subr.bf16.mxu0 %v1327
      %1841 = vmatpush1.bf16.msra.mxu0 %v1326
      %1842 = vmatprep.subr.bf16.mxu0 %v1323
      %1843 = vmatpush1.bf16.msra.mxu0 %v1322
      %1844 = vmatprep.subr.bf16.mxu0 %v1319
      %1845 = vmatpush1.bf16.msra.mxu0 %v1318
      %1846 = vmatprep.subr.bf16.mxu0 %v1379
      %1847 = vmatpush2.bf16.msra.mxu0 %v1378
      %1848 = vmatprep.subr.bf16.mxu0 %v1375
      %1849 = vmatpush2.bf16.msra.mxu0 %v1374
      %1850 = vmatprep.subr.bf16.mxu0 %v1371
      %1851 = vmatpush2.bf16.msra.mxu0 %v1370
      %1852 = vmatprep.subr.bf16.mxu0 %v1367
      %1853 = vmatpush2.bf16.msra.mxu0 %v1366
      %1854 = vmatprep.subr.bf16.mxu0 %v1363
      %1855 = vmatpush2.bf16.msra.mxu0 %v1362
      %1856 = vmatprep.subr.bf16.mxu0 %v1359
      %1857 = vmatpush2.bf16.msra.mxu0 %v1358
      %1858 = vmatprep.subr.bf16.mxu0 %v1355
      %1859 = vmatpush2.bf16.msra.mxu0 %v1354
      %1860 = vmatprep.subr.bf16.mxu0 %v1351
      %1861 = vmatpush2.bf16.msra.mxu0 %v1350
      %1862 = vmatprep.mubr.bf16.mxu0 %v198
      %1863 = vmatmul.mubr.bf16.gmra.mxu0 %v197
      %v1864 = vpop.f32.mrf.mxu0
      %v1865 = vadd.f32 0.0, %v1864
      %v1866 = vpop.f32.mrf.mxu0
      %v1867 = vadd.f32 0.0, %v1866
      %v1868 = vpop.f32.mrf.mxu0
      %v1869 = vadd.f32 0.0, %v1868
      %v1870 = vpop.f32.mrf.mxu0
      %v1871 = vadd.f32 0.0, %v1870
      %1872 = vmatprep.mubr.bf16.mxu0 %v200
      %1873 = vmatmul.mubr.bf16.gmra.mxu0 %v199
      %v1874 = vpop.f32.mrf.mxu0
      %v1875 = vadd.f32 0.0, %v1874
      %v1876 = vpop.f32.mrf.mxu0
      %v1877 = vadd.f32 0.0, %v1876
      %v1878 = vpop.f32.mrf.mxu0
      %v1879 = vadd.f32 0.0, %v1878
      %v1880 = vpop.f32.mrf.mxu0
      %v1881 = vadd.f32 0.0, %v1880
      %1882 = vdwg.mxu0
      %1883 = vmatprep.subr.bf16.mxu0 %v1411
      %1884 = vmatpush1.bf16.msra.mxu0 %v1410
      %1885 = vmatprep.subr.bf16.mxu0 %v1407
      %1886 = vmatpush1.bf16.msra.mxu0 %v1406
      %1887 = vmatprep.subr.bf16.mxu0 %v1403
      %1888 = vmatpush1.bf16.msra.mxu0 %v1402
      %1889 = vmatprep.subr.bf16.mxu0 %v1399
      %1890 = vmatpush1.bf16.msra.mxu0 %v1398
      %1891 = vmatprep.subr.bf16.mxu0 %v1395
      %1892 = vmatpush1.bf16.msra.mxu0 %v1394
      %1893 = vmatprep.subr.bf16.mxu0 %v1391
      %1894 = vmatpush1.bf16.msra.mxu0 %v1390
      %1895 = vmatprep.subr.bf16.mxu0 %v1387
      %1896 = vmatpush1.bf16.msra.mxu0 %v1386
      %1897 = vmatprep.subr.bf16.mxu0 %v1383
      %1898 = vmatpush1.bf16.msra.mxu0 %v1382
      %1899 = vmatprep.subr.bf16.mxu0 %v1443
      %1900 = vmatpush2.bf16.msra.mxu0 %v1442
      %1901 = vmatprep.subr.bf16.mxu0 %v1439
      %1902 = vmatpush2.bf16.msra.mxu0 %v1438
      %1903 = vmatprep.subr.bf16.mxu0 %v1435
      %1904 = vmatpush2.bf16.msra.mxu0 %v1434
      %1905 = vmatprep.subr.bf16.mxu0 %v1431
      %1906 = vmatpush2.bf16.msra.mxu0 %v1430
      %1907 = vmatprep.subr.bf16.mxu0 %v1427
      %1908 = vmatpush2.bf16.msra.mxu0 %v1426
      %1909 = vmatprep.subr.bf16.mxu0 %v1423
      %1910 = vmatpush2.bf16.msra.mxu0 %v1422
      %1911 = vmatprep.subr.bf16.mxu0 %v1419
      %1912 = vmatpush2.bf16.msra.mxu0 %v1418
      %1913 = vmatprep.subr.bf16.mxu0 %v1415
      %1914 = vmatpush2.bf16.msra.mxu0 %v1414
      %1915 = vmatprep.mubr.bf16.mxu0 %v229
      %1916 = vmatmul.mubr.bf16.gmra.mxu0 %v217
      %v1917 = vpop.f32.mrf.mxu0
      %v1918 = vadd.f32 %v1865, %v1917
      %v1919 = vpop.f32.mrf.mxu0
      %v1920 = vadd.f32 %v1867, %v1919
      %v1921 = vpop.f32.mrf.mxu0
      %v1922 = vadd.f32 %v1869, %v1921
      %v1923 = vpop.f32.mrf.mxu0
      %v1924 = vadd.f32 %v1871, %v1923
      %1925 = vmatprep.mubr.bf16.mxu0 %v235
      %1926 = vmatmul.mubr.bf16.gmra.mxu0 %v232
      %v1927 = vpop.f32.mrf.mxu0
      %v1928 = vadd.f32 %v1875, %v1927
      %v1929 = vpop.f32.mrf.mxu0
      %v1930 = vadd.f32 %v1877, %v1929
      %v1931 = vpop.f32.mrf.mxu0
      %v1932 = vadd.f32 %v1879, %v1931
      %v1933 = vpop.f32.mrf.mxu0
      %v1934 = vadd.f32 %v1881, %v1933
      %1935 = vdwg.mxu0
      %1936 = vmatprep.subr.bf16.mxu0 %v1475
      %1937 = vmatpush1.bf16.msra.mxu0 %v1474
      %1938 = vmatprep.subr.bf16.mxu0 %v1471
      %1939 = vmatpush1.bf16.msra.mxu0 %v1470
      %1940 = vmatprep.subr.bf16.mxu0 %v1467
      %1941 = vmatpush1.bf16.msra.mxu0 %v1466
      %1942 = vmatprep.subr.bf16.mxu0 %v1463
      %1943 = vmatpush1.bf16.msra.mxu0 %v1462
      %1944 = vmatprep.subr.bf16.mxu0 %v1459
      %1945 = vmatpush1.bf16.msra.mxu0 %v1458
      %1946 = vmatprep.subr.bf16.mxu0 %v1455
      %1947 = vmatpush1.bf16.msra.mxu0 %v1454
      %1948 = vmatprep.subr.bf16.mxu0 %v1451
      %1949 = vmatpush1.bf16.msra.mxu0 %v1450
      %1950 = vmatprep.subr.bf16.mxu0 %v1447
      %1951 = vmatpush1.bf16.msra.mxu0 %v1446
      %1952 = vmatprep.subr.bf16.mxu0 %v1507
      %1953 = vmatpush2.bf16.msra.mxu0 %v1506
      %1954 = vmatprep.subr.bf16.mxu0 %v1503
      %1955 = vmatpush2.bf16.msra.mxu0 %v1502
      %1956 = vmatprep.subr.bf16.mxu0 %v1499
      %1957 = vmatpush2.bf16.msra.mxu0 %v1498
      %1958 = vmatprep.subr.bf16.mxu0 %v1495
      %1959 = vmatpush2.bf16.msra.mxu0 %v1494
      %1960 = vmatprep.subr.bf16.mxu0 %v1491
      %1961 = vmatpush2.bf16.msra.mxu0 %v1490
      %1962 = vmatprep.subr.bf16.mxu0 %v1487
      %1963 = vmatpush2.bf16.msra.mxu0 %v1486
      %1964 = vmatprep.subr.bf16.mxu0 %v1483
      %1965 = vmatpush2.bf16.msra.mxu0 %v1482
      %1966 = vmatprep.subr.bf16.mxu0 %v1479
      %1967 = vmatpush2.bf16.msra.mxu0 %v1478
      %1968 = vmatprep.mubr.bf16.mxu0 %v253
      %1969 = vmatmul.mubr.bf16.gmra.mxu0 %v252
      %v1970 = vpop.f32.mrf.mxu0
      %v1971 = vadd.f32 %v1918, %v1970
      %v1972 = vpop.f32.mrf.mxu0
      %v1973 = vadd.f32 %v1920, %v1972
      %v1974 = vpop.f32.mrf.mxu0
      %v1975 = vadd.f32 %v1922, %v1974
      %v1976 = vpop.f32.mrf.mxu0
      %v1977 = vadd.f32 %v1924, %v1976
      %1978 = vmatprep.mubr.bf16.mxu0 %v255
      %1979 = vmatmul.mubr.bf16.gmra.mxu0 %v254
      %v1980 = vpop.f32.mrf.mxu0
      %v1981 = vadd.f32 %v1928, %v1980
      %v1982 = vpop.f32.mrf.mxu0
      %v1983 = vadd.f32 %v1930, %v1982
      %v1984 = vpop.f32.mrf.mxu0
      %v1985 = vadd.f32 %v1932, %v1984
      %v1986 = vpop.f32.mrf.mxu0
      %v1987 = vadd.f32 %v1934, %v1986
      %1988 = vdwg.mxu0
      %1989 = vmatprep.subr.bf16.mxu0 %v1539
      %1990 = vmatpush1.bf16.msra.mxu0 %v1538
      %1991 = vmatprep.subr.bf16.mxu0 %v1535
      %1992 = vmatpush1.bf16.msra.mxu0 %v1534
      %1993 = vmatprep.subr.bf16.mxu0 %v1531
      %1994 = vmatpush1.bf16.msra.mxu0 %v1530
      %1995 = vmatprep.subr.bf16.mxu0 %v1527
      %1996 = vmatpush1.bf16.msra.mxu0 %v1526
      %1997 = vmatprep.subr.bf16.mxu0 %v1523
      %1998 = vmatpush1.bf16.msra.mxu0 %v1522
      %1999 = vmatprep.subr.bf16.mxu0 %v1519
      %2000 = vmatpush1.bf16.msra.mxu0 %v1518
      %2001 = vmatprep.subr.bf16.mxu0 %v1515
      %2002 = vmatpush1.bf16.msra.mxu0 %v1514
      %2003 = vmatprep.subr.bf16.mxu0 %v1511
      %2004 = vmatpush1.bf16.msra.mxu0 %v1510
      %2005 = vmatprep.subr.bf16.mxu0 %v1571
      %2006 = vmatpush2.bf16.msra.mxu0 %v1570
      %2007 = vmatprep.subr.bf16.mxu0 %v1567
      %2008 = vmatpush2.bf16.msra.mxu0 %v1566
      %2009 = vmatprep.subr.bf16.mxu0 %v1563
      %2010 = vmatpush2.bf16.msra.mxu0 %v1562
      %2011 = vmatprep.subr.bf16.mxu0 %v1559
      %2012 = vmatpush2.bf16.msra.mxu0 %v1558
      %2013 = vmatprep.subr.bf16.mxu0 %v1555
      %2014 = vmatpush2.bf16.msra.mxu0 %v1554
      %2015 = vmatprep.subr.bf16.mxu0 %v1551
      %2016 = vmatpush2.bf16.msra.mxu0 %v1550
      %2017 = vmatprep.subr.bf16.mxu0 %v1547
      %2018 = vmatpush2.bf16.msra.mxu0 %v1546
      %2019 = vmatprep.subr.bf16.mxu0 %v1543
      %2020 = vmatpush2.bf16.msra.mxu0 %v1542
      %2021 = vmatprep.mubr.bf16.mxu0 %v283
      %2022 = vmatmul.mubr.bf16.gmra.mxu0 %v271
      %v2023 = vpop.f32.mrf.mxu0
      %v2024 = vadd.f32 %v1971, %v2023
      %v2025 = vpop.f32.mrf.mxu0
      %v2026 = vadd.f32 %v1973, %v2025
      %v2027 = vpop.f32.mrf.mxu0
      %v2028 = vadd.f32 %v1975, %v2027
      %v2029 = vpop.f32.mrf.mxu0
      %v2030 = vadd.f32 %v1977, %v2029
      %2031 = vmatprep.mubr.bf16.mxu0 %v289
      %2032 = vmatmul.mubr.bf16.gmra.mxu0 %v286
      %v2033 = vpop.f32.mrf.mxu0
      %v2034 = vadd.f32 %v1981, %v2033
      %v2035 = vpop.f32.mrf.mxu0
      %v2036 = vadd.f32 %v1983, %v2035
      %v2037 = vpop.f32.mrf.mxu0
      %v2038 = vadd.f32 %v1985, %v2037
      %v2039 = vpop.f32.mrf.mxu0
      %v2040 = vadd.f32 %v1987, %v2039
      %2041 = vdwg.mxu0
      %2042 = vmatprep.subr.bf16.mxu0 %v1349
      %2043 = vmatpush1.bf16.msra.mxu0 %v1348
      %2044 = vmatprep.subr.bf16.mxu0 %v1345
      %2045 = vmatpush1.bf16.msra.mxu0 %v1344
      %2046 = vmatprep.subr.bf16.mxu0 %v1341
      %2047 = vmatpush1.bf16.msra.mxu0 %v1340
      %2048 = vmatprep.subr.bf16.mxu0 %v1337
      %2049 = vmatpush1.bf16.msra.mxu0 %v1336
      %2050 = vmatprep.subr.bf16.mxu0 %v1333
      %2051 = vmatpush1.bf16.msra.mxu0 %v1332
      %2052 = vmatprep.subr.bf16.mxu0 %v1329
      %2053 = vmatpush1.bf16.msra.mxu0 %v1328
      %2054 = vmatprep.subr.bf16.mxu0 %v1325
      %2055 = vmatpush1.bf16.msra.mxu0 %v1324
      %2056 = vmatprep.subr.bf16.mxu0 %v1321
      %2057 = vmatpush1.bf16.msra.mxu0 %v1320
      %2058 = vmatprep.subr.bf16.mxu0 %v1381
      %2059 = vmatpush2.bf16.msra.mxu0 %v1380
      %2060 = vmatprep.subr.bf16.mxu0 %v1377
      %2061 = vmatpush2.bf16.msra.mxu0 %v1376
      %2062 = vmatprep.subr.bf16.mxu0 %v1373
      %2063 = vmatpush2.bf16.msra.mxu0 %v1372
      %2064 = vmatprep.subr.bf16.mxu0 %v1369
      %2065 = vmatpush2.bf16.msra.mxu0 %v1368
      %2066 = vmatprep.subr.bf16.mxu0 %v1365
      %2067 = vmatpush2.bf16.msra.mxu0 %v1364
      %2068 = vmatprep.subr.bf16.mxu0 %v1361
      %2069 = vmatpush2.bf16.msra.mxu0 %v1360
      %2070 = vmatprep.subr.bf16.mxu0 %v1357
      %2071 = vmatpush2.bf16.msra.mxu0 %v1356
      %2072 = vmatprep.subr.bf16.mxu0 %v1353
      %2073 = vmatpush2.bf16.msra.mxu0 %v1352
      %2074 = vmatprep.mubr.bf16.mxu0 %v198
      %2075 = vmatmul.mubr.bf16.gmra.mxu0 %v197
      %v2076 = vpop.f32.mrf.mxu0
      %v2077 = vadd.f32 0.0, %v2076
      %v2078 = vpop.f32.mrf.mxu0
      %v2079 = vadd.f32 0.0, %v2078
      %v2080 = vpop.f32.mrf.mxu0
      %v2081 = vadd.f32 0.0, %v2080
      %v2082 = vpop.f32.mrf.mxu0
      %v2083 = vadd.f32 0.0, %v2082
      %2084 = vmatprep.mubr.bf16.mxu0 %v200
      %2085 = vmatmul.mubr.bf16.gmra.mxu0 %v199
      %v2086 = vpop.f32.mrf.mxu0
      %v2087 = vadd.f32 0.0, %v2086
      %v2088 = vpop.f32.mrf.mxu0
      %v2089 = vadd.f32 0.0, %v2088
      %v2090 = vpop.f32.mrf.mxu0
      %v2091 = vadd.f32 0.0, %v2090
      %v2092 = vpop.f32.mrf.mxu0
      %v2093 = vadd.f32 0.0, %v2092
      %2094 = vdwg.mxu0
      %2095 = vmatprep.subr.bf16.mxu0 %v1413
      %2096 = vmatpush1.bf16.msra.mxu0 %v1412
      %2097 = vmatprep.subr.bf16.mxu0 %v1409
      %2098 = vmatpush1.bf16.msra.mxu0 %v1408
      %2099 = vmatprep.subr.bf16.mxu0 %v1405
      %2100 = vmatpush1.bf16.msra.mxu0 %v1404
      %2101 = vmatprep.subr.bf16.mxu0 %v1401
      %2102 = vmatpush1.bf16.msra.mxu0 %v1400
      %2103 = vmatprep.subr.bf16.mxu0 %v1397
      %2104 = vmatpush1.bf16.msra.mxu0 %v1396
      %2105 = vmatprep.subr.bf16.mxu0 %v1393
      %2106 = vmatpush1.bf16.msra.mxu0 %v1392
      %2107 = vmatprep.subr.bf16.mxu0 %v1389
      %2108 = vmatpush1.bf16.msra.mxu0 %v1388
      %2109 = vmatprep.subr.bf16.mxu0 %v1385
      %2110 = vmatpush1.bf16.msra.mxu0 %v1384
      %2111 = vmatprep.subr.bf16.mxu0 %v1445
      %2112 = vmatpush2.bf16.msra.mxu0 %v1444
      %2113 = vmatprep.subr.bf16.mxu0 %v1441
      %2114 = vmatpush2.bf16.msra.mxu0 %v1440
      %2115 = vmatprep.subr.bf16.mxu0 %v1437
      %2116 = vmatpush2.bf16.msra.mxu0 %v1436
      %2117 = vmatprep.subr.bf16.mxu0 %v1433
      %2118 = vmatpush2.bf16.msra.mxu0 %v1432
      %2119 = vmatprep.subr.bf16.mxu0 %v1429
      %2120 = vmatpush2.bf16.msra.mxu0 %v1428
      %2121 = vmatprep.subr.bf16.mxu0 %v1425
      %2122 = vmatpush2.bf16.msra.mxu0 %v1424
      %2123 = vmatprep.subr.bf16.mxu0 %v1421
      %2124 = vmatpush2.bf16.msra.mxu0 %v1420
      %2125 = vmatprep.subr.bf16.mxu0 %v1417
      %2126 = vmatpush2.bf16.msra.mxu0 %v1416
      %2127 = vmatprep.mubr.bf16.mxu0 %v229
      %2128 = vmatmul.mubr.bf16.gmra.mxu0 %v217
      %v2129 = vpop.f32.mrf.mxu0
      %v2130 = vadd.f32 %v2077, %v2129
      %v2131 = vpop.f32.mrf.mxu0
      %v2132 = vadd.f32 %v2079, %v2131
      %v2133 = vpop.f32.mrf.mxu0
      %v2134 = vadd.f32 %v2081, %v2133
      %v2135 = vpop.f32.mrf.mxu0
      %v2136 = vadd.f32 %v2083, %v2135
      %2137 = vmatprep.mubr.bf16.mxu0 %v235
      %2138 = vmatmul.mubr.bf16.gmra.mxu0 %v232
      %v2139 = vpop.f32.mrf.mxu0
      %v2140 = vadd.f32 %v2087, %v2139
      %v2141 = vpop.f32.mrf.mxu0
      %v2142 = vadd.f32 %v2089, %v2141
      %v2143 = vpop.f32.mrf.mxu0
      %v2144 = vadd.f32 %v2091, %v2143
      %v2145 = vpop.f32.mrf.mxu0
      %v2146 = vadd.f32 %v2093, %v2145
      %2147 = vdwg.mxu0
      %2148 = vmatprep.subr.bf16.mxu0 %v1477
      %2149 = vmatpush1.bf16.msra.mxu0 %v1476
      %2150 = vmatprep.subr.bf16.mxu0 %v1473
      %2151 = vmatpush1.bf16.msra.mxu0 %v1472
      %2152 = vmatprep.subr.bf16.mxu0 %v1469
      %2153 = vmatpush1.bf16.msra.mxu0 %v1468
      %2154 = vmatprep.subr.bf16.mxu0 %v1465
      %2155 = vmatpush1.bf16.msra.mxu0 %v1464
      %2156 = vmatprep.subr.bf16.mxu0 %v1461
      %2157 = vmatpush1.bf16.msra.mxu0 %v1460
      %2158 = vmatprep.subr.bf16.mxu0 %v1457
      %2159 = vmatpush1.bf16.msra.mxu0 %v1456
      %2160 = vmatprep.subr.bf16.mxu0 %v1453
      %2161 = vmatpush1.bf16.msra.mxu0 %v1452
      %2162 = vmatprep.subr.bf16.mxu0 %v1449
      %2163 = vmatpush1.bf16.msra.mxu0 %v1448
      %2164 = vmatprep.subr.bf16.mxu0 %v1509
      %2165 = vmatpush2.bf16.msra.mxu0 %v1508
      %2166 = vmatprep.subr.bf16.mxu0 %v1505
      %2167 = vmatpush2.bf16.msra.mxu0 %v1504
      %2168 = vmatprep.subr.bf16.mxu0 %v1501
      %2169 = vmatpush2.bf16.msra.mxu0 %v1500
      %2170 = vmatprep.subr.bf16.mxu0 %v1497
      %2171 = vmatpush2.bf16.msra.mxu0 %v1496
      %2172 = vmatprep.subr.bf16.mxu0 %v1493
      %2173 = vmatpush2.bf16.msra.mxu0 %v1492
      %2174 = vmatprep.subr.bf16.mxu0 %v1489
      %2175 = vmatpush2.bf16.msra.mxu0 %v1488
      %2176 = vmatprep.subr.bf16.mxu0 %v1485
      %2177 = vmatpush2.bf16.msra.mxu0 %v1484
      %2178 = vmatprep.subr.bf16.mxu0 %v1481
      %2179 = vmatpush2.bf16.msra.mxu0 %v1480
      %2180 = vmatprep.mubr.bf16.mxu0 %v253
      %2181 = vmatmul.mubr.bf16.gmra.mxu0 %v252
      %v2182 = vpop.f32.mrf.mxu0
      %v2183 = vadd.f32 %v2130, %v2182
      %v2184 = vpop.f32.mrf.mxu0
      %v2185 = vadd.f32 %v2132, %v2184
      %v2186 = vpop.f32.mrf.mxu0
      %v2187 = vadd.f32 %v2134, %v2186
      %v2188 = vpop.f32.mrf.mxu0
      %v2189 = vadd.f32 %v2136, %v2188
      %2190 = vmatprep.mubr.bf16.mxu0 %v255
      %2191 = vmatmul.mubr.bf16.gmra.mxu0 %v254
      %v2192 = vpop.f32.mrf.mxu0
      %v2193 = vadd.f32 %v2140, %v2192
      %v2194 = vpop.f32.mrf.mxu0
      %v2195 = vadd.f32 %v2142, %v2194
      %v2196 = vpop.f32.mrf.mxu0
      %v2197 = vadd.f32 %v2144, %v2196
      %v2198 = vpop.f32.mrf.mxu0
      %v2199 = vadd.f32 %v2146, %v2198
      %2200 = vdwg.mxu0
      %2201 = vmatprep.subr.bf16.mxu0 %v1541
      %2202 = vmatpush1.bf16.msra.mxu0 %v1540
      %2203 = vmatprep.subr.bf16.mxu0 %v1537
      %2204 = vmatpush1.bf16.msra.mxu0 %v1536
      %2205 = vmatprep.subr.bf16.mxu0 %v1533
      %2206 = vmatpush1.bf16.msra.mxu0 %v1532
      %2207 = vmatprep.subr.bf16.mxu0 %v1529
      %2208 = vmatpush1.bf16.msra.mxu0 %v1528
      %2209 = vmatprep.subr.bf16.mxu0 %v1525
      %2210 = vmatpush1.bf16.msra.mxu0 %v1524
      %2211 = vmatprep.subr.bf16.mxu0 %v1521
      %2212 = vmatpush1.bf16.msra.mxu0 %v1520
      %2213 = vmatprep.subr.bf16.mxu0 %v1517
      %2214 = vmatpush1.bf16.msra.mxu0 %v1516
      %2215 = vmatprep.subr.bf16.mxu0 %v1513
      %2216 = vmatpush1.bf16.msra.mxu0 %v1512
      %2217 = vmatprep.subr.bf16.mxu0 %v1573
      %2218 = vmatpush2.bf16.msra.mxu0 %v1572
      %2219 = vmatprep.subr.bf16.mxu0 %v1569
      %2220 = vmatpush2.bf16.msra.mxu0 %v1568
      %2221 = vmatprep.subr.bf16.mxu0 %v1565
      %2222 = vmatpush2.bf16.msra.mxu0 %v1564
      %2223 = vmatprep.subr.bf16.mxu0 %v1561
      %2224 = vmatpush2.bf16.msra.mxu0 %v1560
      %2225 = vmatprep.subr.bf16.mxu0 %v1557
      %2226 = vmatpush2.bf16.msra.mxu0 %v1556
      %2227 = vmatprep.subr.bf16.mxu0 %v1553
      %2228 = vmatpush2.bf16.msra.mxu0 %v1552
      %2229 = vmatprep.subr.bf16.mxu0 %v1549
      %2230 = vmatpush2.bf16.msra.mxu0 %v1548
      %2231 = vmatprep.subr.bf16.mxu0 %v1545
      %2232 = vmatpush2.bf16.msra.mxu0 %v1544
      %2233 = vmatprep.mubr.bf16.mxu0 %v283
      %2234 = vmatmul.mubr.bf16.gmra.mxu0 %v271
      %v2235 = vpop.f32.mrf.mxu0
      %v2236 = vadd.f32 %v2183, %v2235
      %v2237 = vpop.f32.mrf.mxu0
      %v2238 = vadd.f32 %v2185, %v2237
      %v2239 = vpop.f32.mrf.mxu0
      %v2240 = vadd.f32 %v2187, %v2239
      %v2241 = vpop.f32.mrf.mxu0
      %v2242 = vadd.f32 %v2189, %v2241
      %2243 = vmatprep.mubr.bf16.mxu0 %v289
      %2244 = vmatmul.mubr.bf16.gmra.mxu0 %v286
      %v2245 = vpop.f32.mrf.mxu0
      %v2246 = vadd.f32 %v2193, %v2245
      %v2247 = vpop.f32.mrf.mxu0
      %v2248 = vadd.f32 %v2195, %v2247
      %v2249 = vpop.f32.mrf.mxu0
      %v2250 = vadd.f32 %v2197, %v2249
      %v2251 = vpop.f32.mrf.mxu0
      %v2252 = vadd.f32 %v2199, %v2251
      %2253 = vdwg.mxu0
      %v2254 = vmax.f32 %v2024, %v2026
      %v2255 = vmax.f32 %v2028, %v2030
      %v2256 = vmax.f32 %v2034, %v2036
      %v2257 = vmax.f32 %v2038, %v2040
      %v2258 = vmax.f32 %v2254, %v2236
      %v2259 = vmax.f32 %v2255, %v2240
      %v2260 = vmax.f32 %v2256, %v2246
      %v2261 = vmax.f32 %v2257, %v2250
      %v2262 = vmax.f32 %v2258, %v2238
      %v2263 = vmax.f32 %v2259, %v2242
      %v2264 = vmax.f32 %v2260, %v2248
      %v2265 = vmax.f32 %v2261, %v2252
      %v2266 = vld [vmem:[%s2] sm:$0x1]
      %v2268 = vlaneseq
      %v2269 = vshrl.u32 %v2268, 7
      %v2270 = vsub.s32 0, %v2269
      %v2271 = vrot.slane %v2266, %v2270
      %v2273 = vadd.f32 %v2262, %v2271
      %v2274 = vadd.f32 %v2263, %v2271
      %v2275 = vadd.f32 %v2264, %v2271
      %v2276 = vadd.f32 %v2265, %v2271
      %v2277 = vmax.f32 %v2273, 0.0
      %v2278 = vmax.f32 %v2274, 0.0
      %v2279 = vmax.f32 %v2275, 0.0
      %v2280 = vmax.f32 %v2276, 0.0
      %v2281 = vpack.c.bf16 %v2278, %v2277
      %v2282 = vpack.c.bf16 %v2280, %v2279
      %v2285 = vunpack.c.l.b16 %v2281
      %v2286 = vunpack.c.h.b16 %v2281
      %v2287 = vunpack.c.l.b16 %v2282
      %v2288 = vunpack.c.h.b16 %v2282
      %v2289 = vpack.c.b16 %v2285, %v2285
      %v2290 = vpack.c.b16 %v2286, %v2286
      %v2291 = vpack.c.b16 %v2287, %v2287
      %v2292 = vpack.c.b16 %v2288, %v2288
      %2297 = vst [vmem:[%s175] sm:$0xf] %v2289
      %2298 = vst [vmem:[%s175 + $0x4] sm:$0xf] %v2290
      %2299 = vst [vmem:[%s175 + $0x8] sm:$0xf] %v2291
      %vm2300 = vcmask 1043456
      %vm2301 = vsmask.f32 3328
      %vm2302 = vmand %vm2300, %vm2301
      %v2303 = vld [vmem:[%s175 + $0xc] sm:$0xf]
      %v2304 = vsel %vm2302, %v2292, %v2303
      %2305 = vst [vmem:[%s175 + $0xc] sm:$0xf] %v2304
      %s2306 = smul.u32 5, %s14
      %p2307 = scmp.lt.s32.totalorder %s2306, 9
      %s2308 = scalar_select %p2307, %s2306, 9
      %s2309 = smul.addr %s2308, 4
      %s2310 = scalar_lea.vmem %s3, %s2309
      // Predicated region
      $region33: #{simple_cnn_forward.4} parent=31 // pred_check
        %p2311 = pneg %p100
      $region34: #{simple_cnn_forward.4} parent=31 // pred_check_branch
        %2313 = sbr.rel (%p2311) target = $region36
      $region35: #{simple_cnn_forward.4} parent=31 // pred_region
        %s2314 = smul.u32 5, %s14
      $region36: #{simple_cnn_forward.4} parent=31 // pred_fallthru
        _
    $region32: #{simple_cnn_forward.4} parent=5 // pred_fallthru
      _
    %p2315 = scmp.le.s32.totalorder 2, %s9
    // Predicated region
    $region37: #{simple_cnn_forward.4} parent=5 // pred_check
      %p2316 = pneg %p2315
    $region38: #{simple_cnn_forward.4} parent=5 // pred_check_branch
      %2318 = sbr.rel (%p2316) target = $region40
    $region39: #{simple_cnn_forward.4} parent=5 // pred_region
      %s2319 = ssub.s32 %s9, 2
      // Predicated region
      $region41: #{simple_cnn_forward.4} parent=39 // pred_check
        %p2320 = pneg %p106
      $region42: #{simple_cnn_forward.4} parent=39 // pred_check_branch
        %2322 = sbr.rel (%p2320) target = $region44
      $region43: #{simple_cnn_forward.4} parent=39 // pred_region
        %s2323 = smul.u32 5, %s15
        %p2324 = scmp.lt.s32.totalorder %s2323, 9
        %s2325 = scalar_select %p2324, %s2323, 9
        %s2326 = smul.addr %s2325, 4
        %s2327 = scalar_lea.vmem %s3, %s2326
      $region44: #{simple_cnn_forward.4} parent=39 // pred_fallthru
        _
    $region40: #{simple_cnn_forward.4} parent=5 // pred_fallthru
      _
  $region6: #{simple_cnn_forward.4} parent=0 // loop_footer
    %s13 = sadd.s32 1, %s9
  $region7: #{simple_cnn_forward.4} parent=0 // loop_footer_branch
    %8 = sbr.rel target = $region3
  $region8: #{simple_cnn_forward.4} parent=0 // loop_exit
    _

// kernel: simple_cnn_forward.5
$region0: #{simple_cnn_forward.5}
  #allocation0 [shape = 'u32[]', space=smem, size = 0x4, offset = 0x4, fixed_abs, tag = 'smem constant byte address 0x4 - core index']
  #allocation1 [shape = 'u32[144,128]{1,0:T(1,128)}', space=vmem, size = 0x12000, scoped, tag = 'internal scratch']
  %s0 = inlined_call_operand.vmem [shape: bf16[8,1152], index: 0, kind: input, shape index: {}]
  %s1 = inlined_call_operand.vmem [shape: bf16[1152,256], index: 1, kind: input, shape index: {}]
  %s2 = inlined_call_operand.vmem [shape: f32[1,256], index: 2, kind: input, shape index: {}]
  %s3 = inlined_call_operand.vmem [shape: bf16[256,128], index: 3, kind: input, shape index: {}]
  %s4 = inlined_call_operand.vmem [shape: f32[1,128], index: 4, kind: input, shape index: {}]
  %s5 = inlined_call_operand.vmem [shape: bf16[128,128], index: 5, kind: input, shape index: {}]
  %s6 = inlined_call_operand.vmem [shape: f32[1,128], index: 6, kind: input, shape index: {}]
  %s7 = inlined_call_operand.vmem [shape: f32[8,128], index: 7, kind: output, shape index: {}]
  %s8 = sld [smem:[#allocation0]]
  $region38: #{simple_cnn_forward.5} parent=0
    _
  %s10 = ssub.s32 1, %s8
  %s11 = scalar_select 0, %s10, %s8
  // Predicated region
  $region2: #{simple_cnn_forward.5} parent=0 // pred_check
    _
  $region3: #{simple_cnn_forward.5} parent=0 // pred_check_branch
    %13 = sbr.rel (0) target = $region5
  $region4: #{simple_cnn_forward.5} parent=0 // pred_region
    _
  $region5: #{simple_cnn_forward.5} parent=0 // pred_fallthru
    _
  // Predicated region
  $region6: #{simple_cnn_forward.5} parent=0 // pred_check
    _
  $region7: #{simple_cnn_forward.5} parent=0 // pred_check_branch
    %15 = sbr.rel (0) target = $region9
  $region8: #{simple_cnn_forward.5} parent=0 // pred_region
    _
  $region9: #{simple_cnn_forward.5} parent=0 // pred_fallthru
    _
  // Predicated region
  $region10: #{simple_cnn_forward.5} parent=0 // pred_check
    _
  $region11: #{simple_cnn_forward.5} parent=0 // pred_check_branch
    %17 = sbr.rel (0) target = $region13
  $region12: #{simple_cnn_forward.5} parent=0 // pred_region
    _
  $region13: #{simple_cnn_forward.5} parent=0 // pred_fallthru
    _
  // Predicated region
  $region14: #{simple_cnn_forward.5} parent=0 // pred_check
    _
  $region15: #{simple_cnn_forward.5} parent=0 // pred_check_branch
    %19 = sbr.rel (0) target = $region17
  $region16: #{simple_cnn_forward.5} parent=0 // pred_region
    _
  $region17: #{simple_cnn_forward.5} parent=0 // pred_fallthru
    _
  // Predicated region
  $region18: #{simple_cnn_forward.5} parent=0 // pred_check
    _
  $region19: #{simple_cnn_forward.5} parent=0 // pred_check_branch
    %21 = sbr.rel (0) target = $region21
  $region20: #{simple_cnn_forward.5} parent=0 // pred_region
    _
  $region21: #{simple_cnn_forward.5} parent=0 // pred_fallthru
    _
  // Predicated region
  $region22: #{simple_cnn_forward.5} parent=0 // pred_check
    _
  $region23: #{simple_cnn_forward.5} parent=0 // pred_check_branch
    %23 = sbr.rel (0) target = $region25
  $region24: #{simple_cnn_forward.5} parent=0 // pred_region
    _
  $region25: #{simple_cnn_forward.5} parent=0 // pred_fallthru
    _
  // Predicated region
  $region26: #{simple_cnn_forward.5} parent=0 // pred_check
    _
  $region27: #{simple_cnn_forward.5} parent=0 // pred_check_branch
    %25 = sbr.rel (0) target = $region29
  $region28: #{simple_cnn_forward.5} parent=0 // pred_region
    _
  $region29: #{simple_cnn_forward.5} parent=0 // pred_fallthru
    _
  %v27 = vld [vmem:[%s0] sm:$0xff]
  %v28 = vld [vmem:[%s0 + $0x8] sm:$0xff]
  %v29 = vld [vmem:[%s0 + $0x10] sm:$0xff]
  %v30 = vld [vmem:[%s0 + $0x18] sm:$0xff]
  %v31 = vld [vmem:[%s0 + $0x20] sm:$0xf]
  %v32 = vld [vmem:[%s1] sm:$0xff]
  %v33 = vld [vmem:[%s1 + $0x8] sm:$0xff]
  %v34 = vld [vmem:[%s1 + $0x10] sm:$0xff]
  %v35 = vld [vmem:[%s1 + $0x18] sm:$0xff]
  %v36 = vld [vmem:[%s1 + $0x20] sm:$0xff]
  %v37 = vld [vmem:[%s1 + $0x28] sm:$0xff]
  %v38 = vld [vmem:[%s1 + $0x30] sm:$0xff]
  %v39 = vld [vmem:[%s1 + $0x38] sm:$0xff]
  %v40 = vld [vmem:[%s1 + $0x40] sm:$0xff]
  %v41 = vld [vmem:[%s1 + $0x48] sm:$0xff]
  %v42 = vld [vmem:[%s1 + $0x50] sm:$0xff]
  %v43 = vld [vmem:[%s1 + $0x58] sm:$0xff]
  %v44 = vld [vmem:[%s1 + $0x60] sm:$0xff]
  %v45 = vld [vmem:[%s1 + $0x68] sm:$0xff]
  %v46 = vld [vmem:[%s1 + $0x70] sm:$0xff]
  %v47 = vld [vmem:[%s1 + $0x78] sm:$0xff]
  %v48 = vld [vmem:[%s1 + $0x80] sm:$0xff]
  %v49 = vld [vmem:[%s1 + $0x88] sm:$0xff]
  %v50 = vld [vmem:[%s1 + $0x90] sm:$0xff]
  %v51 = vld [vmem:[%s1 + $0x98] sm:$0xff]
  %v52 = vld [vmem:[%s1 + $0xa0] sm:$0xff]
  %v53 = vld [vmem:[%s1 + $0xa8] sm:$0xff]
  %v54 = vld [vmem:[%s1 + $0xb0] sm:$0xff]
  %v55 = vld [vmem:[%s1 + $0xb8] sm:$0xff]
  %v56 = vld [vmem:[%s1 + $0xc0] sm:$0xff]
  %v57 = vld [vmem:[%s1 + $0xc8] sm:$0xff]
  %v58 = vld [vmem:[%s1 + $0xd0] sm:$0xff]
  %v59 = vld [vmem:[%s1 + $0xd8] sm:$0xff]
  %v60 = vld [vmem:[%s1 + $0xe0] sm:$0xff]
  %v61 = vld [vmem:[%s1 + $0xe8] sm:$0xff]
  %v62 = vld [vmem:[%s1 + $0xf0] sm:$0xff]
  %v63 = vld [vmem:[%s1 + $0xf8] sm:$0xff]
  %v64 = vld [vmem:[%s1 + $0x100] sm:$0xff]
  %v65 = vld [vmem:[%s1 + $0x108] sm:$0xff]
  %v66 = vld [vmem:[%s1 + $0x110] sm:$0xff]
  %v67 = vld [vmem:[%s1 + $0x118] sm:$0xff]
  %v68 = vld [vmem:[%s1 + $0x120] sm:$0xff]
  %v69 = vld [vmem:[%s1 + $0x128] sm:$0xff]
  %v70 = vld [vmem:[%s1 + $0x130] sm:$0xff]
  %v71 = vld [vmem:[%s1 + $0x138] sm:$0xff]
  %v72 = vld [vmem:[%s1 + $0x140] sm:$0xff]
  %v73 = vld [vmem:[%s1 + $0x148] sm:$0xff]
  %v74 = vld [vmem:[%s1 + $0x150] sm:$0xff]
  %v75 = vld [vmem:[%s1 + $0x158] sm:$0xff]
  %v76 = vld [vmem:[%s1 + $0x160] sm:$0xff]
  %v77 = vld [vmem:[%s1 + $0x168] sm:$0xff]
  %v78 = vld [vmem:[%s1 + $0x170] sm:$0xff]
  %v79 = vld [vmem:[%s1 + $0x178] sm:$0xff]
  %v80 = vld [vmem:[%s1 + $0x180] sm:$0xff]
  %v81 = vld [vmem:[%s1 + $0x188] sm:$0xff]
  %v82 = vld [vmem:[%s1 + $0x190] sm:$0xff]
  %v83 = vld [vmem:[%s1 + $0x198] sm:$0xff]
  %v84 = vld [vmem:[%s1 + $0x1a0] sm:$0xff]
  %v85 = vld [vmem:[%s1 + $0x1a8] sm:$0xff]
  %v86 = vld [vmem:[%s1 + $0x1b0] sm:$0xff]
  %v87 = vld [vmem:[%s1 + $0x1b8] sm:$0xff]
  %v88 = vld [vmem:[%s1 + $0x1c0] sm:$0xff]
  %v89 = vld [vmem:[%s1 + $0x1c8] sm:$0xff]
  %v90 = vld [vmem:[%s1 + $0x1d0] sm:$0xff]
  %v91 = vld [vmem:[%s1 + $0x1d8] sm:$0xff]
  %v92 = vld [vmem:[%s1 + $0x1e0] sm:$0xff]
  %v93 = vld [vmem:[%s1 + $0x1e8] sm:$0xff]
  %v94 = vld [vmem:[%s1 + $0x1f0] sm:$0xff]
  %v95 = vld [vmem:[%s1 + $0x1f8] sm:$0xff]
  %v96 = vld [vmem:[%s1 + $0x200] sm:$0xff]
  %v97 = vld [vmem:[%s1 + $0x208] sm:$0xff]
  %v98 = vld [vmem:[%s1 + $0x210] sm:$0xff]
  %v99 = vld [vmem:[%s1 + $0x218] sm:$0xff]
  %v100 = vld [vmem:[%s1 + $0x220] sm:$0xff]
  %v101 = vld [vmem:[%s1 + $0x228] sm:$0xff]
  %v102 = vld [vmem:[%s1 + $0x230] sm:$0xff]
  %v103 = vld [vmem:[%s1 + $0x238] sm:$0xff]
  %v104 = vld [vmem:[%s1 + $0x240] sm:$0xff]
  %v105 = vld [vmem:[%s1 + $0x248] sm:$0xff]
  %v106 = vld [vmem:[%s1 + $0x250] sm:$0xff]
  %v107 = vld [vmem:[%s1 + $0x258] sm:$0xff]
  %v108 = vld [vmem:[%s1 + $0x260] sm:$0xff]
  %v109 = vld [vmem:[%s1 + $0x268] sm:$0xff]
  %v110 = vld [vmem:[%s1 + $0x270] sm:$0xff]
  %v111 = vld [vmem:[%s1 + $0x278] sm:$0xff]
  %v112 = vld [vmem:[%s1 + $0x280] sm:$0xff]
  %v113 = vld [vmem:[%s1 + $0x288] sm:$0xff]
  %v114 = vld [vmem:[%s1 + $0x290] sm:$0xff]
  %v115 = vld [vmem:[%s1 + $0x298] sm:$0xff]
  %v116 = vld [vmem:[%s1 + $0x2a0] sm:$0xff]
  %v117 = vld [vmem:[%s1 + $0x2a8] sm:$0xff]
  %v118 = vld [vmem:[%s1 + $0x2b0] sm:$0xff]
  %v119 = vld [vmem:[%s1 + $0x2b8] sm:$0xff]
  %v120 = vld [vmem:[%s1 + $0x2c0] sm:$0xff]
  %v121 = vld [vmem:[%s1 + $0x2c8] sm:$0xff]
  %v122 = vld [vmem:[%s1 + $0x2d0] sm:$0xff]
  %v123 = vld [vmem:[%s1 + $0x2d8] sm:$0xff]
  %v124 = vld [vmem:[%s1 + $0x2e0] sm:$0xff]
  %v125 = vld [vmem:[%s1 + $0x2e8] sm:$0xff]
  %v126 = vld [vmem:[%s1 + $0x2f0] sm:$0xff]
  %v127 = vld [vmem:[%s1 + $0x2f8] sm:$0xff]
  %v128 = vld [vmem:[%s1 + $0x300] sm:$0xff]
  %v129 = vld [vmem:[%s1 + $0x308] sm:$0xff]
  %v130 = vld [vmem:[%s1 + $0x310] sm:$0xff]
  %v131 = vld [vmem:[%s1 + $0x318] sm:$0xff]
  %v132 = vld [vmem:[%s1 + $0x320] sm:$0xff]
  %v133 = vld [vmem:[%s1 + $0x328] sm:$0xff]
  %v134 = vld [vmem:[%s1 + $0x330] sm:$0xff]
  %v135 = vld [vmem:[%s1 + $0x338] sm:$0xff]
  %v136 = vld [vmem:[%s1 + $0x340] sm:$0xff]
  %v137 = vld [vmem:[%s1 + $0x348] sm:$0xff]
  %v138 = vld [vmem:[%s1 + $0x350] sm:$0xff]
  %v139 = vld [vmem:[%s1 + $0x358] sm:$0xff]
  %v140 = vld [vmem:[%s1 + $0x360] sm:$0xff]
  %v141 = vld [vmem:[%s1 + $0x368] sm:$0xff]
  %v142 = vld [vmem:[%s1 + $0x370] sm:$0xff]
  %v143 = vld [vmem:[%s1 + $0x378] sm:$0xff]
  %v144 = vld [vmem:[%s1 + $0x380] sm:$0xff]
  %v145 = vld [vmem:[%s1 + $0x388] sm:$0xff]
  %v146 = vld [vmem:[%s1 + $0x390] sm:$0xff]
  %v147 = vld [vmem:[%s1 + $0x398] sm:$0xff]
  %v148 = vld [vmem:[%s1 + $0x3a0] sm:$0xff]
  %v149 = vld [vmem:[%s1 + $0x3a8] sm:$0xff]
  %v150 = vld [vmem:[%s1 + $0x3b0] sm:$0xff]
  %v151 = vld [vmem:[%s1 + $0x3b8] sm:$0xff]
  %v152 = vld [vmem:[%s1 + $0x3c0] sm:$0xff]
  %v153 = vld [vmem:[%s1 + $0x3c8] sm:$0xff]
  %v154 = vld [vmem:[%s1 + $0x3d0] sm:$0xff]
  %v155 = vld [vmem:[%s1 + $0x3d8] sm:$0xff]
  %v156 = vld [vmem:[%s1 + $0x3e0] sm:$0xff]
  %v157 = vld [vmem:[%s1 + $0x3e8] sm:$0xff]
  %v158 = vld [vmem:[%s1 + $0x3f0] sm:$0xff]
  %v159 = vld [vmem:[%s1 + $0x3f8] sm:$0xff]
  %v160 = vld [vmem:[%s1 + $0x400] sm:$0xff]
  %v161 = vld [vmem:[%s1 + $0x408] sm:$0xff]
  %v162 = vld [vmem:[%s1 + $0x410] sm:$0xff]
  %v163 = vld [vmem:[%s1 + $0x418] sm:$0xff]
  %v164 = vld [vmem:[%s1 + $0x420] sm:$0xff]
  %v165 = vld [vmem:[%s1 + $0x428] sm:$0xff]
  %v166 = vld [vmem:[%s1 + $0x430] sm:$0xff]
  %v167 = vld [vmem:[%s1 + $0x438] sm:$0xff]
  %v168 = vld [vmem:[%s1 + $0x440] sm:$0xff]
  %v169 = vld [vmem:[%s1 + $0x448] sm:$0xff]
  %v170 = vld [vmem:[%s1 + $0x450] sm:$0xff]
  %v171 = vld [vmem:[%s1 + $0x458] sm:$0xff]
  %v172 = vld [vmem:[%s1 + $0x460] sm:$0xff]
  %v173 = vld [vmem:[%s1 + $0x468] sm:$0xff]
  %v174 = vld [vmem:[%s1 + $0x470] sm:$0xff]
  %v175 = vld [vmem:[%s1 + $0x478] sm:$0xff]
  %v176 = vld [vmem:[%s2] sm:$0x3]
  %v178 = vlaneseq
  %v179 = vshrl.u32 %v178, 7
  %v180 = vsub.s32 0, %v179
  %v181 = vrot.slane %v176, %v180
  %v182 = vlaneseq
  %v183 = vshrl.u32 %v182, 7
  %v184 = vsub.s32 1, %v183
  %v185 = vrot.slane %v176, %v184
  %v193 = vunpack.c.l.b16 %v27
  %v194 = vunpack.c.h.b16 %v27
  %v195 = vunpack.c.l.b16 %v28
  %v196 = vunpack.c.h.b16 %v28
  %v197 = vunpack.c.l.b16 %v29
  %v198 = vunpack.c.h.b16 %v29
  %v199 = vunpack.c.l.b16 %v30
  %v200 = vunpack.c.h.b16 %v30
  %v201 = vunpack.c.l.b16 %v31
  %v202 = vpack.c.b16 %v193, %v193
  %v203 = vpack.c.b16 %v194, %v194
  %v204 = vpack.c.b16 %v195, %v195
  %v205 = vpack.c.b16 %v196, %v196
  %v206 = vpack.c.b16 %v197, %v197
  %v207 = vpack.c.b16 %v198, %v198
  %v208 = vpack.c.b16 %v199, %v199
  %v209 = vpack.c.b16 %v200, %v200
  %v210 = vpack.c.b16 %v201, %v201
  %v364 = vunpack.c.l.b16 %v32
  %v365 = vunpack.c.h.b16 %v32
  %v366 = vunpack.c.l.b16 %v33
  %v367 = vunpack.c.h.b16 %v33
  %v368 = vunpack.c.l.b16 %v34
  %v369 = vunpack.c.h.b16 %v34
  %v370 = vunpack.c.l.b16 %v35
  %v371 = vunpack.c.h.b16 %v35
  %v372 = vunpack.c.l.b16 %v36
  %v373 = vunpack.c.h.b16 %v36
  %v374 = vunpack.c.l.b16 %v37
  %v375 = vunpack.c.h.b16 %v37
  %v376 = vunpack.c.l.b16 %v38
  %v377 = vunpack.c.h.b16 %v38
  %v378 = vunpack.c.l.b16 %v39
  %v379 = vunpack.c.h.b16 %v39
  %v380 = vunpack.c.l.b16 %v40
  %v381 = vunpack.c.h.b16 %v40
  %v382 = vunpack.c.l.b16 %v41
  %v383 = vunpack.c.h.b16 %v41
  %v384 = vunpack.c.l.b16 %v42
  %v385 = vunpack.c.h.b16 %v42
  %v386 = vunpack.c.l.b16 %v43
  %v387 = vunpack.c.h.b16 %v43
  %v388 = vunpack.c.l.b16 %v44
  %v389 = vunpack.c.h.b16 %v44
  %v390 = vunpack.c.l.b16 %v45
  %v391 = vunpack.c.h.b16 %v45
  %v392 = vunpack.c.l.b16 %v46
  %v393 = vunpack.c.h.b16 %v46
  %v394 = vunpack.c.l.b16 %v47
  %v395 = vunpack.c.h.b16 %v47
  %v396 = vunpack.c.l.b16 %v48
  %v397 = vunpack.c.h.b16 %v48
  %v398 = vunpack.c.l.b16 %v49
  %v399 = vunpack.c.h.b16 %v49
  %v400 = vunpack.c.l.b16 %v50
  %v401 = vunpack.c.h.b16 %v50
  %v402 = vunpack.c.l.b16 %v51
  %v403 = vunpack.c.h.b16 %v51
  %v404 = vunpack.c.l.b16 %v52
  %v405 = vunpack.c.h.b16 %v52
  %v406 = vunpack.c.l.b16 %v53
  %v407 = vunpack.c.h.b16 %v53
  %v408 = vunpack.c.l.b16 %v54
  %v409 = vunpack.c.h.b16 %v54
  %v410 = vunpack.c.l.b16 %v55
  %v411 = vunpack.c.h.b16 %v55
  %v412 = vunpack.c.l.b16 %v56
  %v413 = vunpack.c.h.b16 %v56
  %v414 = vunpack.c.l.b16 %v57
  %v415 = vunpack.c.h.b16 %v57
  %v416 = vunpack.c.l.b16 %v58
  %v417 = vunpack.c.h.b16 %v58
  %v418 = vunpack.c.l.b16 %v59
  %v419 = vunpack.c.h.b16 %v59
  %v420 = vunpack.c.l.b16 %v60
  %v421 = vunpack.c.h.b16 %v60
  %v422 = vunpack.c.l.b16 %v61
  %v423 = vunpack.c.h.b16 %v61
  %v424 = vunpack.c.l.b16 %v62
  %v425 = vunpack.c.h.b16 %v62
  %v426 = vunpack.c.l.b16 %v63
  %v427 = vunpack.c.h.b16 %v63
  %v428 = vunpack.c.l.b16 %v64
  %v429 = vunpack.c.h.b16 %v64
  %v430 = vunpack.c.l.b16 %v65
  %v431 = vunpack.c.h.b16 %v65
  %v432 = vunpack.c.l.b16 %v66
  %v433 = vunpack.c.h.b16 %v66
  %v434 = vunpack.c.l.b16 %v67
  %v435 = vunpack.c.h.b16 %v67
  %v436 = vunpack.c.l.b16 %v68
  %v437 = vunpack.c.h.b16 %v68
  %v438 = vunpack.c.l.b16 %v69
  %v439 = vunpack.c.h.b16 %v69
  %v440 = vunpack.c.l.b16 %v70
  %v441 = vunpack.c.h.b16 %v70
  %v442 = vunpack.c.l.b16 %v71
  %v443 = vunpack.c.h.b16 %v71
  %v444 = vunpack.c.l.b16 %v72
  %v445 = vunpack.c.h.b16 %v72
  %v446 = vunpack.c.l.b16 %v73
  %v447 = vunpack.c.h.b16 %v73
  %v448 = vunpack.c.l.b16 %v74
  %v449 = vunpack.c.h.b16 %v74
  %v450 = vunpack.c.l.b16 %v75
  %v451 = vunpack.c.h.b16 %v75
  %v452 = vunpack.c.l.b16 %v76
  %v453 = vunpack.c.h.b16 %v76
  %v454 = vunpack.c.l.b16 %v77
  %v455 = vunpack.c.h.b16 %v77
  %v456 = vunpack.c.l.b16 %v78
  %v457 = vunpack.c.h.b16 %v78
  %v458 = vunpack.c.l.b16 %v79
  %v459 = vunpack.c.h.b16 %v79
  %v460 = vunpack.c.l.b16 %v80
  %v461 = vunpack.c.h.b16 %v80
  %v462 = vunpack.c.l.b16 %v81
  %v463 = vunpack.c.h.b16 %v81
  %v464 = vunpack.c.l.b16 %v82
  %v465 = vunpack.c.h.b16 %v82
  %v466 = vunpack.c.l.b16 %v83
  %v467 = vunpack.c.h.b16 %v83
  %v468 = vunpack.c.l.b16 %v84
  %v469 = vunpack.c.h.b16 %v84
  %v470 = vunpack.c.l.b16 %v85
  %v471 = vunpack.c.h.b16 %v85
  %v472 = vunpack.c.l.b16 %v86
  %v473 = vunpack.c.h.b16 %v86
  %v474 = vunpack.c.l.b16 %v87
  %v475 = vunpack.c.h.b16 %v87
  %v476 = vunpack.c.l.b16 %v88
  %v477 = vunpack.c.h.b16 %v88
  %v478 = vunpack.c.l.b16 %v89
  %v479 = vunpack.c.h.b16 %v89
  %v480 = vunpack.c.l.b16 %v90
  %v481 = vunpack.c.h.b16 %v90
  %v482 = vunpack.c.l.b16 %v91
  %v483 = vunpack.c.h.b16 %v91
  %v484 = vunpack.c.l.b16 %v92
  %v485 = vunpack.c.h.b16 %v92
  %v486 = vunpack.c.l.b16 %v93
  %v487 = vunpack.c.h.b16 %v93
  %v488 = vunpack.c.l.b16 %v94
  %v489 = vunpack.c.h.b16 %v94
  %v490 = vunpack.c.l.b16 %v95
  %v491 = vunpack.c.h.b16 %v95
  %v492 = vunpack.c.l.b16 %v96
  %v493 = vunpack.c.h.b16 %v96
  %v494 = vunpack.c.l.b16 %v97
  %v495 = vunpack.c.h.b16 %v97
  %v496 = vunpack.c.l.b16 %v98
  %v497 = vunpack.c.h.b16 %v98
  %v498 = vunpack.c.l.b16 %v99
  %v499 = vunpack.c.h.b16 %v99
  %v500 = vunpack.c.l.b16 %v100
  %v501 = vunpack.c.h.b16 %v100
  %v502 = vunpack.c.l.b16 %v101
  %v503 = vunpack.c.h.b16 %v101
  %v504 = vunpack.c.l.b16 %v102
  %v505 = vunpack.c.h.b16 %v102
  %v506 = vunpack.c.l.b16 %v103
  %v507 = vunpack.c.h.b16 %v103
  %v508 = vunpack.c.l.b16 %v104
  %v509 = vunpack.c.h.b16 %v104
  %v510 = vunpack.c.l.b16 %v105
  %v511 = vunpack.c.h.b16 %v105
  %v512 = vunpack.c.l.b16 %v106
  %v513 = vunpack.c.h.b16 %v106
  %v514 = vunpack.c.l.b16 %v107
  %v515 = vunpack.c.h.b16 %v107
  %v516 = vunpack.c.l.b16 %v108
  %v517 = vunpack.c.h.b16 %v108
  %v518 = vunpack.c.l.b16 %v109
  %v519 = vunpack.c.h.b16 %v109
  %v520 = vunpack.c.l.b16 %v110
  %v521 = vunpack.c.h.b16 %v110
  %v522 = vunpack.c.l.b16 %v111
  %v523 = vunpack.c.h.b16 %v111
  %v524 = vunpack.c.l.b16 %v112
  %v525 = vunpack.c.h.b16 %v112
  %v526 = vunpack.c.l.b16 %v113
  %v527 = vunpack.c.h.b16 %v113
  %v528 = vunpack.c.l.b16 %v114
  %v529 = vunpack.c.h.b16 %v114
  %v530 = vunpack.c.l.b16 %v115
  %v531 = vunpack.c.h.b16 %v115
  %v532 = vunpack.c.l.b16 %v116
  %v533 = vunpack.c.h.b16 %v116
  %v534 = vunpack.c.l.b16 %v117
  %v535 = vunpack.c.h.b16 %v117
  %v536 = vunpack.c.l.b16 %v118
  %v537 = vunpack.c.h.b16 %v118
  %v538 = vunpack.c.l.b16 %v119
  %v539 = vunpack.c.h.b16 %v119
  %v540 = vunpack.c.l.b16 %v120
  %v541 = vunpack.c.h.b16 %v120
  %v542 = vunpack.c.l.b16 %v121
  %v543 = vunpack.c.h.b16 %v121
  %v544 = vunpack.c.l.b16 %v122
  %v545 = vunpack.c.h.b16 %v122
  %v546 = vunpack.c.l.b16 %v123
  %v547 = vunpack.c.h.b16 %v123
  %v548 = vunpack.c.l.b16 %v124
  %v549 = vunpack.c.h.b16 %v124
  %v550 = vunpack.c.l.b16 %v125
  %v551 = vunpack.c.h.b16 %v125
  %v552 = vunpack.c.l.b16 %v126
  %v553 = vunpack.c.h.b16 %v126
  %v554 = vunpack.c.l.b16 %v127
  %v555 = vunpack.c.h.b16 %v127
  %v556 = vunpack.c.l.b16 %v128
  %v557 = vunpack.c.h.b16 %v128
  %v558 = vunpack.c.l.b16 %v129
  %v559 = vunpack.c.h.b16 %v129
  %v560 = vunpack.c.l.b16 %v130
  %v561 = vunpack.c.h.b16 %v130
  %v562 = vunpack.c.l.b16 %v131
  %v563 = vunpack.c.h.b16 %v131
  %v564 = vunpack.c.l.b16 %v132
  %v565 = vunpack.c.h.b16 %v132
  %v566 = vunpack.c.l.b16 %v133
  %v567 = vunpack.c.h.b16 %v133
  %v568 = vunpack.c.l.b16 %v134
  %v569 = vunpack.c.h.b16 %v134
  %v570 = vunpack.c.l.b16 %v135
  %v571 = vunpack.c.h.b16 %v135
  %v572 = vunpack.c.l.b16 %v136
  %v573 = vunpack.c.h.b16 %v136
  %v574 = vunpack.c.l.b16 %v137
  %v575 = vunpack.c.h.b16 %v137
  %v576 = vunpack.c.l.b16 %v138
  %v577 = vunpack.c.h.b16 %v138
  %v578 = vunpack.c.l.b16 %v139
  %v579 = vunpack.c.h.b16 %v139
  %v580 = vunpack.c.l.b16 %v140
  %v581 = vunpack.c.h.b16 %v140
  %v582 = vunpack.c.l.b16 %v141
  %v583 = vunpack.c.h.b16 %v141
  %v584 = vunpack.c.l.b16 %v142
  %v585 = vunpack.c.h.b16 %v142
  %v586 = vunpack.c.l.b16 %v143
  %v587 = vunpack.c.h.b16 %v143
  %v588 = vunpack.c.l.b16 %v144
  %v589 = vunpack.c.h.b16 %v144
  %v590 = vunpack.c.l.b16 %v145
  %v591 = vunpack.c.h.b16 %v145
  %v592 = vunpack.c.l.b16 %v146
  %v593 = vunpack.c.h.b16 %v146
  %v594 = vunpack.c.l.b16 %v147
  %v595 = vunpack.c.h.b16 %v147
  %v596 = vunpack.c.l.b16 %v148
  %v597 = vunpack.c.h.b16 %v148
  %v598 = vunpack.c.l.b16 %v149
  %v599 = vunpack.c.h.b16 %v149
  %v600 = vunpack.c.l.b16 %v150
  %v601 = vunpack.c.h.b16 %v150
  %v602 = vunpack.c.l.b16 %v151
  %v603 = vunpack.c.h.b16 %v151
  %v604 = vunpack.c.l.b16 %v152
  %v605 = vunpack.c.h.b16 %v152
  %v606 = vunpack.c.l.b16 %v153
  %v607 = vunpack.c.h.b16 %v153
  %v608 = vunpack.c.l.b16 %v154
  %v609 = vunpack.c.h.b16 %v154
  %v610 = vunpack.c.l.b16 %v155
  %v611 = vunpack.c.h.b16 %v155
  %v612 = vunpack.c.l.b16 %v156
  %v613 = vunpack.c.h.b16 %v156
  %v614 = vunpack.c.l.b16 %v157
  %v615 = vunpack.c.h.b16 %v157
  %v616 = vunpack.c.l.b16 %v158
  %v617 = vunpack.c.h.b16 %v158
  %v618 = vunpack.c.l.b16 %v159
  %v619 = vunpack.c.h.b16 %v159
  %v620 = vunpack.c.l.b16 %v160
  %v621 = vunpack.c.h.b16 %v160
  %v622 = vunpack.c.l.b16 %v161
  %v623 = vunpack.c.h.b16 %v161
  %v624 = vunpack.c.l.b16 %v162
  %v625 = vunpack.c.h.b16 %v162
  %v626 = vunpack.c.l.b16 %v163
  %v627 = vunpack.c.h.b16 %v163
  %v628 = vunpack.c.l.b16 %v164
  %v629 = vunpack.c.h.b16 %v164
  %v630 = vunpack.c.l.b16 %v165
  %v631 = vunpack.c.h.b16 %v165
  %v632 = vunpack.c.l.b16 %v166
  %v633 = vunpack.c.h.b16 %v166
  %v634 = vunpack.c.l.b16 %v167
  %v635 = vunpack.c.h.b16 %v167
  %v636 = vunpack.c.l.b16 %v168
  %v637 = vunpack.c.h.b16 %v168
  %v638 = vunpack.c.l.b16 %v169
  %v639 = vunpack.c.h.b16 %v169
  %v640 = vunpack.c.l.b16 %v170
  %v641 = vunpack.c.h.b16 %v170
  %v642 = vunpack.c.l.b16 %v171
  %v643 = vunpack.c.h.b16 %v171
  %v644 = vunpack.c.l.b16 %v172
  %v645 = vunpack.c.h.b16 %v172
  %v646 = vunpack.c.l.b16 %v173
  %v647 = vunpack.c.h.b16 %v173
  %v648 = vunpack.c.l.b16 %v174
  %v649 = vunpack.c.h.b16 %v174
  %v650 = vunpack.c.l.b16 %v175
  %v651 = vunpack.c.h.b16 %v175
  %v652 = vpack.c.b16 %v366, %v364
  %v653 = vpack.c.b16 %v367, %v365
  %v654 = vpack.c.b16 %v370, %v368
  %v655 = vpack.c.b16 %v371, %v369
  %v656 = vpack.c.b16 %v374, %v372
  %v657 = vpack.c.b16 %v375, %v373
  %v658 = vpack.c.b16 %v378, %v376
  %v659 = vpack.c.b16 %v379, %v377
  %v660 = vpack.c.b16 %v382, %v380
  %v661 = vpack.c.b16 %v383, %v381
  %v662 = vpack.c.b16 %v386, %v384
  %v663 = vpack.c.b16 %v387, %v385
  %v664 = vpack.c.b16 %v390, %v388
  %v665 = vpack.c.b16 %v391, %v389
  %v666 = vpack.c.b16 %v394, %v392
  %v667 = vpack.c.b16 %v395, %v393
  %v668 = vpack.c.b16 %v398, %v396
  %v669 = vpack.c.b16 %v399, %v397
  %v670 = vpack.c.b16 %v402, %v400
  %v671 = vpack.c.b16 %v403, %v401
  %v672 = vpack.c.b16 %v406, %v404
  %v673 = vpack.c.b16 %v407, %v405
  %v674 = vpack.c.b16 %v410, %v408
  %v675 = vpack.c.b16 %v411, %v409
  %v676 = vpack.c.b16 %v414, %v412
  %v677 = vpack.c.b16 %v415, %v413
  %v678 = vpack.c.b16 %v418, %v416
  %v679 = vpack.c.b16 %v419, %v417
  %v680 = vpack.c.b16 %v422, %v420
  %v681 = vpack.c.b16 %v423, %v421
  %v682 = vpack.c.b16 %v426, %v424
  %v683 = vpack.c.b16 %v427, %v425
  %v684 = vpack.c.b16 %v430, %v428
  %v685 = vpack.c.b16 %v431, %v429
  %v686 = vpack.c.b16 %v434, %v432
  %v687 = vpack.c.b16 %v435, %v433
  %v688 = vpack.c.b16 %v438, %v436
  %v689 = vpack.c.b16 %v439, %v437
  %v690 = vpack.c.b16 %v442, %v440
  %v691 = vpack.c.b16 %v443, %v441
  %v692 = vpack.c.b16 %v446, %v444
  %v693 = vpack.c.b16 %v447, %v445
  %v694 = vpack.c.b16 %v450, %v448
  %v695 = vpack.c.b16 %v451, %v449
  %v696 = vpack.c.b16 %v454, %v452
  %v697 = vpack.c.b16 %v455, %v453
  %v698 = vpack.c.b16 %v458, %v456
  %v699 = vpack.c.b16 %v459, %v457
  %v700 = vpack.c.b16 %v462, %v460
  %v701 = vpack.c.b16 %v463, %v461
  %v702 = vpack.c.b16 %v466, %v464
  %v703 = vpack.c.b16 %v467, %v465
  %v704 = vpack.c.b16 %v470, %v468
  %v705 = vpack.c.b16 %v471, %v469
  %v706 = vpack.c.b16 %v474, %v472
  %v707 = vpack.c.b16 %v475, %v473
  %v708 = vpack.c.b16 %v478, %v476
  %v709 = vpack.c.b16 %v479, %v477
  %v710 = vpack.c.b16 %v482, %v480
  %v711 = vpack.c.b16 %v483, %v481
  %v712 = vpack.c.b16 %v486, %v484
  %v713 = vpack.c.b16 %v487, %v485
  %v714 = vpack.c.b16 %v490, %v488
  %v715 = vpack.c.b16 %v491, %v489
  %v716 = vpack.c.b16 %v494, %v492
  %v717 = vpack.c.b16 %v495, %v493
  %v718 = vpack.c.b16 %v498, %v496
  %v719 = vpack.c.b16 %v499, %v497
  %v720 = vpack.c.b16 %v502, %v500
  %v721 = vpack.c.b16 %v503, %v501
  %v722 = vpack.c.b16 %v506, %v504
  %v723 = vpack.c.b16 %v507, %v505
  %v724 = vpack.c.b16 %v510, %v508
  %v725 = vpack.c.b16 %v511, %v509
  %v726 = vpack.c.b16 %v514, %v512
  %v727 = vpack.c.b16 %v515, %v513
  %v728 = vpack.c.b16 %v518, %v516
  %v729 = vpack.c.b16 %v519, %v517
  %v730 = vpack.c.b16 %v522, %v520
  %v731 = vpack.c.b16 %v523, %v521
  %v732 = vpack.c.b16 %v526, %v524
  %v733 = vpack.c.b16 %v527, %v525
  %v734 = vpack.c.b16 %v530, %v528
  %v735 = vpack.c.b16 %v531, %v529
  %v736 = vpack.c.b16 %v534, %v532
  %v737 = vpack.c.b16 %v535, %v533
  %v738 = vpack.c.b16 %v538, %v536
  %v739 = vpack.c.b16 %v539, %v537
  %v740 = vpack.c.b16 %v542, %v540
  %v741 = vpack.c.b16 %v543, %v541
  %v742 = vpack.c.b16 %v546, %v544
  %v743 = vpack.c.b16 %v547, %v545
  %v744 = vpack.c.b16 %v550, %v548
  %v745 = vpack.c.b16 %v551, %v549
  %v746 = vpack.c.b16 %v554, %v552
  %v747 = vpack.c.b16 %v555, %v553
  %v748 = vpack.c.b16 %v558, %v556
  %v749 = vpack.c.b16 %v559, %v557
  %v750 = vpack.c.b16 %v562, %v560
  %v751 = vpack.c.b16 %v563, %v561
  %v752 = vpack.c.b16 %v566, %v564
  %v753 = vpack.c.b16 %v567, %v565
  %v754 = vpack.c.b16 %v570, %v568
  %v755 = vpack.c.b16 %v571, %v569
  %v756 = vpack.c.b16 %v574, %v572
  %v757 = vpack.c.b16 %v575, %v573
  %v758 = vpack.c.b16 %v578, %v576
  %v759 = vpack.c.b16 %v579, %v577
  %v760 = vpack.c.b16 %v582, %v580
  %v761 = vpack.c.b16 %v583, %v581
  %v762 = vpack.c.b16 %v586, %v584
  %v763 = vpack.c.b16 %v587, %v585
  %v764 = vpack.c.b16 %v590, %v588
  %v765 = vpack.c.b16 %v591, %v589
  %v766 = vpack.c.b16 %v594, %v592
  %v767 = vpack.c.b16 %v595, %v593
  %v768 = vpack.c.b16 %v598, %v596
  %v769 = vpack.c.b16 %v599, %v597
  %v770 = vpack.c.b16 %v602, %v600
  %v771 = vpack.c.b16 %v603, %v601
  %v772 = vpack.c.b16 %v606, %v604
  %v773 = vpack.c.b16 %v607, %v605
  %v774 = vpack.c.b16 %v610, %v608
  %v775 = vpack.c.b16 %v611, %v609
  %v776 = vpack.c.b16 %v614, %v612
  %v777 = vpack.c.b16 %v615, %v613
  %v778 = vpack.c.b16 %v618, %v616
  %v779 = vpack.c.b16 %v619, %v617
  %v780 = vpack.c.b16 %v622, %v620
  %v781 = vpack.c.b16 %v623, %v621
  %v782 = vpack.c.b16 %v626, %v624
  %v783 = vpack.c.b16 %v627, %v625
  %v784 = vpack.c.b16 %v630, %v628
  %v785 = vpack.c.b16 %v631, %v629
  %v786 = vpack.c.b16 %v634, %v632
  %v787 = vpack.c.b16 %v635, %v633
  %v788 = vpack.c.b16 %v638, %v636
  %v789 = vpack.c.b16 %v639, %v637
  %v790 = vpack.c.b16 %v642, %v640
  %v791 = vpack.c.b16 %v643, %v641
  %v792 = vpack.c.b16 %v646, %v644
  %v793 = vpack.c.b16 %v647, %v645
  %v794 = vpack.c.b16 %v650, %v648
  %v795 = vpack.c.b16 %v651, %v649
  %940 = vmatprep.subr.bf16.mxu0 %v667
  %941 = vmatpush1.bf16.msra.mxu0 %v666
  %942 = vmatprep.subr.bf16.mxu0 %v665
  %943 = vmatpush1.bf16.msra.mxu0 %v664
  %944 = vmatprep.subr.bf16.mxu0 %v663
  %945 = vmatpush1.bf16.msra.mxu0 %v662
  %946 = vmatprep.subr.bf16.mxu0 %v661
  %947 = vmatpush1.bf16.msra.mxu0 %v660
  %948 = vmatprep.subr.bf16.mxu0 %v659
  %949 = vmatpush1.bf16.msra.mxu0 %v658
  %950 = vmatprep.subr.bf16.mxu0 %v657
  %951 = vmatpush1.bf16.msra.mxu0 %v656
  %952 = vmatprep.subr.bf16.mxu0 %v655
  %953 = vmatpush1.bf16.msra.mxu0 %v654
  %954 = vmatprep.subr.bf16.mxu0 %v653
  %955 = vmatpush1.bf16.msra.mxu0 %v652
  %956 = vmatprep.subr.bf16.mxu0 %v683
  %957 = vmatpush2.bf16.msra.mxu0 %v682
  %958 = vmatprep.subr.bf16.mxu0 %v681
  %959 = vmatpush2.bf16.msra.mxu0 %v680
  %960 = vmatprep.subr.bf16.mxu0 %v679
  %961 = vmatpush2.bf16.msra.mxu0 %v678
  %962 = vmatprep.subr.bf16.mxu0 %v677
  %963 = vmatpush2.bf16.msra.mxu0 %v676
  %964 = vmatprep.subr.bf16.mxu0 %v675
  %965 = vmatpush2.bf16.msra.mxu0 %v674
  %966 = vmatprep.subr.bf16.mxu0 %v673
  %967 = vmatpush2.bf16.msra.mxu0 %v672
  %968 = vmatprep.subr.bf16.mxu0 %v671
  %969 = vmatpush2.bf16.msra.mxu0 %v670
  %970 = vmatprep.subr.bf16.mxu0 %v669
  %971 = vmatpush2.bf16.msra.mxu0 %v668
  %972 = vmatprep.mubr.bf16.mxu0 %v203
  %973 = vmatmul.mubr.bf16.gmra.mxu0 %v202
  %v974 = vpop.f32.mrf.mxu0
  %v975 = vadd.f32 %v181, %v974
  %v976 = vpop.f32.mrf.mxu0
  %v977 = vadd.f32 %v185, %v976
  %v978 = vpop.f32.mrf.mxu0
  %v979 = vpop.f32.mrf.mxu0
  %980 = vdwg.mxu0
  %981 = vmatprep.subr.bf16.mxu0 %v699
  %982 = vmatpush1.bf16.msra.mxu0 %v698
  %983 = vmatprep.subr.bf16.mxu0 %v697
  %984 = vmatpush1.bf16.msra.mxu0 %v696
  %985 = vmatprep.subr.bf16.mxu0 %v695
  %986 = vmatpush1.bf16.msra.mxu0 %v694
  %987 = vmatprep.subr.bf16.mxu0 %v693
  %988 = vmatpush1.bf16.msra.mxu0 %v692
  %989 = vmatprep.subr.bf16.mxu0 %v691
  %990 = vmatpush1.bf16.msra.mxu0 %v690
  %991 = vmatprep.subr.bf16.mxu0 %v689
  %992 = vmatpush1.bf16.msra.mxu0 %v688
  %993 = vmatprep.subr.bf16.mxu0 %v687
  %994 = vmatpush1.bf16.msra.mxu0 %v686
  %995 = vmatprep.subr.bf16.mxu0 %v685
  %996 = vmatpush1.bf16.msra.mxu0 %v684
  %997 = vmatprep.subr.bf16.mxu0 %v715
  %998 = vmatpush2.bf16.msra.mxu0 %v714
  %999 = vmatprep.subr.bf16.mxu0 %v713
  %1000 = vmatpush2.bf16.msra.mxu0 %v712
  %1001 = vmatprep.subr.bf16.mxu0 %v711
  %1002 = vmatpush2.bf16.msra.mxu0 %v710
  %1003 = vmatprep.subr.bf16.mxu0 %v709
  %1004 = vmatpush2.bf16.msra.mxu0 %v708
  %1005 = vmatprep.subr.bf16.mxu0 %v707
  %1006 = vmatpush2.bf16.msra.mxu0 %v706
  %1007 = vmatprep.subr.bf16.mxu0 %v705
  %1008 = vmatpush2.bf16.msra.mxu0 %v704
  %1009 = vmatprep.subr.bf16.mxu0 %v703
  %1010 = vmatpush2.bf16.msra.mxu0 %v702
  %1011 = vmatprep.subr.bf16.mxu0 %v701
  %1012 = vmatpush2.bf16.msra.mxu0 %v700
  %1013 = vmatprep.mubr.bf16.mxu0 %v205
  %1014 = vmatmul.mubr.bf16.gmra.mxu0 %v204
  %v1015 = vpop.f32.mrf.mxu0
  %v1016 = vadd.f32 %v975, %v1015
  %v1017 = vpop.f32.mrf.mxu0
  %v1018 = vadd.f32 %v977, %v1017
  %v1019 = vpop.f32.mrf.mxu0
  %v1020 = vpop.f32.mrf.mxu0
  %1021 = vdwg.mxu0
  %1022 = vmatprep.subr.bf16.mxu0 %v731
  %1023 = vmatpush1.bf16.msra.mxu0 %v730
  %1024 = vmatprep.subr.bf16.mxu0 %v729
  %1025 = vmatpush1.bf16.msra.mxu0 %v728
  %1026 = vmatprep.subr.bf16.mxu0 %v727
  %1027 = vmatpush1.bf16.msra.mxu0 %v726
  %1028 = vmatprep.subr.bf16.mxu0 %v725
  %1029 = vmatpush1.bf16.msra.mxu0 %v724
  %1030 = vmatprep.subr.bf16.mxu0 %v723
  %1031 = vmatpush1.bf16.msra.mxu0 %v722
  %1032 = vmatprep.subr.bf16.mxu0 %v721
  %1033 = vmatpush1.bf16.msra.mxu0 %v720
  %1034 = vmatprep.subr.bf16.mxu0 %v719
  %1035 = vmatpush1.bf16.msra.mxu0 %v718
  %1036 = vmatprep.subr.bf16.mxu0 %v717
  %1037 = vmatpush1.bf16.msra.mxu0 %v716
  %1038 = vmatprep.subr.bf16.mxu0 %v747
  %1039 = vmatpush2.bf16.msra.mxu0 %v746
  %1040 = vmatprep.subr.bf16.mxu0 %v745
  %1041 = vmatpush2.bf16.msra.mxu0 %v744
  %1042 = vmatprep.subr.bf16.mxu0 %v743
  %1043 = vmatpush2.bf16.msra.mxu0 %v742
  %1044 = vmatprep.subr.bf16.mxu0 %v741
  %1045 = vmatpush2.bf16.msra.mxu0 %v740
  %1046 = vmatprep.subr.bf16.mxu0 %v739
  %1047 = vmatpush2.bf16.msra.mxu0 %v738
  %1048 = vmatprep.subr.bf16.mxu0 %v737
  %1049 = vmatpush2.bf16.msra.mxu0 %v736
  %1050 = vmatprep.subr.bf16.mxu0 %v735
  %1051 = vmatpush2.bf16.msra.mxu0 %v734
  %1052 = vmatprep.subr.bf16.mxu0 %v733
  %1053 = vmatpush2.bf16.msra.mxu0 %v732
  %1054 = vmatprep.mubr.bf16.mxu0 %v207
  %1055 = vmatmul.mubr.bf16.gmra.mxu0 %v206
  %v1056 = vpop.f32.mrf.mxu0
  %v1057 = vadd.f32 %v1016, %v1056
  %v1058 = vpop.f32.mrf.mxu0
  %v1059 = vadd.f32 %v1018, %v1058
  %v1060 = vpop.f32.mrf.mxu0
  %v1061 = vpop.f32.mrf.mxu0
  %1062 = vdwg.mxu0
  %1063 = vmatprep.subr.bf16.mxu0 %v763
  %1064 = vmatpush1.bf16.msra.mxu0 %v762
  %1065 = vmatprep.subr.bf16.mxu0 %v761
  %1066 = vmatpush1.bf16.msra.mxu0 %v760
  %1067 = vmatprep.subr.bf16.mxu0 %v759
  %1068 = vmatpush1.bf16.msra.mxu0 %v758
  %1069 = vmatprep.subr.bf16.mxu0 %v757
  %1070 = vmatpush1.bf16.msra.mxu0 %v756
  %1071 = vmatprep.subr.bf16.mxu0 %v755
  %1072 = vmatpush1.bf16.msra.mxu0 %v754
  %1073 = vmatprep.subr.bf16.mxu0 %v753
  %1074 = vmatpush1.bf16.msra.mxu0 %v752
  %1075 = vmatprep.subr.bf16.mxu0 %v751
  %1076 = vmatpush1.bf16.msra.mxu0 %v750
  %1077 = vmatprep.subr.bf16.mxu0 %v749
  %1078 = vmatpush1.bf16.msra.mxu0 %v748
  %1079 = vmatprep.subr.bf16.mxu0 %v779
  %1080 = vmatpush2.bf16.msra.mxu0 %v778
  %1081 = vmatprep.subr.bf16.mxu0 %v777
  %1082 = vmatpush2.bf16.msra.mxu0 %v776
  %1083 = vmatprep.subr.bf16.mxu0 %v775
  %1084 = vmatpush2.bf16.msra.mxu0 %v774
  %1085 = vmatprep.subr.bf16.mxu0 %v773
  %1086 = vmatpush2.bf16.msra.mxu0 %v772
  %1087 = vmatprep.subr.bf16.mxu0 %v771
  %1088 = vmatpush2.bf16.msra.mxu0 %v770
  %1089 = vmatprep.subr.bf16.mxu0 %v769
  %1090 = vmatpush2.bf16.msra.mxu0 %v768
  %1091 = vmatprep.subr.bf16.mxu0 %v767
  %1092 = vmatpush2.bf16.msra.mxu0 %v766
  %1093 = vmatprep.subr.bf16.mxu0 %v765
  %1094 = vmatpush2.bf16.msra.mxu0 %v764
  %1095 = vmatprep.mubr.bf16.mxu0 %v209
  %1096 = vmatmul.mubr.bf16.gmra.mxu0 %v208
  %v1097 = vpop.f32.mrf.mxu0
  %v1098 = vadd.f32 %v1057, %v1097
  %v1099 = vpop.f32.mrf.mxu0
  %v1100 = vadd.f32 %v1059, %v1099
  %v1101 = vpop.f32.mrf.mxu0
  %v1102 = vpop.f32.mrf.mxu0
  %1103 = vdwg.mxu0
  %1104 = vmatprep.subr.bf16.mxu0 %v795
  %1105 = vmatpush1.bf16.msra.mxu0 %v794
  %1106 = vmatprep.subr.bf16.mxu0 %v793
  %1107 = vmatpush1.bf16.msra.mxu0 %v792
  %1108 = vmatprep.subr.bf16.mxu0 %v791
  %1109 = vmatpush1.bf16.msra.mxu0 %v790
  %1110 = vmatprep.subr.bf16.mxu0 %v789
  %1111 = vmatpush1.bf16.msra.mxu0 %v788
  %1112 = vmatprep.subr.bf16.mxu0 %v787
  %1113 = vmatpush1.bf16.msra.mxu0 %v786
  %1114 = vmatprep.subr.bf16.mxu0 %v785
  %1115 = vmatpush1.bf16.msra.mxu0 %v784
  %1116 = vmatprep.subr.bf16.mxu0 %v783
  %1117 = vmatpush1.bf16.msra.mxu0 %v782
  %1118 = vmatprep.subr.bf16.mxu0 %v781
  %1119 = vmatpush1.bf16.msra.mxu0 %v780
  %1120 = vmatprep.subr.bf16.mxu0 0
  %1121 = vmatpush2.bf16.msra.mxu0 0
  %1122 = vmatprep.subr.bf16.mxu0 0
  %1123 = vmatpush2.bf16.msra.mxu0 0
  %1124 = vmatprep.subr.bf16.mxu0 0
  %1125 = vmatpush2.bf16.msra.mxu0 0
  %1126 = vmatprep.subr.bf16.mxu0 0
  %1127 = vmatpush2.bf16.msra.mxu0 0
  %1128 = vmatprep.subr.bf16.mxu0 0
  %1129 = vmatpush2.bf16.msra.mxu0 0
  %1130 = vmatprep.subr.bf16.mxu0 0
  %1131 = vmatpush2.bf16.msra.mxu0 0
  %1132 = vmatprep.subr.bf16.mxu0 0
  %1133 = vmatpush2.bf16.msra.mxu0 0
  %1134 = vmatprep.subr.bf16.mxu0 0
  %1135 = vmatpush2.bf16.msra.mxu0 0
  %1136 = vmatprep.mubr.bf16.mxu0 0
  %1137 = vmatmul.mubr.bf16.gmra.mxu0 %v210
  %v1138 = vpop.f32.mrf.mxu0
  %v1139 = vadd.f32 %v1098, %v1138
  %v1140 = vpop.f32.mrf.mxu0
  %v1141 = vadd.f32 %v1100, %v1140
  %v1142 = vpop.f32.mrf.mxu0
  %v1143 = vpop.f32.mrf.mxu0
  %1144 = vdwg.mxu0
  %v1145 = vmax.f32 %v1139, 0.0
  %v1146 = vmax.f32 %v1141, 0.0
  %v1147 = vpack.c.bf16 %v1145, %v1145
  %v1148 = vpack.c.bf16 %v1146, %v1146
  %v1149 = vld [vmem:[%s3] sm:$0xf]
  %v1150 = vld [vmem:[%s3 + $0x4] sm:$0xf]
  %v1151 = vld [vmem:[%s3 + $0x8] sm:$0xf]
  %v1152 = vld [vmem:[%s3 + $0xc] sm:$0xf]
  %v1153 = vld [vmem:[%s3 + $0x10] sm:$0xf]
  %v1154 = vld [vmem:[%s3 + $0x14] sm:$0xf]
  %v1155 = vld [vmem:[%s3 + $0x18] sm:$0xf]
  %v1156 = vld [vmem:[%s3 + $0x1c] sm:$0xf]
  %v1157 = vld [vmem:[%s3 + $0x20] sm:$0xf]
  %v1158 = vld [vmem:[%s3 + $0x24] sm:$0xf]
  %v1159 = vld [vmem:[%s3 + $0x28] sm:$0xf]
  %v1160 = vld [vmem:[%s3 + $0x2c] sm:$0xf]
  %v1161 = vld [vmem:[%s3 + $0x30] sm:$0xf]
  %v1162 = vld [vmem:[%s3 + $0x34] sm:$0xf]
  %v1163 = vld [vmem:[%s3 + $0x38] sm:$0xf]
  %v1164 = vld [vmem:[%s3 + $0x3c] sm:$0xf]
  %v1165 = vld [vmem:[%s3 + $0x40] sm:$0xf]
  %v1166 = vld [vmem:[%s3 + $0x44] sm:$0xf]
  %v1167 = vld [vmem:[%s3 + $0x48] sm:$0xf]
  %v1168 = vld [vmem:[%s3 + $0x4c] sm:$0xf]
  %v1169 = vld [vmem:[%s3 + $0x50] sm:$0xf]
  %v1170 = vld [vmem:[%s3 + $0x54] sm:$0xf]
  %v1171 = vld [vmem:[%s3 + $0x58] sm:$0xf]
  %v1172 = vld [vmem:[%s3 + $0x5c] sm:$0xf]
  %v1173 = vld [vmem:[%s3 + $0x60] sm:$0xf]
  %v1174 = vld [vmem:[%s3 + $0x64] sm:$0xf]
  %v1175 = vld [vmem:[%s3 + $0x68] sm:$0xf]
  %v1176 = vld [vmem:[%s3 + $0x6c] sm:$0xf]
  %v1177 = vld [vmem:[%s3 + $0x70] sm:$0xf]
  %v1178 = vld [vmem:[%s3 + $0x74] sm:$0xf]
  %v1179 = vld [vmem:[%s3 + $0x78] sm:$0xf]
  %v1180 = vld [vmem:[%s3 + $0x7c] sm:$0xf]
  %v1181 = vld [vmem:[%s4] sm:$0x1]
  %v1183 = vlaneseq
  %v1184 = vshrl.u32 %v1183, 7
  %v1185 = vsub.s32 0, %v1184
  %v1186 = vrot.slane %v1181, %v1185
  %v1220 = vunpack.c.l.b16 %v1149
  %v1221 = vunpack.c.l.b16 %v1150
  %v1222 = vunpack.c.l.b16 %v1151
  %v1223 = vunpack.c.l.b16 %v1152
  %v1224 = vunpack.c.l.b16 %v1153
  %v1225 = vunpack.c.l.b16 %v1154
  %v1226 = vunpack.c.l.b16 %v1155
  %v1227 = vunpack.c.l.b16 %v1156
  %v1228 = vunpack.c.l.b16 %v1157
  %v1229 = vunpack.c.l.b16 %v1158
  %v1230 = vunpack.c.l.b16 %v1159
  %v1231 = vunpack.c.l.b16 %v1160
  %v1232 = vunpack.c.l.b16 %v1161
  %v1233 = vunpack.c.l.b16 %v1162
  %v1234 = vunpack.c.l.b16 %v1163
  %v1235 = vunpack.c.l.b16 %v1164
  %v1236 = vunpack.c.l.b16 %v1165
  %v1237 = vunpack.c.l.b16 %v1166
  %v1238 = vunpack.c.l.b16 %v1167
  %v1239 = vunpack.c.l.b16 %v1168
  %v1240 = vunpack.c.l.b16 %v1169
  %v1241 = vunpack.c.l.b16 %v1170
  %v1242 = vunpack.c.l.b16 %v1171
  %v1243 = vunpack.c.l.b16 %v1172
  %v1244 = vunpack.c.l.b16 %v1173
  %v1245 = vunpack.c.l.b16 %v1174
  %v1246 = vunpack.c.l.b16 %v1175
  %v1247 = vunpack.c.l.b16 %v1176
  %v1248 = vunpack.c.l.b16 %v1177
  %v1249 = vunpack.c.l.b16 %v1178
  %v1250 = vunpack.c.l.b16 %v1179
  %v1251 = vunpack.c.l.b16 %v1180
  %v1252 = vpack.c.b16 %v1221, %v1220
  %v1253 = vpack.c.b16 %v1223, %v1222
  %v1254 = vpack.c.b16 %v1225, %v1224
  %v1255 = vpack.c.b16 %v1227, %v1226
  %v1256 = vpack.c.b16 %v1229, %v1228
  %v1257 = vpack.c.b16 %v1231, %v1230
  %v1258 = vpack.c.b16 %v1233, %v1232
  %v1259 = vpack.c.b16 %v1235, %v1234
  %v1260 = vpack.c.b16 %v1237, %v1236
  %v1261 = vpack.c.b16 %v1239, %v1238
  %v1262 = vpack.c.b16 %v1241, %v1240
  %v1263 = vpack.c.b16 %v1243, %v1242
  %v1264 = vpack.c.b16 %v1245, %v1244
  %v1265 = vpack.c.b16 %v1247, %v1246
  %v1266 = vpack.c.b16 %v1249, %v1248
  %v1267 = vpack.c.b16 %v1251, %v1250
  %1284 = vmatprep.subr.bf16.mxu0 0
  %1285 = vmatpush1.bf16.msra.mxu0 %v1259
  %1286 = vmatprep.subr.bf16.mxu0 0
  %1287 = vmatpush1.bf16.msra.mxu0 %v1258
  %1288 = vmatprep.subr.bf16.mxu0 0
  %1289 = vmatpush1.bf16.msra.mxu0 %v1257
  %1290 = vmatprep.subr.bf16.mxu0 0
  %1291 = vmatpush1.bf16.msra.mxu0 %v1256
  %1292 = vmatprep.subr.bf16.mxu0 0
  %1293 = vmatpush1.bf16.msra.mxu0 %v1255
  %1294 = vmatprep.subr.bf16.mxu0 0
  %1295 = vmatpush1.bf16.msra.mxu0 %v1254
  %1296 = vmatprep.subr.bf16.mxu0 0
  %1297 = vmatpush1.bf16.msra.mxu0 %v1253
  %1298 = vmatprep.subr.bf16.mxu0 0
  %1299 = vmatpush1.bf16.msra.mxu0 %v1252
  %1300 = vmatprep.subr.bf16.mxu0 0
  %1301 = vmatpush2.bf16.msra.mxu0 %v1267
  %1302 = vmatprep.subr.bf16.mxu0 0
  %1303 = vmatpush2.bf16.msra.mxu0 %v1266
  %1304 = vmatprep.subr.bf16.mxu0 0
  %1305 = vmatpush2.bf16.msra.mxu0 %v1265
  %1306 = vmatprep.subr.bf16.mxu0 0
  %1307 = vmatpush2.bf16.msra.mxu0 %v1264
  %1308 = vmatprep.subr.bf16.mxu0 0
  %1309 = vmatpush2.bf16.msra.mxu0 %v1263
  %1310 = vmatprep.subr.bf16.mxu0 0
  %1311 = vmatpush2.bf16.msra.mxu0 %v1262
  %1312 = vmatprep.subr.bf16.mxu0 0
  %1313 = vmatpush2.bf16.msra.mxu0 %v1261
  %1314 = vmatprep.subr.bf16.mxu0 0
  %1315 = vmatpush2.bf16.msra.mxu0 %v1260
  %1316 = vmatprep.mubr.bf16.mxu0 %v1148
  %1317 = vmatmul.mubr.bf16.gmra.mxu0 %v1147
  %v1318 = vpop.f32.mrf.mxu0
  %v1319 = vadd.f32 %v1186, %v1318
  %v1320 = vpop.f32.mrf.mxu0
  %v1321 = vpop.f32.mrf.mxu0
  %v1322 = vpop.f32.mrf.mxu0
  %1323 = vdwg.mxu0
  %v1324 = vmax.f32 %v1319, 0.0
  %v1325 = vpack.c.bf16 %v1324, %v1324
  %v1326 = vld [vmem:[%s5] sm:$0xf]
  %v1327 = vld [vmem:[%s5 + $0x4] sm:$0xf]
  %v1328 = vld [vmem:[%s5 + $0x8] sm:$0xf]
  %v1329 = vld [vmem:[%s5 + $0xc] sm:$0xf]
  %v1330 = vld [vmem:[%s5 + $0x10] sm:$0xf]
  %v1331 = vld [vmem:[%s5 + $0x14] sm:$0xf]
  %v1332 = vld [vmem:[%s5 + $0x18] sm:$0xf]
  %v1333 = vld [vmem:[%s5 + $0x1c] sm:$0xf]
  %v1334 = vld [vmem:[%s5 + $0x20] sm:$0xf]
  %v1335 = vld [vmem:[%s5 + $0x24] sm:$0xf]
  %v1336 = vld [vmem:[%s5 + $0x28] sm:$0xf]
  %v1337 = vld [vmem:[%s5 + $0x2c] sm:$0xf]
  %v1338 = vld [vmem:[%s5 + $0x30] sm:$0xf]
  %v1339 = vld [vmem:[%s5 + $0x34] sm:$0xf]
  %v1340 = vld [vmem:[%s5 + $0x38] sm:$0xf]
  %v1341 = vld [vmem:[%s5 + $0x3c] sm:$0xf]
  %v1342 = vld [vmem:[%s6] sm:$0x1]
  %v1344 = vlaneseq
  %v1345 = vshrl.u32 %v1344, 7
  %v1346 = vsub.s32 0, %v1345
  %v1347 = vrot.slane %v1342, %v1346
  %v1365 = vunpack.c.l.b16 %v1326
  %v1366 = vunpack.c.l.b16 %v1327
  %v1367 = vunpack.c.l.b16 %v1328
  %v1368 = vunpack.c.l.b16 %v1329
  %v1369 = vunpack.c.l.b16 %v1330
  %v1370 = vunpack.c.l.b16 %v1331
  %v1371 = vunpack.c.l.b16 %v1332
  %v1372 = vunpack.c.l.b16 %v1333
  %v1373 = vunpack.c.l.b16 %v1334
  %v1374 = vunpack.c.l.b16 %v1335
  %v1375 = vunpack.c.l.b16 %v1336
  %v1376 = vunpack.c.l.b16 %v1337
  %v1377 = vunpack.c.l.b16 %v1338
  %v1378 = vunpack.c.l.b16 %v1339
  %v1379 = vunpack.c.l.b16 %v1340
  %v1380 = vunpack.c.l.b16 %v1341
  %v1381 = vpack.c.b16 %v1366, %v1365
  %v1382 = vpack.c.b16 %v1368, %v1367
  %v1383 = vpack.c.b16 %v1370, %v1369
  %v1384 = vpack.c.b16 %v1372, %v1371
  %v1385 = vpack.c.b16 %v1374, %v1373
  %v1386 = vpack.c.b16 %v1376, %v1375
  %v1387 = vpack.c.b16 %v1378, %v1377
  %v1388 = vpack.c.b16 %v1380, %v1379
  %1397 = vmatprep.subr.bf16.mxu0 0
  %1398 = vmatpush1.bf16.msra.mxu0 %v1388
  %1399 = vmatprep.subr.bf16.mxu0 0
  %1400 = vmatpush1.bf16.msra.mxu0 %v1387
  %1401 = vmatprep.subr.bf16.mxu0 0
  %1402 = vmatpush1.bf16.msra.mxu0 %v1386
  %1403 = vmatprep.subr.bf16.mxu0 0
  %1404 = vmatpush1.bf16.msra.mxu0 %v1385
  %1405 = vmatprep.subr.bf16.mxu0 0
  %1406 = vmatpush1.bf16.msra.mxu0 %v1384
  %1407 = vmatprep.subr.bf16.mxu0 0
  %1408 = vmatpush1.bf16.msra.mxu0 %v1383
  %1409 = vmatprep.subr.bf16.mxu0 0
  %1410 = vmatpush1.bf16.msra.mxu0 %v1382
  %1411 = vmatprep.subr.bf16.mxu0 0
  %1412 = vmatpush1.bf16.msra.mxu0 %v1381
  %1413 = vmatprep.subr.bf16.mxu0 0
  %1414 = vmatpush2.bf16.msra.mxu0 0
  %1415 = vmatprep.subr.bf16.mxu0 0
  %1416 = vmatpush2.bf16.msra.mxu0 0
  %1417 = vmatprep.subr.bf16.mxu0 0
  %1418 = vmatpush2.bf16.msra.mxu0 0
  %1419 = vmatprep.subr.bf16.mxu0 0
  %1420 = vmatpush2.bf16.msra.mxu0 0
  %1421 = vmatprep.subr.bf16.mxu0 0
  %1422 = vmatpush2.bf16.msra.mxu0 0
  %1423 = vmatprep.subr.bf16.mxu0 0
  %1424 = vmatpush2.bf16.msra.mxu0 0
  %1425 = vmatprep.subr.bf16.mxu0 0
  %1426 = vmatpush2.bf16.msra.mxu0 0
  %1427 = vmatprep.subr.bf16.mxu0 0
  %1428 = vmatpush2.bf16.msra.mxu0 0
  %1429 = vmatprep.mubr.bf16.mxu0 0
  %1430 = vmatmul.mubr.bf16.gmra.mxu0 %v1325
  %v1431 = vpop.f32.mrf.mxu0
  %v1432 = vadd.f32 %v1347, %v1431
  %v1433 = vpop.f32.mrf.mxu0
  %v1434 = vpop.f32.mrf.mxu0
  %v1435 = vpop.f32.mrf.mxu0
  %1436 = vdwg.mxu0
  %1437 = vst [vmem:[%s7] sm:$0xff] %v1432
  // Predicated region
  $region30: #{simple_cnn_forward.5} parent=0 // pred_check
    _
  $region31: #{simple_cnn_forward.5} parent=0 // pred_check_branch
    %1439 = sbr.rel (0) target = $region33
  $region32: #{simple_cnn_forward.5} parent=0 // pred_region
    _
  $region33: #{simple_cnn_forward.5} parent=0 // pred_fallthru
    _
  // Predicated region
  $region34: #{simple_cnn_forward.5} parent=0 // pred_check
    _
  $region35: #{simple_cnn_forward.5} parent=0 // pred_check_branch
    %1441 = sbr.rel (0) target = $region37
  $region36: #{simple_cnn_forward.5} parent=0 // pred_region
    _
  $region37: #{simple_cnn_forward.5} parent=0 // pred_fallthru
    _

</llo_original>
